<compile_context>
chip_gen: v7x
topology: tpu7x:2x2x1
jax: 0.10.0
libtpu: 0.0.40
codegen_flags: <defaults>
</compile_context>

<pallas_src>
import functools

import numpy as np
import jax
import jax.numpy as jnp
from jax import lax
from jax.experimental import pallas as pl
from jax.experimental.pallas import tpu as pltpu

LEAKY_SLOPE = 0.1
BN_EPS = 1e-5
# Flip to jnp.bfloat16 on v6e/v7x to cut MXU passes / operand bytes (loosen the parity
# tolerance in the driver if you do). f32 default = exact parity with the reference.
MATMUL_DTYPE = jnp.float32


# ------------------------------ small helpers ------------------------------

def _round_up(x, m):
    return -(-x // m) * m


def _leaky(x):
    return jnp.where(x > 0, x, LEAKY_SLOPE * x)


def _bn_scale_shift(bias, gamma, beta, mean, var, eps=BN_EPS):
    """Fold conv bias + eval-mode BatchNorm into per-channel (scale, shift)."""
    s = gamma / jnp.sqrt(var + eps)
    return s, s * (bias - mean) + beta


def _fold_batch(x):                      # (N, C, L) -> (C, N*L)
    n, c, l = x.shape
    return jnp.transpose(x, (1, 0, 2)).reshape(c, n * l)


# ------------------------------ Pallas kernel ------------------------------

def _convt_stage(x_prev, u_ref, w_ref, cfg, mm_dtype):
    """ConvTranspose1d (stride S, kernel K) of x_prev, batch folded into lanes.

    x_prev : (in_rows, n*in_lc) value already resident in VMEM.
    u_ref  : constant 0/1 upsample+crop matrix  (n*in_lc, W); dot(x_prev, U) repeats
             every kept input sample `stride` times along the output lane axis.
    w_ref  : phase-stacked polyphase ConvT weight (S*oc_pad, J*in_rows).
    Returns the phase-combined pre-bias output (oc_pad, W) and the within-batch
    position index t (1, W).
    """
    W, l_c, S, J, oc_pad = cfg["w"], cfg["l_c"], cfg["stride"], cfg["j_taps"], cfg["oc_pad"]
    lane = lax.broadcasted_iota(jnp.int32, (1, W), 1)
    t = lane & (l_c - 1)                                    # l_c is a power of two
    e0 = jnp.dot(x_prev.astype(mm_dtype), u_ref[...],
                 preferred_element_type=jnp.float32)        # x[floor(t/S)]
    taps = [e0]
    for j in range(1, J):                                   # x[floor(t/S) - j]
        shifted = pltpu.roll(e0, shift=j * S, axis=1)       # non-negative shift only
        taps.append(jnp.where(t >= j * S, shifted, 0.0))
    ecat = taps[0] if J == 1 else jnp.concatenate(taps, axis=0)
    ystack = jnp.dot(w_ref[...], ecat.astype(mm_dtype),
                     preferred_element_type=jnp.float32)    # (S*oc_pad, W)
    phase = lane & (S - 1)                                  # S power of two, l_c % S == 0
    y = jnp.where(phase == 0, ystack[0:oc_pad], 0.0)
    for r in range(1, S):
        y = y + jnp.where(phase == r, ystack[r * oc_pad:(r + 1) * oc_pad], 0.0)
    return y, t


def _fused_decoder_kernel(*refs, dec_cfgs, head_cfg, mm_dtype):
    n_dec = len(dec_cfgs)
    x0_ref = refs[0]
    pos = 1
    dec_refs = []
    for _ in range(n_dec):
        dec_refs.append(refs[pos:pos + 6])
        pos += 6
    uh_ref, wh_ref, b1_ref, w5_ref, shh_ref, osc_ref, osh_ref = refs[pos:pos + 7]
    pos += 7
    dec_out_refs = refs[pos:pos + n_dec]
    head_out_ref = refs[pos + n_dec]

    x = x0_ref[...]
    for i, cfg in enumerate(dec_cfgs):
        u_ref, w_ref, sh1_ref, a3_ref, sh2_ref, skip_ref = dec_refs[i]
        W, l_c = cfg["w"], cfg["l_c"]
        # ConvTranspose1d (+folded BN1 scale) + bias/shift + LeakyReLU.
        y, t = _convt_stage(x, u_ref, w_ref, cfg, mm_dtype)
        y = _leaky(y + sh1_ref[...])
        if cfg["l_valid"] < l_c:                 # zero non-existent positions
            y = jnp.where(t < cfg["l_valid"], y, 0.0)
        # Conv1d(k=3,'same') + folded BN2 as ONE matmul on [y[t-1]; y[t]; y[t+1]].
        ym1 = jnp.where(t >= 1, pltpu.roll(y, shift=1, axis=1), 0.0)
        yp1 = jnp.where(t <= l_c - 2, pltpu.roll(y, shift=W - 1, axis=1), 0.0)
        ycat = jnp.concatenate([ym1, y, yp1], axis=0)
        dec = jnp.dot(a3_ref[...], ycat.astype(mm_dtype),
                      preferred_element_type=jnp.float32) + sh2_ref[...]
        # make_skip_connection(-decoder_output, skip) == leaky(skip - dec)
        x = _leaky(skip_ref[...] - dec) if cfg["has_skip"] else dec
        dec_out_refs[i][...] = x

    # Heads: both ConvTranspose1d's phase/head-stacked in one matmul, depthwise k=5
    # conv (+folded BN), and ONE tanh pass (sigmoid via 0.5*(tanh(0.5*x)+1)).
    cfg = head_cfg
    W, l_c, k5 = cfg["w"], cfg["l_c"], cfg["k5"]
    half = (k5 - 1) // 2
    y, t = _convt_stage(x, uh_ref, wh_ref, cfg, mm_dtype)
    y = _leaky(y + b1_ref[...])
    if cfg["l_valid"] < l_c:
        y = jnp.where(t < cfg["l_valid"], y, 0.0)
    w5 = w5_ref[...]                                        # (k5, h_pad, 1)
    z = w5[half] * y
    for d in range(k5):
        o = d - half
        if o == 0:
            continue
        tap = pltpu.roll(y, shift=(-o) % W, axis=1)         # non-negative shift
        tap = jnp.where(t <= l_c - 1 - o, tap, 0.0) if o > 0 else jnp.where(t >= -o, tap, 0.0)
        z = z + w5[d] * tap
    z = z + shh_ref[...]
    head_out_ref[...] = osc_ref[...] * jnp.tanh(z) + osh_ref[...]


# ------------------------------ host-side prep (weight folding, constants) ------------------------------

def _upsample_select_matrix(n, in_lc, in_len, stride, l_c):
    """Constant 0/1 matrix U (n*in_lc, n*l_c): U[b*in_lc + q, b*l_c + t] = 1 iff
    t//stride == q < in_len.  Built from static shapes only (numpy)."""
    u = np.zeros((n * in_lc, n * l_c), np.float32)
    lim = min(l_c, in_len * stride)
    cols = np.arange(lim)
    for b in range(n):
        u[b * in_lc + cols // stride, b * l_c + cols] = 1.0
    return u


def _phase_stack_ct_weight(w_ct, out_scale, stride, oc_pad, in_rows):
    """ConvTranspose1d weight (IC, OC, K) -> (stride*oc_pad, J*in_rows) polyphase
    matrix acting on [x[q]; x[q-1]; ...]: no zero taps, output rows = phase*oc + o."""
    ic, oc, K = w_ct.shape
    J = -(-K // stride)
    wq = w_ct * out_scale[None, :, None]
    m = jnp.zeros((stride * oc_pad, J * in_rows), jnp.float32)
    for r in range(stride):
        for j in range(J):
            k = r + stride * j
            if k < K:
                m = m.at[r * oc_pad:r * oc_pad + oc,
                         j * in_rows:j * in_rows + ic].set(wq[:, :, k].T)
    return m


def _pad_col(v, rows):
    return jnp.zeros((rows, 1), jnp.float32).at[:v.shape[0], 0].set(v)


def _prep_decode_stage(blk, skip, n, in_rows, in_len, in_lc):
    K, S, op = blk["k"], blk["stride"], blk["op"]
    assert S & (S - 1) == 0, "fused kernel assumes power-of-two stride"
    ic, oc = blk["ct_w"].shape[0], blk["ct_w"].shape[1]
    oc_pad = _round_up(oc, 8)
    J = -(-K // S)
    l_out = (in_len - 1) * S + K + op
    l_keep = int(skip.shape[2]) if skip is not None else l_out
    assert l_out >= l_keep, "decoder output shorter than skip connection"
    l_c = int(pl.next_power_of_2(max(l_keep + 1, S)))       # +1: right tap of k=3 conv
    l_valid = min(l_out, l_c)

    u = jnp.asarray(_upsample_select_matrix(n, in_lc, in_len, S, l_c))
    s1, sh1 = _bn_scale_shift(blk["ct_b"], *blk["bn1"])
    wstack = _phase_stack_ct_weight(blk["ct_w"], s1, S, oc_pad, in_rows)
    s2, sh2 = _bn_scale_shift(blk["cv_b"], *blk["bn2"])
    cw = blk["cv_w"] * s2[:, None, None]                    # (oc, oc, 3), BN2 folded
    a3 = jnp.zeros((oc_pad, 3 * oc_pad), jnp.float32)
    for d in range(3):
        a3 = a3.at[:oc, d * oc_pad:d * oc_pad + oc].set(cw[:, :, d])
    if skip is not None:
        sk = jnp.zeros((n, oc_pad, l_c), jnp.float32).at[:, :oc, :l_keep].set(skip)
        skip_f = _fold_batch(sk)
    else:
        skip_f = jnp.zeros((oc_pad, n * l_c), jnp.float32)

    cfg = dict(w=n * l_c, l_c=l_c, l_valid=l_valid, stride=S, j_taps=J,
               oc_pad=oc_pad, oc=oc, l_keep=l_keep, has_skip=skip is not None)
    args = (u.astype(MATMUL_DTYPE), wstack.astype(MATMUL_DTYPE), _pad_col(sh1, oc_pad),
            a3.astype(MATMUL_DTYPE), _pad_col(sh2, oc_pad), skip_f)
    return cfg, args


def _prep_heads(heads, n, in_rows, in_len, in_lc, signal_length):
    K, S, op = heads[0]["k"], heads[0]["stride"], heads[0]["op"]
    k5 = heads[0]["cv_w"].shape[2]
    assert all(h["k"] == K and h["stride"] == S and h["op"] == op
               and h["cv_w"].shape[2] == k5 for h in heads)
    assert S & (S - 1) == 0
    nh = len(heads)
    h_pad = _round_up(nh, 8)                                # full-vreg head output rows
    half = (k5 - 1) // 2
    J = -(-K // S)
    l_out = (in_len - 1) * S + K + op
    l_keep = min(signal_length, l_out)
    l_c = int(pl.next_power_of_2(max(l_keep + half, S)))
    l_valid = min(l_out, l_c)

    u = jnp.asarray(_upsample_select_matrix(n, in_lc, in_len, S, l_c))
    wstack = jnp.zeros((S * h_pad, J * in_rows), jnp.float32)
    b1 = jnp.zeros((h_pad, 1), jnp.float32)
    w5 = jnp.zeros((h_pad, k5), jnp.float32)
    shf = jnp.zeros((h_pad, 1), jnp.float32)
    osc = jnp.zeros((h_pad, 1), jnp.float32)
    osh = jnp.zeros((h_pad, 1), jnp.float32)
    for h, hp in enumerate(heads):
        ic = hp["ct_w"].shape[0]
        for r in range(S):
            for j in range(J):
                k = r + S * j
                if k < K:
                    wstack = wstack.at[r * h_pad + h,
                                       j * in_rows:j * in_rows + ic].set(hp["ct_w"][:, 0, k])
        b1 = b1.at[h, 0].set(hp["ct_b"][0])
        s, sh = _bn_scale_shift(hp["cv_b"], *hp["bn"])
        # sigmoid(x) == 0.5*(tanh(0.5*x)+1): fold the 0.5 argument scale into the
        # BN-folded k=5 conv so both heads share a single tanh pass in the kernel.
        arg = 0.5 if hp["act"] == "sigmoid" else 1.0
        w5 = w5.at[h].set(arg * s[0] * hp["cv_w"][0, 0])
        shf = shf.at[h, 0].set(arg * sh[0])
        osc = osc.at[h, 0].set(0.5 if hp["act"] == "sigmoid" else 1.0)
        osh = osh.at[h, 0].set(0.5 if hp["act"] == "sigmoid" else 0.0)
    w5_in = jnp.transpose(w5, (1, 0))[:, :, None]           # (k5, h_pad, 1)

    cfg = dict(w=n * l_c, l_c=l_c, l_valid=l_valid, stride=S, j_taps=J,
               oc_pad=h_pad, n_heads=nh, k5=k5, l_keep=l_keep)
    args = (u.astype(MATMUL_DTYPE), wstack.astype(MATMUL_DTYPE), b1, w5_in, shf, osc, osh)
    return cfg, args


# ------------------------------ Forward ------------------------------

def decoder_forward(params, inner_layer, skips=None, signal_length=500):
    """Fused Pallas forward. Returns (heads, decode_outs) exactly like Decoder.forward."""
    n, ic0, l0 = inner_layer.shape
    all_args = [_fold_batch(inner_layer).astype(MATMUL_DTYPE)]

    dec_cfgs = []
    in_rows, in_len, in_lc = ic0, l0, l0
    for i, blk in enumerate(params["decode"]):
        skip = skips[-i - 2] if skips is not None else None
        cfg, args = _prep_decode_stage(blk, skip, n, in_rows, in_len, in_lc)
        dec_cfgs.append(cfg)
        all_args.extend(args)
        in_rows, in_len, in_lc = cfg["oc_pad"], cfg["l_keep"], cfg["l_c"]

    head_cfg, head_args = _prep_heads(params["heads"], n, in_rows, in_len, in_lc,
                                      signal_length)
    all_args.extend(head_args)

    out_shapes = tuple(jax.ShapeDtypeStruct((c["oc_pad"], c["w"]), jnp.float32)
                       for c in dec_cfgs)
    out_shapes += (jax.ShapeDtypeStruct((head_cfg["oc_pad"], head_cfg["w"]), jnp.float32),)

    # advisory cost estimate for the single fused call
    flops, prev_rows, prev_cols = 0, ic0, n * l0
    for c in list(dec_cfgs) + [head_cfg]:
        flops += 2 * prev_rows * prev_cols * c["w"]                                   # upsample dot
        flops += 2 * (c["stride"] * c["oc_pad"]) * (c["j_taps"] * prev_rows) * c["w"]  # polyphase ConvT
        if "k5" in c:
            flops += 2 * c["k5"] * c["oc_pad"] * c["w"]                               # depthwise k=5
        else:
            flops += 2 * c["oc_pad"] * 3 * c["oc_pad"] * c["w"]                       # k=3 conv dot
        prev_rows, prev_cols = c["oc_pad"], c["w"]
    bytes_accessed = sum(int(np.prod(a.shape)) * a.dtype.itemsize for a in all_args)
    bytes_accessed += sum(int(np.prod(s.shape)) * 4 for s in out_shapes)
    cost = pl.CostEstimate(flops=int(flops),
                           transcendentals=int(head_cfg["oc_pad"] * head_cfg["w"]),
                           bytes_accessed=int(bytes_accessed))

    kernel = functools.partial(_fused_decoder_kernel, dec_cfgs=tuple(dec_cfgs),
                               head_cfg=head_cfg, mm_dtype=MATMUL_DTYPE)
    vmem = pl.BlockSpec(memory_space=pltpu.MemorySpace.VMEM)
    outs = pl.pallas_call(
        kernel,
        out_shape=out_shapes,
        in_specs=[vmem] * len(all_args),
        out_specs=tuple([vmem] * len(out_shapes)),
        cost_estimate=cost,
    )(*all_args)

    decode_outs = [inner_layer]
    for c, o in zip(dec_cfgs, outs[:-1]):
        o3 = jnp.transpose(o.reshape(c["oc_pad"], n, c["l_c"]), (1, 0, 2))
        decode_outs.append(o3[:, :c["oc"], :c["l_keep"]])
    ho = outs[-1].reshape(head_cfg["oc_pad"], n, head_cfg["l_c"])
    heads = [ho[h][:, None, :head_cfg["l_keep"]] for h in range(head_cfg["n_heads"])]
    return heads, decode_outs


# ------------------------------ Parameters ------------------------------

def _rand(key, shape, scale=0.2):
    return scale * jax.random.normal(key, shape, dtype=jnp.float32)


def _init_bn(key, c):
    k1, k2, k3, k4 = jax.random.split(key, 4)
    gamma = 1.0 + 0.1 * jax.random.normal(k1, (c,), jnp.float32)
    beta = 0.1 * jax.random.normal(k2, (c,), jnp.float32)
    mean = 0.1 * jax.random.normal(k3, (c,), jnp.float32)
    var = 1.0 + 0.1 * jax.random.uniform(k4, (c,), jnp.float32)
    return gamma, beta, mean, var


def init_decoder_params(key, up_params, head_params):
    channels, kernels, strides = up_params
    params = {"decode": [], "heads": []}
    for i in range(len(channels) - 2):
        ic, oc = channels[i], channels[i + 1]
        ks, st = kernels[i], strides[i]
        key, a, b, c, d, e, f = jax.random.split(key, 7)
        params["decode"].append({
            "ct_w": _rand(a, (ic, oc, ks)),   # ConvTranspose1d weight (IC, OC, K)
            "ct_b": _rand(b, (oc,)),
            "bn1": _init_bn(c, oc),
            "cv_w": _rand(d, (oc, oc, 3)),    # Conv1d weight (OC, IC, 3)
            "cv_b": _rand(e, (oc,)),
            "bn2": _init_bn(f, oc),
            "k": ks, "stride": st, "op": min(1, st - 1),
        })
    ic = channels[-2]
    ks, st = kernels[-1], strides[-1]
    for act in head_params:
        if act not in ("tanh", "sigmoid"):
            raise NotImplementedError("No other head activations exist")
        key, a, b, c, d, e = jax.random.split(key, 6)
        params["heads"].append({
            "ct_w": _rand(a, (ic, 1, ks)),
            "ct_b": _rand(b, (1,)),
            "cv_w": _rand(c, (1, 1, 5)),
            "cv_b": _rand(d, (1,)),
            "bn": _init_bn(e, 1),
            "act": act, "k": ks, "stride": st, "op": 1,
        })
    return params


# ------------------------------ Plain-JAX reference (in-script check) ------------------------------

def _ref_convtranspose(x, w, b, stride, op):
    ic, oc, k = w.shape
    n, _, l = x.shape
    l_out = (l - 1) * stride + k + op
    l_up = (l - 1) * stride + 1
    x_up = jnp.zeros((n, ic, l_up), x.dtype).at[:, :, ::stride].set(x)
    xp = jnp.pad(x_up, ((0, 0), (0, 0), (k - 1, k - 1 + op)))
    cols = jnp.stack([xp[:, :, kk:kk + l_out] for kk in range(k)], axis=2)
    wf = jnp.transpose(jnp.flip(w, axis=2), (1, 0, 2))
    return jnp.einsum("oik,nikl->nol", wf, cols) + b[None, :, None]


def _ref_conv_same(x, w, b):
    oc, ic, k = w.shape
    n, _, l = x.shape
    pad = (k - 1) // 2
    xp = jnp.pad(x, ((0, 0), (0, 0), (pad, k - 1 - pad)))
    cols = jnp.stack([xp[:, :, kk:kk + l] for kk in range(k)], axis=2)
    return jnp.einsum("oik,nikl->nol", w, cols) + b[None, :, None]


def _ref_bn(x, bn):
    gamma, beta, mean, var = bn
    inv = gamma / jnp.sqrt(var + BN_EPS)
    return inv[None, :, None] * (x - mean[None, :, None]) + beta[None, :, None]


def reference_forward(params, inner, skips, signal_length):
    decode_outs = [inner]
    for i, blk in enumerate(params["decode"]):
        x = decode_outs[-1]
        y = _leaky(_ref_bn(_ref_convtranspose(x, blk["ct_w"], blk["ct_b"],
                                              blk["stride"], blk["op"]), blk["bn1"]))
        dec = _ref_bn(_ref_conv_same(y, blk["cv_w"], blk["cv_b"]), blk["bn2"])
        if skips is not None:
            skip = skips[-i - 2]
            decode_outs.append(_leaky(skip - dec[:, :, :skip.shape[2]]))
        else:
            decode_outs.append(dec)
    heads = []
    for h in params["heads"]:
        x = decode_outs[-1]
        y = _leaky(_ref_convtranspose(x, h["ct_w"], h["ct_b"], h["stride"], h["op"]))
        z = _ref_bn(_ref_conv_same(y, h["cv_w"], h["cv_b"]), h["bn"])
        z = jnp.tanh(z) if h["act"] == "tanh" else jax.nn.sigmoid(z)
        heads.append(z[:, :, :signal_length])
    return heads, decode_outs


# ------------------------------ Driver ------------------------------

if __name__ == "__main__":
    # up_params = (channels, kernel_sizes, strides); 2 decode blocks + 2 heads.
    up_params = ((16, 8, 8, 4), (8, 8, 8), (4, 4, 4))
    head_params = ("tanh", "sigmoid")
    signal_length = 500

    key = jax.random.PRNGKey(0)
    kp, kx, ks1, ks2 = jax.random.split(key, 4)
    params = init_decoder_params(kp, up_params, head_params)

    N, L_in = 2, 8
    inner = jax.random.normal(kx, (N, up_params[0][0], L_in), dtype=jnp.float32)
    # encoder-style skip stack: skips[-2] feeds decode layer 0, skips[-3] layer 1.
    skips = [
        jnp.zeros((N, 1, 512), jnp.float32),                 # unused
        jax.random.normal(ks1, (N, 8, 128), jnp.float32),    # for decode layer 1
        jax.random.normal(ks2, (N, 8, 32), jnp.float32),     # for decode layer 0
        inner,                                               # unused
    ]

    heads, decode_outs = decoder_forward(params, inner, skips, signal_length)
    heads = [jax.block_until_ready(h) for h in heads]
    decode_outs = [jax.block_until_ready(d) for d in decode_outs]

    # shape checks
    assert decode_outs[0].shape == (N, 16, 8)
    assert decode_outs[1].shape == (N, 8, 32)
    assert decode_outs[2].shape == (N, 8, 128)
    assert all(h.shape == (N, 1, signal_length) for h in heads)

    # numerical check of the fused Pallas forward vs a plain-JAX reference
    ref_heads, ref_decode = reference_forward(params, inner, skips, signal_length)
    pairs = list(zip(decode_outs[1:], ref_decode[1:])) + list(zip(heads, ref_heads))
    for got, ref in pairs:
        assert bool(jnp.allclose(got, ref, atol=1e-3, rtol=1e-3)), "Pallas/JAX mismatch"

    assert all(bool(jnp.all(jnp.isfinite(h))) for h in heads)
    # sigmoid head must lie in (0, 1), tanh head in [-1, 1]
    assert bool(jnp.all((heads[1] > 0.0) & (heads[1] < 1.0)))
    assert bool(jnp.all(jnp.abs(heads[0]) <= 1.0))

    print("KERNEL_OK")
</pallas_src>

<mosaic_0001>
module attributes {stable_mosaic.version = 11 : i64} {
  func.func @_fused_decoder_kernel(%arg0: memref<16x16xf32, #tpu.memory_space<vmem>>, %arg1: memref<16x128xf32, #tpu.memory_space<vmem>>, %arg2: memref<32x32xf32, #tpu.memory_space<vmem>>, %arg3: memref<8x1xf32, #tpu.memory_space<vmem>>, %arg4: memref<8x24xf32, #tpu.memory_space<vmem>>, %arg5: memref<8x1xf32, #tpu.memory_space<vmem>>, %arg6: memref<8x128xf32, #tpu.memory_space<vmem>>, %arg7: memref<128x512xf32, #tpu.memory_space<vmem>>, %arg8: memref<32x16xf32, #tpu.memory_space<vmem>>, %arg9: memref<8x1xf32, #tpu.memory_space<vmem>>, %arg10: memref<8x24xf32, #tpu.memory_space<vmem>>, %arg11: memref<8x1xf32, #tpu.memory_space<vmem>>, %arg12: memref<8x512xf32, #tpu.memory_space<vmem>>, %arg13: memref<512x1024xf32, #tpu.memory_space<vmem>>, %arg14: memref<32x16xf32, #tpu.memory_space<vmem>>, %arg15: memref<8x1xf32, #tpu.memory_space<vmem>>, %arg16: memref<5x8x1xf32, #tpu.memory_space<vmem>>, %arg17: memref<8x1xf32, #tpu.memory_space<vmem>>, %arg18: memref<8x1xf32, #tpu.memory_space<vmem>>, %arg19: memref<8x1xf32, #tpu.memory_space<vmem>>, %arg20: memref<8x128xf32, #tpu.memory_space<vmem>>, %arg21: memref<8x512xf32, #tpu.memory_space<vmem>>, %arg22: memref<8x1024xf32, #tpu.memory_space<vmem>>) attributes {dimension_semantics = [], scalar_prefetch = 0 : i64, scratch_operands = 0 : i64, tpu.core_type = #tpu.core_type<tc>} {
    %c0 = arith.constant 0 : index
    %c0_0 = arith.constant 0 : index
    %0 = vector.load %arg0[%c0, %c0_0] : memref<16x16xf32, #tpu.memory_space<vmem>>, vector<16x16xf32>
    %1 = tpu.iota {dimensions = array<i32: 1>} : vector<1x128xi32>
    %c63_i32 = arith.constant 63 : i32
    %2 = vector.broadcast %c63_i32 : i32 to vector<1x128xi32>
    %3 = arith.andi %1, %2 : vector<1x128xi32>
    %c0_1 = arith.constant 0 : index
    %c0_2 = arith.constant 0 : index
    %4 = vector.load %arg1[%c0_1, %c0_2] : memref<16x128xf32, #tpu.memory_space<vmem>>, vector<16x128xf32>
    %cst = arith.constant dense<0.000000e+00> : vector<16x128xf32>
    %5 = tpu.matmul %0, %4, %cst {dimension_numbers = #tpu.dot_dimension_numbers<[1], [0], [0], [1], [0, 0, 1, 1], [], []>} : vector<16x16xf32>, vector<16x128xf32>, vector<16x128xf32> -> vector<16x128xf32>
    %c4_i32 = arith.constant 4 : i32
    %6 = tpu.dynamic_rotate %5 by %c4_i32 dim 1 : vector<16x128xf32>, i32 -> vector<16x128xf32>
    %c4_i32_3 = arith.constant 4 : i32
    %7 = vector.broadcast %c4_i32_3 : i32 to vector<1x128xi32>
    %8 = arith.cmpi sge, %3, %7 : vector<1x128xi32>
    %cst_4 = arith.constant 0.000000e+00 : f32
    %9 = vector.shape_cast %8 : vector<1x128xi1> to vector<1x128xi1>
    %10 = vector.broadcast %9 : vector<1x128xi1> to vector<16x128xi1>
    %11 = vector.broadcast %cst_4 : f32 to vector<16x128xf32>
    %12 = arith.select %10, %6, %11 : vector<16x128xi1>, vector<16x128xf32>
    %13 = tpu.concatenate %5, %12 in 0 : vector<16x128xf32>, vector<16x128xf32> -> vector<32x128xf32>
    %c0_5 = arith.constant 0 : index
    %c0_6 = arith.constant 0 : index
    %14 = vector.load %arg2[%c0_5, %c0_6] : memref<32x32xf32, #tpu.memory_space<vmem>>, vector<32x32xf32>
    %cst_7 = arith.constant dense<0.000000e+00> : vector<32x128xf32>
    %15 = tpu.matmul %14, %13, %cst_7 {dimension_numbers = #tpu.dot_dimension_numbers<[1], [0], [0], [1], [0, 0, 1, 1], [], []>} : vector<32x32xf32>, vector<32x128xf32>, vector<32x128xf32> -> vector<32x128xf32>
    %c3_i32 = arith.constant 3 : i32
    %16 = vector.broadcast %c3_i32 : i32 to vector<1x128xi32>
    %17 = arith.andi %1, %16 : vector<1x128xi32>
    %c0_i32 = arith.constant 0 : i32
    %18 = vector.broadcast %c0_i32 : i32 to vector<1x128xi32>
    %19 = arith.cmpi eq, %17, %18 : vector<1x128xi32>
    %20 = vector.extract_strided_slice %15 {offsets = [0, 0], sizes = [8, 128], strides = [1, 1]} : vector<32x128xf32> to vector<8x128xf32>
    %cst_8 = arith.constant 0.000000e+00 : f32
    %21 = vector.shape_cast %19 : vector<1x128xi1> to vector<1x128xi1>
    %22 = vector.broadcast %21 : vector<1x128xi1> to vector<8x128xi1>
    %23 = vector.broadcast %cst_8 : f32 to vector<8x128xf32>
    %24 = arith.select %22, %20, %23 : vector<8x128xi1>, vector<8x128xf32>
    %c1_i32 = arith.constant 1 : i32
    %25 = vector.broadcast %c1_i32 : i32 to vector<1x128xi32>
    %26 = arith.cmpi eq, %17, %25 : vector<1x128xi32>
    %27 = vector.extract_strided_slice %15 {offsets = [8, 0], sizes = [8, 128], strides = [1, 1]} : vector<32x128xf32> to vector<8x128xf32>
    %cst_9 = arith.constant 0.000000e+00 : f32
    %28 = vector.shape_cast %26 : vector<1x128xi1> to vector<1x128xi1>
    %29 = vector.broadcast %28 : vector<1x128xi1> to vector<8x128xi1>
    %30 = vector.broadcast %cst_9 : f32 to vector<8x128xf32>
    %31 = arith.select %29, %27, %30 : vector<8x128xi1>, vector<8x128xf32>
    %32 = arith.addf %24, %31 : vector<8x128xf32>
    %c2_i32 = arith.constant 2 : i32
    %33 = vector.broadcast %c2_i32 : i32 to vector<1x128xi32>
    %34 = arith.cmpi eq, %17, %33 : vector<1x128xi32>
    %35 = vector.extract_strided_slice %15 {offsets = [16, 0], sizes = [8, 128], strides = [1, 1]} : vector<32x128xf32> to vector<8x128xf32>
    %cst_10 = arith.constant 0.000000e+00 : f32
    %36 = vector.shape_cast %34 : vector<1x128xi1> to vector<1x128xi1>
    %37 = vector.broadcast %36 : vector<1x128xi1> to vector<8x128xi1>
    %38 = vector.broadcast %cst_10 : f32 to vector<8x128xf32>
    %39 = arith.select %37, %35, %38 : vector<8x128xi1>, vector<8x128xf32>
    %40 = arith.addf %32, %39 : vector<8x128xf32>
    %c3_i32_11 = arith.constant 3 : i32
    %41 = vector.broadcast %c3_i32_11 : i32 to vector<1x128xi32>
    %42 = arith.cmpi eq, %17, %41 : vector<1x128xi32>
    %43 = vector.extract_strided_slice %15 {offsets = [24, 0], sizes = [8, 128], strides = [1, 1]} : vector<32x128xf32> to vector<8x128xf32>
    %cst_12 = arith.constant 0.000000e+00 : f32
    %44 = vector.shape_cast %42 : vector<1x128xi1> to vector<1x128xi1>
    %45 = vector.broadcast %44 : vector<1x128xi1> to vector<8x128xi1>
    %46 = vector.broadcast %cst_12 : f32 to vector<8x128xf32>
    %47 = arith.select %45, %43, %46 : vector<8x128xi1>, vector<8x128xf32>
    %48 = arith.addf %40, %47 : vector<8x128xf32>
    %c0_13 = arith.constant 0 : index
    %c0_14 = arith.constant 0 : index
    %49 = vector.load %arg3[%c0_13, %c0_14] : memref<8x1xf32, #tpu.memory_space<vmem>>, vector<8x1xf32>
    %50 = vector.broadcast %49 : vector<8x1xf32> to vector<8x128xf32>
    %51 = arith.addf %48, %50 : vector<8x128xf32>
    %cst_15 = arith.constant 0.000000e+00 : f32
    %52 = vector.broadcast %cst_15 : f32 to vector<8x128xf32>
    %53 = arith.cmpf ogt, %51, %52 : vector<8x128xf32>
    %cst_16 = arith.constant 1.000000e-01 : f32
    %54 = vector.broadcast %cst_16 : f32 to vector<8x128xf32>
    %55 = arith.mulf %54, %51 : vector<8x128xf32>
    %56 = arith.select %53, %51, %55 : vector<8x128xi1>, vector<8x128xf32>
    %c37_i32 = arith.constant 37 : i32
    %57 = vector.broadcast %c37_i32 : i32 to vector<1x128xi32>
    %58 = arith.cmpi slt, %3, %57 : vector<1x128xi32>
    %cst_17 = arith.constant 0.000000e+00 : f32
    %59 = vector.shape_cast %58 : vector<1x128xi1> to vector<1x128xi1>
    %60 = vector.broadcast %59 : vector<1x128xi1> to vector<8x128xi1>
    %61 = vector.broadcast %cst_17 : f32 to vector<8x128xf32>
    %62 = arith.select %60, %56, %61 : vector<8x128xi1>, vector<8x128xf32>
    %c1_i32_18 = arith.constant 1 : i32
    %63 = vector.broadcast %c1_i32_18 : i32 to vector<1x128xi32>
    %64 = arith.cmpi sge, %3, %63 : vector<1x128xi32>
    %c1_i32_19 = arith.constant 1 : i32
    %65 = tpu.dynamic_rotate %62 by %c1_i32_19 dim 1 : vector<8x128xf32>, i32 -> vector<8x128xf32>
    %cst_20 = arith.constant 0.000000e+00 : f32
    %66 = vector.shape_cast %64 : vector<1x128xi1> to vector<1x128xi1>
    %67 = vector.broadcast %66 : vector<1x128xi1> to vector<8x128xi1>
    %68 = vector.broadcast %cst_20 : f32 to vector<8x128xf32>
    %69 = arith.select %67, %65, %68 : vector<8x128xi1>, vector<8x128xf32>
    %c62_i32 = arith.constant 62 : i32
    %70 = vector.broadcast %c62_i32 : i32 to vector<1x128xi32>
    %71 = arith.cmpi sle, %3, %70 : vector<1x128xi32>
    %c127_i32 = arith.constant 127 : i32
    %72 = tpu.dynamic_rotate %62 by %c127_i32 dim 1 : vector<8x128xf32>, i32 -> vector<8x128xf32>
    %cst_21 = arith.constant 0.000000e+00 : f32
    %73 = vector.shape_cast %71 : vector<1x128xi1> to vector<1x128xi1>
    %74 = vector.broadcast %73 : vector<1x128xi1> to vector<8x128xi1>
    %75 = vector.broadcast %cst_21 : f32 to vector<8x128xf32>
    %76 = arith.select %74, %72, %75 : vector<8x128xi1>, vector<8x128xf32>
    %77 = tpu.concatenate %69, %62, %76 in 0 : vector<8x128xf32>, vector<8x128xf32>, vector<8x128xf32> -> vector<24x128xf32>
    %c0_22 = arith.constant 0 : index
    %c0_23 = arith.constant 0 : index
    %78 = vector.load %arg4[%c0_22, %c0_23] : memref<8x24xf32, #tpu.memory_space<vmem>>, vector<8x24xf32>
    %cst_24 = arith.constant dense<0.000000e+00> : vector<8x128xf32>
    %79 = tpu.matmul %78, %77, %cst_24 {dimension_numbers = #tpu.dot_dimension_numbers<[1], [0], [0], [1], [0, 0, 1, 1], [], []>} : vector<8x24xf32>, vector<24x128xf32>, vector<8x128xf32> -> vector<8x128xf32>
    %c0_25 = arith.constant 0 : index
    %c0_26 = arith.constant 0 : index
    %80 = vector.load %arg5[%c0_25, %c0_26] : memref<8x1xf32, #tpu.memory_space<vmem>>, vector<8x1xf32>
    %81 = vector.broadcast %80 : vector<8x1xf32> to vector<8x128xf32>
    %82 = arith.addf %79, %81 : vector<8x128xf32>
    %c0_27 = arith.constant 0 : index
    %c0_28 = arith.constant 0 : index
    %83 = vector.load %arg6[%c0_27, %c0_28] : memref<8x128xf32, #tpu.memory_space<vmem>>, vector<8x128xf32>
    %84 = arith.subf %83, %82 : vector<8x128xf32>
    %cst_29 = arith.constant 0.000000e+00 : f32
    %85 = vector.broadcast %cst_29 : f32 to vector<8x128xf32>
    %86 = arith.cmpf ogt, %84, %85 : vector<8x128xf32>
    %cst_30 = arith.constant 1.000000e-01 : f32
    %87 = vector.broadcast %cst_30 : f32 to vector<8x128xf32>
    %88 = arith.mulf %87, %84 : vector<8x128xf32>
    %89 = arith.select %86, %84, %88 : vector<8x128xi1>, vector<8x128xf32>
    %c0_31 = arith.constant 0 : index
    %c0_32 = arith.constant 0 : index
    %90 = vector.load %arg20[%c0_31, %c0_32] : memref<8x128xf32, #tpu.memory_space<vmem>>, vector<8x128xf32>
    tpu.vector_store %arg20[%c0_31, %c0_32], %89 {strides = array<i32>} : memref<8x128xf32, #tpu.memory_space<vmem>>, vector<8x128xf32>,
    %91 = tpu.iota {dimensions = array<i32: 1>} : vector<1x512xi32>
    %c255_i32 = arith.constant 255 : i32
    %92 = vector.broadcast %c255_i32 : i32 to vector<1x512xi32>
    %93 = arith.andi %91, %92 : vector<1x512xi32>
    %c0_33 = arith.constant 0 : index
    %c0_34 = arith.constant 0 : index
    %94 = vector.load %arg7[%c0_33, %c0_34] : memref<128x512xf32, #tpu.memory_space<vmem>>, vector<128x512xf32>
    %cst_35 = arith.constant dense<0.000000e+00> : vector<8x512xf32>
    %95 = tpu.matmul %89, %94, %cst_35 {dimension_numbers = #tpu.dot_dimension_numbers<[1], [0], [0], [1], [0, 0, 1, 1], [], []>} : vector<8x128xf32>, vector<128x512xf32>, vector<8x512xf32> -> vector<8x512xf32>
    %c4_i32_36 = arith.constant 4 : i32
    %96 = tpu.dynamic_rotate %95 by %c4_i32_36 dim 1 : vector<8x512xf32>, i32 -> vector<8x512xf32>
    %c4_i32_37 = arith.constant 4 : i32
    %97 = vector.broadcast %c4_i32_37 : i32 to vector<1x512xi32>
    %98 = arith.cmpi sge, %93, %97 : vector<1x512xi32>
    %cst_38 = arith.constant 0.000000e+00 : f32
    %99 = vector.shape_cast %98 : vector<1x512xi1> to vector<1x512xi1>
    %100 = vector.broadcast %99 : vector<1x512xi1> to vector<8x512xi1>
    %101 = vector.broadcast %cst_38 : f32 to vector<8x512xf32>
    %102 = arith.select %100, %96, %101 : vector<8x512xi1>, vector<8x512xf32>
    %103 = tpu.concatenate %95, %102 in 0 : vector<8x512xf32>, vector<8x512xf32> -> vector<16x512xf32>
    %c0_39 = arith.constant 0 : index
    %c0_40 = arith.constant 0 : index
    %104 = vector.load %arg8[%c0_39, %c0_40] : memref<32x16xf32, #tpu.memory_space<vmem>>, vector<32x16xf32>
    %cst_41 = arith.constant dense<0.000000e+00> : vector<32x512xf32>
    %105 = tpu.matmul %104, %103, %cst_41 {dimension_numbers = #tpu.dot_dimension_numbers<[1], [0], [0], [1], [0, 0, 1, 1], [], []>} : vector<32x16xf32>, vector<16x512xf32>, vector<32x512xf32> -> vector<32x512xf32>
    %c3_i32_42 = arith.constant 3 : i32
    %106 = vector.broadcast %c3_i32_42 : i32 to vector<1x512xi32>
    %107 = arith.andi %91, %106 : vector<1x512xi32>
    %c0_i32_43 = arith.constant 0 : i32
    %108 = vector.broadcast %c0_i32_43 : i32 to vector<1x512xi32>
    %109 = arith.cmpi eq, %107, %108 : vector<1x512xi32>
    %110 = vector.extract_strided_slice %105 {offsets = [0, 0], sizes = [8, 512], strides = [1, 1]} : vector<32x512xf32> to vector<8x512xf32>
    %cst_44 = arith.constant 0.000000e+00 : f32
    %111 = vector.shape_cast %109 : vector<1x512xi1> to vector<1x512xi1>
    %112 = vector.broadcast %111 : vector<1x512xi1> to vector<8x512xi1>
    %113 = vector.broadcast %cst_44 : f32 to vector<8x512xf32>
    %114 = arith.select %112, %110, %113 : vector<8x512xi1>, vector<8x512xf32>
    %c1_i32_45 = arith.constant 1 : i32
    %115 = vector.broadcast %c1_i32_45 : i32 to vector<1x512xi32>
    %116 = arith.cmpi eq, %107, %115 : vector<1x512xi32>
    %117 = vector.extract_strided_slice %105 {offsets = [8, 0], sizes = [8, 512], strides = [1, 1]} : vector<32x512xf32> to vector<8x512xf32>
    %cst_46 = arith.constant 0.000000e+00 : f32
    %118 = vector.shape_cast %116 : vector<1x512xi1> to vector<1x512xi1>
    %119 = vector.broadcast %118 : vector<1x512xi1> to vector<8x512xi1>
    %120 = vector.broadcast %cst_46 : f32 to vector<8x512xf32>
    %121 = arith.select %119, %117, %120 : vector<8x512xi1>, vector<8x512xf32>
    %122 = arith.addf %114, %121 : vector<8x512xf32>
    %c2_i32_47 = arith.constant 2 : i32
    %123 = vector.broadcast %c2_i32_47 : i32 to vector<1x512xi32>
    %124 = arith.cmpi eq, %107, %123 : vector<1x512xi32>
    %125 = vector.extract_strided_slice %105 {offsets = [16, 0], sizes = [8, 512], strides = [1, 1]} : vector<32x512xf32> to vector<8x512xf32>
    %cst_48 = arith.constant 0.000000e+00 : f32
    %126 = vector.shape_cast %124 : vector<1x512xi1> to vector<1x512xi1>
    %127 = vector.broadcast %126 : vector<1x512xi1> to vector<8x512xi1>
    %128 = vector.broadcast %cst_48 : f32 to vector<8x512xf32>
    %129 = arith.select %127, %125, %128 : vector<8x512xi1>, vector<8x512xf32>
    %130 = arith.addf %122, %129 : vector<8x512xf32>
    %c3_i32_49 = arith.constant 3 : i32
    %131 = vector.broadcast %c3_i32_49 : i32 to vector<1x512xi32>
    %132 = arith.cmpi eq, %107, %131 : vector<1x512xi32>
    %133 = vector.extract_strided_slice %105 {offsets = [24, 0], sizes = [8, 512], strides = [1, 1]} : vector<32x512xf32> to vector<8x512xf32>
    %cst_50 = arith.constant 0.000000e+00 : f32
    %134 = vector.shape_cast %132 : vector<1x512xi1> to vector<1x512xi1>
    %135 = vector.broadcast %134 : vector<1x512xi1> to vector<8x512xi1>
    %136 = vector.broadcast %cst_50 : f32 to vector<8x512xf32>
    %137 = arith.select %135, %133, %136 : vector<8x512xi1>, vector<8x512xf32>
    %138 = arith.addf %130, %137 : vector<8x512xf32>
    %c0_51 = arith.constant 0 : index
    %c0_52 = arith.constant 0 : index
    %139 = vector.load %arg9[%c0_51, %c0_52] : memref<8x1xf32, #tpu.memory_space<vmem>>, vector<8x1xf32>
    %140 = vector.broadcast %139 : vector<8x1xf32> to vector<8x512xf32>
    %141 = arith.addf %138, %140 : vector<8x512xf32>
    %cst_53 = arith.constant 0.000000e+00 : f32
    %142 = vector.broadcast %cst_53 : f32 to vector<8x512xf32>
    %143 = arith.cmpf ogt, %141, %142 : vector<8x512xf32>
    %cst_54 = arith.constant 1.000000e-01 : f32
    %144 = vector.broadcast %cst_54 : f32 to vector<8x512xf32>
    %145 = arith.mulf %144, %141 : vector<8x512xf32>
    %146 = arith.select %143, %141, %145 : vector<8x512xi1>, vector<8x512xf32>
    %c133_i32 = arith.constant 133 : i32
    %147 = vector.broadcast %c133_i32 : i32 to vector<1x512xi32>
    %148 = arith.cmpi slt, %93, %147 : vector<1x512xi32>
    %cst_55 = arith.constant 0.000000e+00 : f32
    %149 = vector.shape_cast %148 : vector<1x512xi1> to vector<1x512xi1>
    %150 = vector.broadcast %149 : vector<1x512xi1> to vector<8x512xi1>
    %151 = vector.broadcast %cst_55 : f32 to vector<8x512xf32>
    %152 = arith.select %150, %146, %151 : vector<8x512xi1>, vector<8x512xf32>
    %c1_i32_56 = arith.constant 1 : i32
    %153 = vector.broadcast %c1_i32_56 : i32 to vector<1x512xi32>
    %154 = arith.cmpi sge, %93, %153 : vector<1x512xi32>
    %c1_i32_57 = arith.constant 1 : i32
    %155 = tpu.dynamic_rotate %152 by %c1_i32_57 dim 1 : vector<8x512xf32>, i32 -> vector<8x512xf32>
    %cst_58 = arith.constant 0.000000e+00 : f32
    %156 = vector.shape_cast %154 : vector<1x512xi1> to vector<1x512xi1>
    %157 = vector.broadcast %156 : vector<1x512xi1> to vector<8x512xi1>
    %158 = vector.broadcast %cst_58 : f32 to vector<8x512xf32>
    %159 = arith.select %157, %155, %158 : vector<8x512xi1>, vector<8x512xf32>
    %c254_i32 = arith.constant 254 : i32
    %160 = vector.broadcast %c254_i32 : i32 to vector<1x512xi32>
    %161 = arith.cmpi sle, %93, %160 : vector<1x512xi32>
    %c511_i32 = arith.constant 511 : i32
    %162 = tpu.dynamic_rotate %152 by %c511_i32 dim 1 : vector<8x512xf32>, i32 -> vector<8x512xf32>
    %cst_59 = arith.constant 0.000000e+00 : f32
    %163 = vector.shape_cast %161 : vector<1x512xi1> to vector<1x512xi1>
    %164 = vector.broadcast %163 : vector<1x512xi1> to vector<8x512xi1>
    %165 = vector.broadcast %cst_59 : f32 to vector<8x512xf32>
    %166 = arith.select %164, %162, %165 : vector<8x512xi1>, vector<8x512xf32>
    %167 = tpu.concatenate %159, %152, %166 in 0 : vector<8x512xf32>, vector<8x512xf32>, vector<8x512xf32> -> vector<24x512xf32>
    %c0_60 = arith.constant 0 : index
    %c0_61 = arith.constant 0 : index
    %168 = vector.load %arg10[%c0_60, %c0_61] : memref<8x24xf32, #tpu.memory_space<vmem>>, vector<8x24xf32>
    %cst_62 = arith.constant dense<0.000000e+00> : vector<8x512xf32>
    %169 = tpu.matmul %168, %167, %cst_62 {dimension_numbers = #tpu.dot_dimension_numbers<[1], [0], [0], [1], [0, 0, 1, 1], [], []>} : vector<8x24xf32>, vector<24x512xf32>, vector<8x512xf32> -> vector<8x512xf32>
    %c0_63 = arith.constant 0 : index
    %c0_64 = arith.constant 0 : index
    %170 = vector.load %arg11[%c0_63, %c0_64] : memref<8x1xf32, #tpu.memory_space<vmem>>, vector<8x1xf32>
    %171 = vector.broadcast %170 : vector<8x1xf32> to vector<8x512xf32>
    %172 = arith.addf %169, %171 : vector<8x512xf32>
    %c0_65 = arith.constant 0 : index
    %c0_66 = arith.constant 0 : index
    %173 = vector.load %arg12[%c0_65, %c0_66] : memref<8x512xf32, #tpu.memory_space<vmem>>, vector<8x512xf32>
    %174 = arith.subf %173, %172 : vector<8x512xf32>
    %cst_67 = arith.constant 0.000000e+00 : f32
    %175 = vector.broadcast %cst_67 : f32 to vector<8x512xf32>
    %176 = arith.cmpf ogt, %174, %175 : vector<8x512xf32>
    %cst_68 = arith.constant 1.000000e-01 : f32
    %177 = vector.broadcast %cst_68 : f32 to vector<8x512xf32>
    %178 = arith.mulf %177, %174 : vector<8x512xf32>
    %179 = arith.select %176, %174, %178 : vector<8x512xi1>, vector<8x512xf32>
    %c0_69 = arith.constant 0 : index
    %c0_70 = arith.constant 0 : index
    %180 = vector.load %arg21[%c0_69, %c0_70] : memref<8x512xf32, #tpu.memory_space<vmem>>, vector<8x512xf32>
    tpu.vector_store %arg21[%c0_69, %c0_70], %179 {strides = array<i32>} : memref<8x512xf32, #tpu.memory_space<vmem>>, vector<8x512xf32>,
    %181 = tpu.iota {dimensions = array<i32: 1>} : vector<1x1024xi32>
    %c511_i32_71 = arith.constant 511 : i32
    %182 = vector.broadcast %c511_i32_71 : i32 to vector<1x1024xi32>
    %183 = arith.andi %181, %182 : vector<1x1024xi32>
    %c0_72 = arith.constant 0 : index
    %c0_73 = arith.constant 0 : index
    %184 = vector.load %arg13[%c0_72, %c0_73] : memref<512x1024xf32, #tpu.memory_space<vmem>>, vector<512x1024xf32>
    %cst_74 = arith.constant dense<0.000000e+00> : vector<8x1024xf32>
    %185 = tpu.matmul %179, %184, %cst_74 {dimension_numbers = #tpu.dot_dimension_numbers<[1], [0], [0], [1], [0, 0, 1, 1], [], []>} : vector<8x512xf32>, vector<512x1024xf32>, vector<8x1024xf32> -> vector<8x1024xf32>
    %c4_i32_75 = arith.constant 4 : i32
    %186 = tpu.dynamic_rotate %185 by %c4_i32_75 dim 1 : vector<8x1024xf32>, i32 -> vector<8x1024xf32>
    %c4_i32_76 = arith.constant 4 : i32
    %187 = vector.broadcast %c4_i32_76 : i32 to vector<1x1024xi32>
    %188 = arith.cmpi sge, %183, %187 : vector<1x1024xi32>
    %cst_77 = arith.constant 0.000000e+00 : f32
    %189 = vector.shape_cast %188 : vector<1x1024xi1> to vector<1x1024xi1>
    %190 = vector.broadcast %189 : vector<1x1024xi1> to vector<8x1024xi1>
    %191 = vector.broadcast %cst_77 : f32 to vector<8x1024xf32>
    %192 = arith.select %190, %186, %191 : vector<8x1024xi1>, vector<8x1024xf32>
    %193 = tpu.concatenate %185, %192 in 0 : vector<8x1024xf32>, vector<8x1024xf32> -> vector<16x1024xf32>
    %c0_78 = arith.constant 0 : index
    %c0_79 = arith.constant 0 : index
    %194 = vector.load %arg14[%c0_78, %c0_79] : memref<32x16xf32, #tpu.memory_space<vmem>>, vector<32x16xf32>
    %cst_80 = arith.constant dense<0.000000e+00> : vector<32x1024xf32>
    %195 = tpu.matmul %194, %193, %cst_80 {dimension_numbers = #tpu.dot_dimension_numbers<[1], [0], [0], [1], [0, 0, 1, 1], [], []>} : vector<32x16xf32>, vector<16x1024xf32>, vector<32x1024xf32> -> vector<32x1024xf32>
    %c3_i32_81 = arith.constant 3 : i32
    %196 = vector.broadcast %c3_i32_81 : i32 to vector<1x1024xi32>
    %197 = arith.andi %181, %196 : vector<1x1024xi32>
    %c0_i32_82 = arith.constant 0 : i32
    %198 = vector.broadcast %c0_i32_82 : i32 to vector<1x1024xi32>
    %199 = arith.cmpi eq, %197, %198 : vector<1x1024xi32>
    %200 = vector.extract_strided_slice %195 {offsets = [0, 0], sizes = [8, 1024], strides = [1, 1]} : vector<32x1024xf32> to vector<8x1024xf32>
    %cst_83 = arith.constant 0.000000e+00 : f32
    %201 = vector.shape_cast %199 : vector<1x1024xi1> to vector<1x1024xi1>
    %202 = vector.broadcast %201 : vector<1x1024xi1> to vector<8x1024xi1>
    %203 = vector.broadcast %cst_83 : f32 to vector<8x1024xf32>
    %204 = arith.select %202, %200, %203 : vector<8x1024xi1>, vector<8x1024xf32>
    %c1_i32_84 = arith.constant 1 : i32
    %205 = vector.broadcast %c1_i32_84 : i32 to vector<1x1024xi32>
    %206 = arith.cmpi eq, %197, %205 : vector<1x1024xi32>
    %207 = vector.extract_strided_slice %195 {offsets = [8, 0], sizes = [8, 1024], strides = [1, 1]} : vector<32x1024xf32> to vector<8x1024xf32>
    %cst_85 = arith.constant 0.000000e+00 : f32
    %208 = vector.shape_cast %206 : vector<1x1024xi1> to vector<1x1024xi1>
    %209 = vector.broadcast %208 : vector<1x1024xi1> to vector<8x1024xi1>
    %210 = vector.broadcast %cst_85 : f32 to vector<8x1024xf32>
    %211 = arith.select %209, %207, %210 : vector<8x1024xi1>, vector<8x1024xf32>
    %212 = arith.addf %204, %211 : vector<8x1024xf32>
    %c2_i32_86 = arith.constant 2 : i32
    %213 = vector.broadcast %c2_i32_86 : i32 to vector<1x1024xi32>
    %214 = arith.cmpi eq, %197, %213 : vector<1x1024xi32>
    %215 = vector.extract_strided_slice %195 {offsets = [16, 0], sizes = [8, 1024], strides = [1, 1]} : vector<32x1024xf32> to vector<8x1024xf32>
    %cst_87 = arith.constant 0.000000e+00 : f32
    %216 = vector.shape_cast %214 : vector<1x1024xi1> to vector<1x1024xi1>
    %217 = vector.broadcast %216 : vector<1x1024xi1> to vector<8x1024xi1>
    %218 = vector.broadcast %cst_87 : f32 to vector<8x1024xf32>
    %219 = arith.select %217, %215, %218 : vector<8x1024xi1>, vector<8x1024xf32>
    %220 = arith.addf %212, %219 : vector<8x1024xf32>
    %c3_i32_88 = arith.constant 3 : i32
    %221 = vector.broadcast %c3_i32_88 : i32 to vector<1x1024xi32>
    %222 = arith.cmpi eq, %197, %221 : vector<1x1024xi32>
    %223 = vector.extract_strided_slice %195 {offsets = [24, 0], sizes = [8, 1024], strides = [1, 1]} : vector<32x1024xf32> to vector<8x1024xf32>
    %cst_89 = arith.constant 0.000000e+00 : f32
    %224 = vector.shape_cast %222 : vector<1x1024xi1> to vector<1x1024xi1>
    %225 = vector.broadcast %224 : vector<1x1024xi1> to vector<8x1024xi1>
    %226 = vector.broadcast %cst_89 : f32 to vector<8x1024xf32>
    %227 = arith.select %225, %223, %226 : vector<8x1024xi1>, vector<8x1024xf32>
    %228 = arith.addf %220, %227 : vector<8x1024xf32>
    %c0_90 = arith.constant 0 : index
    %c0_91 = arith.constant 0 : index
    %229 = vector.load %arg15[%c0_90, %c0_91] : memref<8x1xf32, #tpu.memory_space<vmem>>, vector<8x1xf32>
    %230 = vector.broadcast %229 : vector<8x1xf32> to vector<8x1024xf32>
    %231 = arith.addf %228, %230 : vector<8x1024xf32>
    %cst_92 = arith.constant 0.000000e+00 : f32
    %232 = vector.broadcast %cst_92 : f32 to vector<8x1024xf32>
    %233 = arith.cmpf ogt, %231, %232 : vector<8x1024xf32>
    %cst_93 = arith.constant 1.000000e-01 : f32
    %234 = vector.broadcast %cst_93 : f32 to vector<8x1024xf32>
    %235 = arith.mulf %234, %231 : vector<8x1024xf32>
    %236 = arith.select %233, %231, %235 : vector<8x1024xi1>, vector<8x1024xf32>
    %c0_94 = arith.constant 0 : index
    %c0_95 = arith.constant 0 : index
    %c0_96 = arith.constant 0 : index
    %237 = vector.load %arg16[%c0_94, %c0_95, %c0_96] : memref<5x8x1xf32, #tpu.memory_space<vmem>>, vector<5x8x1xf32>
    %238 = vector.extract_strided_slice %237 {offsets = [2, 0, 0], sizes = [1, 8, 1], strides = [1, 1, 1]} : vector<5x8x1xf32> to vector<1x8x1xf32>
    %239 = vector.shape_cast %238 : vector<1x8x1xf32> to vector<8x1xf32>
    %240 = vector.broadcast %239 : vector<8x1xf32> to vector<8x1024xf32>
    %241 = arith.mulf %240, %236 : vector<8x1024xf32>
    %c2_i32_97 = arith.constant 2 : i32
    %242 = tpu.dynamic_rotate %236 by %c2_i32_97 dim 1 : vector<8x1024xf32>, i32 -> vector<8x1024xf32>
    %c2_i32_98 = arith.constant 2 : i32
    %243 = vector.broadcast %c2_i32_98 : i32 to vector<1x1024xi32>
    %244 = arith.cmpi sge, %183, %243 : vector<1x1024xi32>
    %cst_99 = arith.constant 0.000000e+00 : f32
    %245 = vector.shape_cast %244 : vector<1x1024xi1> to vector<1x1024xi1>
    %246 = vector.broadcast %245 : vector<1x1024xi1> to vector<8x1024xi1>
    %247 = vector.broadcast %cst_99 : f32 to vector<8x1024xf32>
    %248 = arith.select %246, %242, %247 : vector<8x1024xi1>, vector<8x1024xf32>
    %249 = vector.extract_strided_slice %237 {offsets = [0, 0, 0], sizes = [1, 8, 1], strides = [1, 1, 1]} : vector<5x8x1xf32> to vector<1x8x1xf32>
    %250 = vector.shape_cast %249 : vector<1x8x1xf32> to vector<8x1xf32>
    %251 = vector.broadcast %250 : vector<8x1xf32> to vector<8x1024xf32>
    %252 = arith.mulf %251, %248 : vector<8x1024xf32>
    %253 = arith.addf %241, %252 : vector<8x1024xf32>
    %c1_i32_100 = arith.constant 1 : i32
    %254 = tpu.dynamic_rotate %236 by %c1_i32_100 dim 1 : vector<8x1024xf32>, i32 -> vector<8x1024xf32>
    %c1_i32_101 = arith.constant 1 : i32
    %255 = vector.broadcast %c1_i32_101 : i32 to vector<1x1024xi32>
    %256 = arith.cmpi sge, %183, %255 : vector<1x1024xi32>
    %cst_102 = arith.constant 0.000000e+00 : f32
    %257 = vector.shape_cast %256 : vector<1x1024xi1> to vector<1x1024xi1>
    %258 = vector.broadcast %257 : vector<1x1024xi1> to vector<8x1024xi1>
    %259 = vector.broadcast %cst_102 : f32 to vector<8x1024xf32>
    %260 = arith.select %258, %254, %259 : vector<8x1024xi1>, vector<8x1024xf32>
    %261 = vector.extract_strided_slice %237 {offsets = [1, 0, 0], sizes = [1, 8, 1], strides = [1, 1, 1]} : vector<5x8x1xf32> to vector<1x8x1xf32>
    %262 = vector.shape_cast %261 : vector<1x8x1xf32> to vector<8x1xf32>
    %263 = vector.broadcast %262 : vector<8x1xf32> to vector<8x1024xf32>
    %264 = arith.mulf %263, %260 : vector<8x1024xf32>
    %265 = arith.addf %253, %264 : vector<8x1024xf32>
    %c1023_i32 = arith.constant 1023 : i32
    %266 = tpu.dynamic_rotate %236 by %c1023_i32 dim 1 : vector<8x1024xf32>, i32 -> vector<8x1024xf32>
    %c510_i32 = arith.constant 510 : i32
    %267 = vector.broadcast %c510_i32 : i32 to vector<1x1024xi32>
    %268 = arith.cmpi sle, %183, %267 : vector<1x1024xi32>
    %cst_103 = arith.constant 0.000000e+00 : f32
    %269 = vector.shape_cast %268 : vector<1x1024xi1> to vector<1x1024xi1>
    %270 = vector.broadcast %269 : vector<1x1024xi1> to vector<8x1024xi1>
    %271 = vector.broadcast %cst_103 : f32 to vector<8x1024xf32>
    %272 = arith.select %270, %266, %271 : vector<8x1024xi1>, vector<8x1024xf32>
    %273 = vector.extract_strided_slice %237 {offsets = [3, 0, 0], sizes = [1, 8, 1], strides = [1, 1, 1]} : vector<5x8x1xf32> to vector<1x8x1xf32>
    %274 = vector.shape_cast %273 : vector<1x8x1xf32> to vector<8x1xf32>
    %275 = vector.broadcast %274 : vector<8x1xf32> to vector<8x1024xf32>
    %276 = arith.mulf %275, %272 : vector<8x1024xf32>
    %277 = arith.addf %265, %276 : vector<8x1024xf32>
    %c1022_i32 = arith.constant 1022 : i32
    %278 = tpu.dynamic_rotate %236 by %c1022_i32 dim 1 : vector<8x1024xf32>, i32 -> vector<8x1024xf32>
    %c509_i32 = arith.constant 509 : i32
    %279 = vector.broadcast %c509_i32 : i32 to vector<1x1024xi32>
    %280 = arith.cmpi sle, %183, %279 : vector<1x1024xi32>
    %cst_104 = arith.constant 0.000000e+00 : f32
    %281 = vector.shape_cast %280 : vector<1x1024xi1> to vector<1x1024xi1>
    %282 = vector.broadcast %281 : vector<1x1024xi1> to vector<8x1024xi1>
    %283 = vector.broadcast %cst_104 : f32 to vector<8x1024xf32>
    %284 = arith.select %282, %278, %283 : vector<8x1024xi1>, vector<8x1024xf32>
    %285 = vector.extract_strided_slice %237 {offsets = [4, 0, 0], sizes = [1, 8, 1], strides = [1, 1, 1]} : vector<5x8x1xf32> to vector<1x8x1xf32>
    %286 = vector.shape_cast %285 : vector<1x8x1xf32> to vector<8x1xf32>
    %287 = vector.broadcast %286 : vector<8x1xf32> to vector<8x1024xf32>
    %288 = arith.mulf %287, %284 : vector<8x1024xf32>
    %289 = arith.addf %277, %288 : vector<8x1024xf32>
    %c0_105 = arith.constant 0 : index
    %c0_106 = arith.constant 0 : index
    %290 = vector.load %arg17[%c0_105, %c0_106] : memref<8x1xf32, #tpu.memory_space<vmem>>, vector<8x1xf32>
    %291 = vector.broadcast %290 : vector<8x1xf32> to vector<8x1024xf32>
    %292 = arith.addf %289, %291 : vector<8x1024xf32>
    %c0_107 = arith.constant 0 : index
    %c0_108 = arith.constant 0 : index
    %293 = vector.load %arg18[%c0_107, %c0_108] : memref<8x1xf32, #tpu.memory_space<vmem>>, vector<8x1xf32>
    %294 = math.tanh %292 : vector<8x1024xf32>
    %295 = vector.broadcast %293 : vector<8x1xf32> to vector<8x1024xf32>
    %296 = arith.mulf %295, %294 : vector<8x1024xf32>
    %c0_109 = arith.constant 0 : index
    %c0_110 = arith.constant 0 : index
    %297 = vector.load %arg19[%c0_109, %c0_110] : memref<8x1xf32, #tpu.memory_space<vmem>>, vector<8x1xf32>
    %298 = vector.broadcast %297 : vector<8x1xf32> to vector<8x1024xf32>
    %299 = arith.addf %296, %298 : vector<8x1024xf32>
    %c0_111 = arith.constant 0 : index
    %c0_112 = arith.constant 0 : index
    %300 = vector.load %arg22[%c0_111, %c0_112] : memref<8x1024xf32, #tpu.memory_space<vmem>>, vector<8x1024xf32>
    tpu.vector_store %arg22[%c0_111, %c0_112], %299 {strides = array<i32>} : memref<8x1024xf32, #tpu.memory_space<vmem>>, vector<8x1024xf32>,
    return
  }
}

</mosaic_0001>

<llo_original>
// kernel: tpu_custom_call.1
$region0: #{tpu_custom_call.1}
  #allocation0 [shape = 'u32[]', space=smem, size = 0x4, offset = 0x4, fixed_abs, tag = 'smem constant byte address 0x4 - core index']
  #allocation1 [shape = 'u32[144,128]{1,0:T(1,128)}', space=vmem, size = 0x12000, scoped, tag = 'internal scratch']
  %s0 = inlined_call_operand.hbm [shape: f32[16,16], index: 0, kind: input, shape index: {}]
  %s1 = inlined_call_operand.hbm [shape: f32[16,128], index: 1, kind: input, shape index: {}]
  %s2 = inlined_call_operand.hbm [shape: f32[32,32], index: 2, kind: input, shape index: {}]
  %s3 = inlined_call_operand.vmem [shape: f32[8,1], index: 3, kind: input, shape index: {}]
  %s4 = inlined_call_operand.hbm [shape: f32[8,24], index: 4, kind: input, shape index: {}]
  %s5 = inlined_call_operand.vmem [shape: f32[8,1], index: 5, kind: input, shape index: {}]
  %s6 = inlined_call_operand.hbm [shape: f32[8,128], index: 6, kind: input, shape index: {}]
  %s7 = inlined_call_operand.hbm [shape: f32[128,512], index: 7, kind: input, shape index: {}]
  %s8 = inlined_call_operand.vmem [shape: f32[32,16], index: 8, kind: input, shape index: {}]
  %s9 = inlined_call_operand.vmem [shape: f32[8,1], index: 9, kind: input, shape index: {}]
  %s10 = inlined_call_operand.hbm [shape: f32[8,24], index: 10, kind: input, shape index: {}]
  %s11 = inlined_call_operand.vmem [shape: f32[8,1], index: 11, kind: input, shape index: {}]
  %s12 = inlined_call_operand.hbm [shape: f32[8,512], index: 12, kind: input, shape index: {}]
  %s13 = inlined_call_operand.hbm [shape: f32[512,1024], index: 13, kind: input, shape index: {}]
  %s14 = inlined_call_operand.vmem [shape: f32[32,16], index: 14, kind: input, shape index: {}]
  %s15 = inlined_call_operand.vmem [shape: f32[8,1], index: 15, kind: input, shape index: {}]
  %s16 = inlined_call_operand.vmem [shape: f32[5,8,1], index: 16, kind: input, shape index: {}]
  %s17 = inlined_call_operand.vmem [shape: f32[8,1], index: 17, kind: input, shape index: {}]
  %s18 = inlined_call_operand.vmem [shape: f32[8,1], index: 18, kind: input, shape index: {}]
  %s19 = inlined_call_operand.vmem [shape: f32[8,1], index: 19, kind: input, shape index: {}]
  %s20 = inlined_call_operand.hbm [shape: f32[8,128], index: 20, kind: output, shape index: {0}]
  %s21 = inlined_call_operand.hbm [shape: f32[8,512], index: 21, kind: output, shape index: {1}]
  %s22 = inlined_call_operand.hbm [shape: f32[8,1024], index: 22, kind: output, shape index: {2}]
  %23 = xla_tuple %s20, %s21, %s22
  %s24 = sld [smem:[#allocation0]]
  $region142: #{tpu_custom_call.1} parent=0
    _
  %s26 = ssub.s32 1, %s24
  %s27 = scalar_select 0, %s26, %s24
  $region1: #{tpu_custom_call.1} parent=0
    #allocation2 [shape = 'u8[8192]{0}', space=vmem, size = 0x2000, scoped, tag = 'input window, operand 0, single buffered']
    #allocation3 [shape = 's32[1]{0}', space=sflag, size = 0x4, scoped, tag = 'scoped memory for tpu_custom_call.1']
    #allocation4 [shape = 's32[1]{0}', space=sflag, size = 0x4, scoped, tag = 'scoped memory for tpu_custom_call.1']
    #allocation5 [shape = 'u8[8192]{0}', space=vmem, size = 0x2000, scoped, tag = 'input window, operand 1, single buffered']
    #allocation6 [shape = 's32[1]{0}', space=sflag, size = 0x4, scoped, tag = 'scoped memory for tpu_custom_call.1']
    #allocation7 [shape = 'u8[16384]{0}', space=vmem, size = 0x4000, scoped, tag = 'input window, operand 2, single buffered']
    #allocation8 [shape = 'u8[4096]{0}', space=vmem, size = 0x1000, scoped, tag = 'input window, operand 4, single buffered']
    #allocation9 [shape = 's32[1]{0}', space=sflag, size = 0x4, scoped, tag = 'scoped memory for tpu_custom_call.1']
    #allocation10 [shape = 'u8[4096]{0}', space=vmem, size = 0x1000, scoped, tag = 'input window, operand 6, single buffered']
    #allocation11 [shape = 'u8[262144]{0}', space=vmem, size = 0x40000, scoped, tag = 'input window, operand 7, single buffered']
    #allocation12 [shape = 's32[1]{0}', space=sflag, size = 0x4, scoped, tag = 'scoped memory for tpu_custom_call.1']
    #allocation13 [shape = 'u8[4096]{0}', space=vmem, size = 0x1000, scoped, tag = 'input window, operand 10, single buffered']
    #allocation14 [shape = 'u8[16384]{0}', space=vmem, size = 0x4000, scoped, tag = 'input window, operand 12, single buffered']
    #allocation15 [shape = 's32[1]{0}', space=sflag, size = 0x4, scoped, tag = 'scoped memory for tpu_custom_call.1']
    #allocation16 [shape = 'u8[2097152]{0}', space=vmem, size = 0x200000, scoped, tag = 'input window, operand 13, single buffered']
    #allocation17 [shape = 'u8[4096]{0}', space=vmem, size = 0x1000, scoped, tag = 'output window, operand 0, single buffered']
    #allocation18 [shape = 'u8[16384]{0}', space=vmem, size = 0x4000, scoped, tag = 'output window, operand 1, single buffered']
    #allocation19 [shape = 's32[1]{0}', space=sflag, size = 0x4, scoped, tag = 'scoped memory for tpu_custom_call.1']
    #allocation20 [shape = 'u8[32768]{0}', space=vmem, size = 0x8000, scoped, tag = 'output window, operand 2, single buffered']
    %28 = vsyncpa [#allocation3], 0
    %29 = vsyncpa [#allocation6], 0
    %30 = vsyncpa [#allocation9], 0
    %31 = vsyncpa [#allocation12], 0
    %32 = vsyncpa [#allocation15], 0
    %33 = vsyncpa [#allocation4], 0
    %34 = vsyncpa [#allocation19], 0
    // Predicated region
    $region2: #{tpu_custom_call.1} parent=1 // pred_check
      _
    $region3: #{tpu_custom_call.1} parent=1 // pred_check_branch
      %36 = sbr.rel (0) target = $region5
    $region4: #{tpu_custom_call.1} parent=1 // pred_region
      %s38 = ssub.s32 256, 256
      %39 = vsyncadd [#allocation3], %s38
      %s40 = sshll.u32 [#allocation2], 4
      %s41 = int_to_ptr.vmem [resolvable:$true] %s40
      %46 = dma.hbm_to_vmem [thread:$0]  %s0, 256, %s41, [#allocation3], 128, 128, 8
    $region5: #{tpu_custom_call.1} parent=1 // pred_fallthru
      _
    // Predicated region
    $region6: #{tpu_custom_call.1} parent=1 // pred_check
      _
    $region7: #{tpu_custom_call.1} parent=1 // pred_check_branch
      %48 = sbr.rel (0) target = $region9
    $region8: #{tpu_custom_call.1} parent=1 // pred_region
      %s50 = ssub.s32 256, 256
      %51 = vsyncadd [#allocation6], %s50
      %s52 = sshll.u32 [#allocation5], 4
      %s53 = int_to_ptr.vmem [resolvable:$true] %s52
      %58 = dma.hbm_to_vmem [thread:$0]  %s1, 256, %s53, [#allocation6], 128, 128, 8
    $region9: #{tpu_custom_call.1} parent=1 // pred_fallthru
      _
    // Predicated region
    $region10: #{tpu_custom_call.1} parent=1 // pred_check
      _
    $region11: #{tpu_custom_call.1} parent=1 // pred_check_branch
      %60 = sbr.rel (0) target = $region13
    $region12: #{tpu_custom_call.1} parent=1 // pred_region
      %s62 = ssub.s32 512, 512
      %63 = vsyncadd [#allocation6], %s62
      %s64 = sshll.u32 [#allocation7], 4
      %s65 = int_to_ptr.vmem [resolvable:$true] %s64
      %70 = dma.hbm_to_vmem [thread:$0]  %s2, 512, %s65, [#allocation6], 128, 128, 8
    $region13: #{tpu_custom_call.1} parent=1 // pred_fallthru
      _
    // Predicated region
    $region14: #{tpu_custom_call.1} parent=1 // pred_check
      _
    $region15: #{tpu_custom_call.1} parent=1 // pred_check_branch
      %72 = sbr.rel (0) target = $region17
    $region16: #{tpu_custom_call.1} parent=1 // pred_region
      _
    $region17: #{tpu_custom_call.1} parent=1 // pred_fallthru
      _
    // Predicated region
    $region18: #{tpu_custom_call.1} parent=1 // pred_check
      _
    $region19: #{tpu_custom_call.1} parent=1 // pred_check_branch
      %74 = sbr.rel (0) target = $region21
    $region20: #{tpu_custom_call.1} parent=1 // pred_region
      %s76 = ssub.s32 128, 128
      %77 = vsyncadd [#allocation9], %s76
      %s79 = sshll.u32 [#allocation8], 4
      %s80 = int_to_ptr.vmem [resolvable:$true] %s79
      %82 = dma.hbm_to_vmem [thread:$0]  %s4, 128, %s80, [#allocation9]
    $region21: #{tpu_custom_call.1} parent=1 // pred_fallthru
      _
    // Predicated region
    $region22: #{tpu_custom_call.1} parent=1 // pred_check
      _
    $region23: #{tpu_custom_call.1} parent=1 // pred_check_branch
      %84 = sbr.rel (0) target = $region25
    $region24: #{tpu_custom_call.1} parent=1 // pred_region
      _
    $region25: #{tpu_custom_call.1} parent=1 // pred_fallthru
      _
    // Predicated region
    $region26: #{tpu_custom_call.1} parent=1 // pred_check
      _
    $region27: #{tpu_custom_call.1} parent=1 // pred_check_branch
      %86 = sbr.rel (0) target = $region29
    $region28: #{tpu_custom_call.1} parent=1 // pred_region
      %s88 = ssub.s32 128, 128
      %89 = vsyncadd [#allocation9], %s88
      %s91 = sshll.u32 [#allocation10], 4
      %s92 = int_to_ptr.vmem [resolvable:$true] %s91
      %94 = dma.hbm_to_vmem [thread:$0]  %s6, 128, %s92, [#allocation9]
    $region29: #{tpu_custom_call.1} parent=1 // pred_fallthru
      _
    // Predicated region
    $region30: #{tpu_custom_call.1} parent=1 // pred_check
      _
    $region31: #{tpu_custom_call.1} parent=1 // pred_check_branch
      %96 = sbr.rel (0) target = $region33
    $region32: #{tpu_custom_call.1} parent=1 // pred_region
      %s98 = ssub.s32 8192, 8192
      %99 = vsyncadd [#allocation12], %s98
      %s100 = sshll.u32 [#allocation11], 4
      %s101 = int_to_ptr.vmem [resolvable:$true] %s100
      %106 = dma.hbm_to_vmem [thread:$0]  %s7, 8192, %s101, [#allocation12], 512, 512, 32
    $region33: #{tpu_custom_call.1} parent=1 // pred_fallthru
      _
    // Predicated region
    $region34: #{tpu_custom_call.1} parent=1 // pred_check
      _
    $region35: #{tpu_custom_call.1} parent=1 // pred_check_branch
      %108 = sbr.rel (0) target = $region37
    $region36: #{tpu_custom_call.1} parent=1 // pred_region
      _
    $region37: #{tpu_custom_call.1} parent=1 // pred_fallthru
      _
    // Predicated region
    $region38: #{tpu_custom_call.1} parent=1 // pred_check
      _
    $region39: #{tpu_custom_call.1} parent=1 // pred_check_branch
      %110 = sbr.rel (0) target = $region41
    $region40: #{tpu_custom_call.1} parent=1 // pred_region
      _
    $region41: #{tpu_custom_call.1} parent=1 // pred_fallthru
      _
    // Predicated region
    $region42: #{tpu_custom_call.1} parent=1 // pred_check
      _
    $region43: #{tpu_custom_call.1} parent=1 // pred_check_branch
      %112 = sbr.rel (0) target = $region45
    $region44: #{tpu_custom_call.1} parent=1 // pred_region
      %s114 = ssub.s32 128, 128
      %115 = vsyncadd [#allocation12], %s114
      %s117 = sshll.u32 [#allocation13], 4
      %s118 = int_to_ptr.vmem [resolvable:$true] %s117
      %120 = dma.hbm_to_vmem [thread:$0]  %s10, 128, %s118, [#allocation12]
    $region45: #{tpu_custom_call.1} parent=1 // pred_fallthru
      _
    // Predicated region
    $region46: #{tpu_custom_call.1} parent=1 // pred_check
      _
    $region47: #{tpu_custom_call.1} parent=1 // pred_check_branch
      %122 = sbr.rel (0) target = $region49
    $region48: #{tpu_custom_call.1} parent=1 // pred_region
      _
    $region49: #{tpu_custom_call.1} parent=1 // pred_fallthru
      _
    // Predicated region
    $region50: #{tpu_custom_call.1} parent=1 // pred_check
      _
    $region51: #{tpu_custom_call.1} parent=1 // pred_check_branch
      %124 = sbr.rel (0) target = $region53
    $region52: #{tpu_custom_call.1} parent=1 // pred_region
      %s126 = ssub.s32 512, 512
      %127 = vsyncadd [#allocation15], %s126
      %s129 = sshll.u32 [#allocation14], 4
      %s130 = int_to_ptr.vmem [resolvable:$true] %s129
      %132 = dma.hbm_to_vmem [thread:$0]  %s12, 512, %s130, [#allocation15]
    $region53: #{tpu_custom_call.1} parent=1 // pred_fallthru
      _
    // Predicated region
    $region54: #{tpu_custom_call.1} parent=1 // pred_check
      _
    $region55: #{tpu_custom_call.1} parent=1 // pred_check_branch
      %134 = sbr.rel (0) target = $region57
    $region56: #{tpu_custom_call.1} parent=1 // pred_region
      %s136 = ssub.s32 65536, 65536
      %137 = vsyncadd [#allocation15], %s136
      %s138 = sshll.u32 [#allocation16], 4
      %s139 = int_to_ptr.vmem [resolvable:$true] %s138
      %144 = dma.hbm_to_vmem [thread:$0]  %s13, 65536, %s139, [#allocation15], 1024, 1024, 64
    $region57: #{tpu_custom_call.1} parent=1 // pred_fallthru
      _
    // Predicated region
    $region58: #{tpu_custom_call.1} parent=1 // pred_check
      _
    $region59: #{tpu_custom_call.1} parent=1 // pred_check_branch
      %146 = sbr.rel (0) target = $region61
    $region60: #{tpu_custom_call.1} parent=1 // pred_region
      _
    $region61: #{tpu_custom_call.1} parent=1 // pred_fallthru
      _
    // Predicated region
    $region62: #{tpu_custom_call.1} parent=1 // pred_check
      _
    $region63: #{tpu_custom_call.1} parent=1 // pred_check_branch
      %148 = sbr.rel (0) target = $region65
    $region64: #{tpu_custom_call.1} parent=1 // pred_region
      _
    $region65: #{tpu_custom_call.1} parent=1 // pred_fallthru
      _
    // Predicated region
    $region66: #{tpu_custom_call.1} parent=1 // pred_check
      _
    $region67: #{tpu_custom_call.1} parent=1 // pred_check_branch
      %150 = sbr.rel (0) target = $region69
    $region68: #{tpu_custom_call.1} parent=1 // pred_region
      _
    $region69: #{tpu_custom_call.1} parent=1 // pred_fallthru
      _
    // Predicated region
    $region70: #{tpu_custom_call.1} parent=1 // pred_check
      _
    $region71: #{tpu_custom_call.1} parent=1 // pred_check_branch
      %152 = sbr.rel (0) target = $region73
    $region72: #{tpu_custom_call.1} parent=1 // pred_region
      _
    $region73: #{tpu_custom_call.1} parent=1 // pred_fallthru
      _
    // Predicated region
    $region74: #{tpu_custom_call.1} parent=1 // pred_check
      _
    $region75: #{tpu_custom_call.1} parent=1 // pred_check_branch
      %154 = sbr.rel (0) target = $region77
    $region76: #{tpu_custom_call.1} parent=1 // pred_region
      _
    $region77: #{tpu_custom_call.1} parent=1 // pred_fallthru
      _
    // Predicated region
    $region78: #{tpu_custom_call.1} parent=1 // pred_check
      _
    $region79: #{tpu_custom_call.1} parent=1 // pred_check_branch
      %156 = sbr.rel (0) target = $region81
    $region80: #{tpu_custom_call.1} parent=1 // pred_region
      _
    $region81: #{tpu_custom_call.1} parent=1 // pred_fallthru
      _
    // Predicated region
    $region82: #{tpu_custom_call.1} parent=1 // pred_check
      _
    $region83: #{tpu_custom_call.1} parent=1 // pred_check_branch
      %158 = sbr.rel (0) target = $region85
    $region84: #{tpu_custom_call.1} parent=1 // pred_region
      %159 = dma.done [#allocation3], 256
    $region85: #{tpu_custom_call.1} parent=1 // pred_fallthru
      _
    // Predicated region
    $region86: #{tpu_custom_call.1} parent=1 // pred_check
      _
    $region87: #{tpu_custom_call.1} parent=1 // pred_check_branch
      %161 = sbr.rel (0) target = $region89
    $region88: #{tpu_custom_call.1} parent=1 // pred_region
      %162 = dma.done [#allocation6], 256
    $region89: #{tpu_custom_call.1} parent=1 // pred_fallthru
      _
    // Predicated region
    $region90: #{tpu_custom_call.1} parent=1 // pred_check
      _
    $region91: #{tpu_custom_call.1} parent=1 // pred_check_branch
      %164 = sbr.rel (0) target = $region93
    $region92: #{tpu_custom_call.1} parent=1 // pred_region
      %165 = dma.done [#allocation6], 512
    $region93: #{tpu_custom_call.1} parent=1 // pred_fallthru
      _
    // Predicated region
    $region94: #{tpu_custom_call.1} parent=1 // pred_check
      _
    $region95: #{tpu_custom_call.1} parent=1 // pred_check_branch
      %167 = sbr.rel (0) target = $region97
    $region96: #{tpu_custom_call.1} parent=1 // pred_region
      %168 = dma.done [#allocation9], 128
    $region97: #{tpu_custom_call.1} parent=1 // pred_fallthru
      _
    // Predicated region
    $region98: #{tpu_custom_call.1} parent=1 // pred_check
      _
    $region99: #{tpu_custom_call.1} parent=1 // pred_check_branch
      %170 = sbr.rel (0) target = $region101
    $region100: #{tpu_custom_call.1} parent=1 // pred_region
      %171 = dma.done [#allocation9], 128
    $region101: #{tpu_custom_call.1} parent=1 // pred_fallthru
      _
    // Predicated region
    $region102: #{tpu_custom_call.1} parent=1 // pred_check
      _
    $region103: #{tpu_custom_call.1} parent=1 // pred_check_branch
      %173 = sbr.rel (0) target = $region105
    $region104: #{tpu_custom_call.1} parent=1 // pred_region
      %174 = dma.done [#allocation12], 8192
    $region105: #{tpu_custom_call.1} parent=1 // pred_fallthru
      _
    // Predicated region
    $region106: #{tpu_custom_call.1} parent=1 // pred_check
      _
    $region107: #{tpu_custom_call.1} parent=1 // pred_check_branch
      %176 = sbr.rel (0) target = $region109
    $region108: #{tpu_custom_call.1} parent=1 // pred_region
      %177 = dma.done [#allocation12], 128
    $region109: #{tpu_custom_call.1} parent=1 // pred_fallthru
      _
    // Predicated region
    $region110: #{tpu_custom_call.1} parent=1 // pred_check
      _
    $region111: #{tpu_custom_call.1} parent=1 // pred_check_branch
      %179 = sbr.rel (0) target = $region113
    $region112: #{tpu_custom_call.1} parent=1 // pred_region
      %180 = dma.done [#allocation15], 512
    $region113: #{tpu_custom_call.1} parent=1 // pred_fallthru
      _
    // Predicated region
    $region114: #{tpu_custom_call.1} parent=1 // pred_check
      _
    $region115: #{tpu_custom_call.1} parent=1 // pred_check_branch
      %182 = sbr.rel (0) target = $region117
    $region116: #{tpu_custom_call.1} parent=1 // pred_region
      %183 = dma.done [#allocation15], 65536
    $region117: #{tpu_custom_call.1} parent=1 // pred_fallthru
      _
    %v184 = vld [vmem:[#allocation2] sm:$0xff]
    %v185 = vld [vmem:[#allocation2 + $0x8] sm:$0xff]
    %v186 = vlaneseq
    %v187 = vand.u32 %v186, 127
    %v188 = vand.u32 %v187, 63
    %v189 = vld [vmem:[#allocation5] sm:$0xff]
    %v190 = vld [vmem:[#allocation5 + $0x8] sm:$0xff]
    %vm191 = vcmask 130048
    %v193 = vsel %vm191, %v184, 0
    %v196 = vsel %vm191, %v185, 0
    %198 = vmatprep.subr.mxu0 0.0
    %199 = vmatpush1.msra.mxu0 %v189
    %200 = vmatprep.subr.mxu0 0.0
    %201 = vmatpush1.msra.mxu0 %v190
    %202 = vmatprep.subr.mxu0 0.0
    %203 = vmatpush1.msra.mxu0 0.0
    %204 = vmatprep.subr.mxu0 0.0
    %205 = vmatpush1.msra.mxu0 0.0
    %206 = vmatprep.subr.mxu0 0.0
    %207 = vmatpush1.msra.mxu0 0.0
    %208 = vmatprep.subr.mxu0 0.0
    %209 = vmatpush1.msra.mxu0 0.0
    %210 = vmatprep.subr.mxu0 0.0
    %211 = vmatpush1.msra.mxu0 0.0
    %212 = vmatprep.subr.mxu0 0.0
    %213 = vmatpush1.msra.mxu0 0.0
    %214 = vmatprep.subr.mxu0 0.0
    %215 = vmatpush1.msra.mxu0 0.0
    %216 = vmatprep.subr.mxu0 0.0
    %217 = vmatpush1.msra.mxu0 0.0
    %218 = vmatprep.subr.mxu0 0.0
    %219 = vmatpush1.msra.mxu0 0.0
    %220 = vmatprep.subr.mxu0 0.0
    %221 = vmatpush1.msra.mxu0 0.0
    %222 = vmatprep.subr.mxu0 0.0
    %223 = vmatpush1.msra.mxu0 0.0
    %224 = vmatprep.subr.mxu0 0.0
    %225 = vmatpush1.msra.mxu0 0.0
    %226 = vmatprep.subr.mxu0 0.0
    %227 = vmatpush1.msra.mxu0 0.0
    %228 = vmatprep.subr.mxu0 0.0
    %229 = vmatpush1.msra.mxu0 0.0
    %230 = vmatprep.subr.mxu0 0.0
    %231 = vmatpush1.msra.mxu0 0.0
    %232 = vmatprep.subr.mxu0 0.0
    %233 = vmatpush1.msra.mxu0 0.0
    %234 = vmatprep.subr.mxu0 0.0
    %235 = vmatpush1.msra.mxu0 0.0
    %236 = vmatprep.subr.mxu0 0.0
    %237 = vmatpush1.msra.mxu0 0.0
    %238 = vmatprep.subr.mxu0 0.0
    %239 = vmatpush1.msra.mxu0 0.0
    %240 = vmatprep.subr.mxu0 0.0
    %241 = vmatpush1.msra.mxu0 0.0
    %242 = vmatprep.subr.mxu0 0.0
    %243 = vmatpush1.msra.mxu0 0.0
    %244 = vmatprep.subr.mxu0 0.0
    %245 = vmatpush1.msra.mxu0 0.0
    %246 = vmatprep.subr.mxu0 0.0
    %247 = vmatpush1.msra.mxu0 0.0
    %248 = vmatprep.subr.mxu0 0.0
    %249 = vmatpush1.msra.mxu0 0.0
    %250 = vmatprep.subr.mxu0 0.0
    %251 = vmatpush1.msra.mxu0 0.0
    %252 = vmatprep.subr.mxu0 0.0
    %253 = vmatpush1.msra.mxu0 0.0
    %254 = vmatprep.subr.mxu0 0.0
    %255 = vmatpush1.msra.mxu0 0.0
    %256 = vmatprep.subr.mxu0 0.0
    %257 = vmatpush1.msra.mxu0 0.0
    %258 = vmatprep.subr.mxu0 0.0
    %259 = vmatpush1.msra.mxu0 0.0
    %260 = vmatprep.subr.mxu0 0.0
    %261 = vmatpush1.msra.mxu0 0.0
    %262 = vmatprep.mubr.f32.mxu0 0.0
    %263 = vmatmul.mubr.f32.gmra.mrb[0].mxu0 %v193
    %v264 = vpop.f32.mrb[0].mxu0
    %v265 = vadd.f32 0.0, %v264
    %v266 = vpop.f32.mrb[0].mxu0
    %267 = vmatprep.mubr.f32.mxu0 0.0
    %268 = vmatmul.mubr.f32.gmra.mrb[0].mxu0 %v196
    %v269 = vpop.f32.mrb[0].mxu0
    %v270 = vadd.f32 0.0, %v269
    %v271 = vpop.f32.mrb[0].mxu0
    %272 = vdwg.mxu0
    %273 = vrot.lane.b32.xlu0 %v265, 4
    %v274 = vpop.permute.xlu0 %273
    %275 = vrot.lane.b32.xlu0 %v270, 4
    %v276 = vpop.permute.xlu0 %275
    %vm277 = vcmp.ge.s32.totalorder %v188, 4
    %v278 = vsel %vm277, 1, 0
    %vm279 = vcmp.eq.s32.totalorder %v278, 1
    %v280 = vsel %vm279, %v274, 0.0
    %v281 = vsel %vm279, %v276, 0.0
    %v282 = vld [vmem:[#allocation7] sm:$0xff]
    %v283 = vld [vmem:[#allocation7 + $0x8] sm:$0xff]
    %v284 = vld [vmem:[#allocation7 + $0x10] sm:$0xff]
    %v285 = vld [vmem:[#allocation7 + $0x18] sm:$0xff]
    %vm286 = vcmask 261120
    %v288 = vsel %vm286, %v282, 0
    %v291 = vsel %vm286, %v283, 0
    %v294 = vsel %vm286, %v284, 0
    %v297 = vsel %vm286, %v285, 0
    %299 = vmatprep.subr.mxu0 0.0
    %300 = vmatpush1.msra.mxu0 %v265
    %301 = vmatprep.subr.mxu0 0.0
    %302 = vmatpush1.msra.mxu0 %v270
    %303 = vmatprep.subr.mxu0 0.0
    %304 = vmatpush1.msra.mxu0 %v280
    %305 = vmatprep.subr.mxu0 0.0
    %306 = vmatpush1.msra.mxu0 %v281
    %307 = vmatprep.subr.mxu0 0.0
    %308 = vmatpush1.msra.mxu0 0.0
    %309 = vmatprep.subr.mxu0 0.0
    %310 = vmatpush1.msra.mxu0 0.0
    %311 = vmatprep.subr.mxu0 0.0
    %312 = vmatpush1.msra.mxu0 0.0
    %313 = vmatprep.subr.mxu0 0.0
    %314 = vmatpush1.msra.mxu0 0.0
    %315 = vmatprep.subr.mxu0 0.0
    %316 = vmatpush1.msra.mxu0 0.0
    %317 = vmatprep.subr.mxu0 0.0
    %318 = vmatpush1.msra.mxu0 0.0
    %319 = vmatprep.subr.mxu0 0.0
    %320 = vmatpush1.msra.mxu0 0.0
    %321 = vmatprep.subr.mxu0 0.0
    %322 = vmatpush1.msra.mxu0 0.0
    %323 = vmatprep.subr.mxu0 0.0
    %324 = vmatpush1.msra.mxu0 0.0
    %325 = vmatprep.subr.mxu0 0.0
    %326 = vmatpush1.msra.mxu0 0.0
    %327 = vmatprep.subr.mxu0 0.0
    %328 = vmatpush1.msra.mxu0 0.0
    %329 = vmatprep.subr.mxu0 0.0
    %330 = vmatpush1.msra.mxu0 0.0
    %331 = vmatprep.subr.mxu0 0.0
    %332 = vmatpush1.msra.mxu0 0.0
    %333 = vmatprep.subr.mxu0 0.0
    %334 = vmatpush1.msra.mxu0 0.0
    %335 = vmatprep.subr.mxu0 0.0
    %336 = vmatpush1.msra.mxu0 0.0
    %337 = vmatprep.subr.mxu0 0.0
    %338 = vmatpush1.msra.mxu0 0.0
    %339 = vmatprep.subr.mxu0 0.0
    %340 = vmatpush1.msra.mxu0 0.0
    %341 = vmatprep.subr.mxu0 0.0
    %342 = vmatpush1.msra.mxu0 0.0
    %343 = vmatprep.subr.mxu0 0.0
    %344 = vmatpush1.msra.mxu0 0.0
    %345 = vmatprep.subr.mxu0 0.0
    %346 = vmatpush1.msra.mxu0 0.0
    %347 = vmatprep.subr.mxu0 0.0
    %348 = vmatpush1.msra.mxu0 0.0
    %349 = vmatprep.subr.mxu0 0.0
    %350 = vmatpush1.msra.mxu0 0.0
    %351 = vmatprep.subr.mxu0 0.0
    %352 = vmatpush1.msra.mxu0 0.0
    %353 = vmatprep.subr.mxu0 0.0
    %354 = vmatpush1.msra.mxu0 0.0
    %355 = vmatprep.subr.mxu0 0.0
    %356 = vmatpush1.msra.mxu0 0.0
    %357 = vmatprep.subr.mxu0 0.0
    %358 = vmatpush1.msra.mxu0 0.0
    %359 = vmatprep.subr.mxu0 0.0
    %360 = vmatpush1.msra.mxu0 0.0
    %361 = vmatprep.subr.mxu0 0.0
    %362 = vmatpush1.msra.mxu0 0.0
    %363 = vmatprep.mubr.f32.mxu0 0.0
    %364 = vmatmul.mubr.f32.gmra.mrb[0].mxu0 %v288
    %v365 = vpop.f32.mrb[0].mxu0
    %v366 = vadd.f32 0.0, %v365
    %v367 = vpop.f32.mrb[0].mxu0
    %368 = vmatprep.mubr.f32.mxu0 0.0
    %369 = vmatmul.mubr.f32.gmra.mrb[0].mxu0 %v291
    %v370 = vpop.f32.mrb[0].mxu0
    %v371 = vadd.f32 0.0, %v370
    %v372 = vpop.f32.mrb[0].mxu0
    %373 = vmatprep.mubr.f32.mxu0 0.0
    %374 = vmatmul.mubr.f32.gmra.mrb[0].mxu0 %v294
    %v375 = vpop.f32.mrb[0].mxu0
    %v376 = vadd.f32 0.0, %v375
    %v377 = vpop.f32.mrb[0].mxu0
    %378 = vmatprep.mubr.f32.mxu0 0.0
    %379 = vmatmul.mubr.f32.gmra.mrb[0].mxu0 %v297
    %v380 = vpop.f32.mrb[0].mxu0
    %v381 = vadd.f32 0.0, %v380
    %v382 = vpop.f32.mrb[0].mxu0
    %383 = vdwg.mxu0
    %v384 = vand.u32 %v187, 3
    %vm385 = vcmp.eq.s32.totalorder %v384, 0
    %v386 = vsel %vm385, 1, 0
    %vm387 = vcmp.eq.s32.totalorder %v386, 1
    %v388 = vsel %vm387, %v366, 0.0
    %vm389 = vcmp.eq.s32.totalorder %v384, 1
    %v390 = vsel %vm389, 1, 0
    %vm391 = vcmp.eq.s32.totalorder %v390, 1
    %v392 = vsel %vm391, %v371, 0.0
    %v393 = vadd.f32 %v388, %v392
    %vm394 = vcmp.eq.s32.totalorder %v384, 2
    %v395 = vsel %vm394, 1, 0
    %vm396 = vcmp.eq.s32.totalorder %v395, 1
    %v397 = vsel %vm396, %v376, 0.0
    %v398 = vadd.f32 %v393, %v397
    %vm399 = vcmp.eq.s32.totalorder %v384, 3
    %v400 = vsel %vm399, 1, 0
    %vm401 = vcmp.eq.s32.totalorder %v400, 1
    %v402 = vsel %vm401, %v381, 0.0
    %v403 = vadd.f32 %v398, %v402
    %v404 = vld [vmem:[%s3] sm:$0xff]
    %406 = vset.pattern.permute.xlu0 0
    %407 = vperm.xlu0 %406, %v404
    %v408 = vpop.permute.xlu0 %407
    %v410 = vadd.f32 %v403, %v408
    %vm411 = vcmp.gt.f32.partialorder %v410, 0.0
    %v412 = vmul.f32 %v410, 0.1
    %v413 = vsel %vm411, %v410, %v412
    %vm414 = vcmp.lt.s32.totalorder %v188, 37
    %v415 = vsel %vm414, 1, 0
    %vm416 = vcmp.eq.s32.totalorder %v415, 1
    %v417 = vsel %vm416, %v413, 0.0
    %vm418 = vcmp.ge.s32.totalorder %v188, 1
    %419 = vrot.lane.b32.xlu0 %v417, 1
    %v420 = vpop.permute.xlu0 %419
    %v421 = vsel %vm418, 1, 0
    %vm422 = vcmp.eq.s32.totalorder %v421, 1
    %v423 = vsel %vm422, %v420, 0.0
    %vm424 = vcmp.le.s32.totalorder %v188, 62
    %425 = vrot.lane.b32.xlu0 %v417, 127
    %v426 = vpop.permute.xlu0 %425
    %v427 = vsel %vm424, 1, 0
    %vm428 = vcmp.eq.s32.totalorder %v427, 1
    %v429 = vsel %vm428, %v426, 0.0
    %v430 = vld [vmem:[#allocation8] sm:$0xff]
    %v431 = vld [vmem:[%s5] sm:$0xff]
    %433 = vset.pattern.permute.xlu0 0
    %434 = vperm.xlu0 %433, %v431
    %v435 = vpop.permute.xlu0 %434
    %vm437 = vcmask 195584
    %v439 = vsel %vm437, %v430, 0
    %441 = vmatprep.subr.mxu0 0.0
    %442 = vmatpush1.msra.mxu0 %v423
    %443 = vmatprep.subr.mxu0 0.0
    %444 = vmatpush1.msra.mxu0 %v417
    %445 = vmatprep.subr.mxu0 0.0
    %446 = vmatpush1.msra.mxu0 %v429
    %447 = vmatprep.subr.mxu0 0.0
    %448 = vmatpush1.msra.mxu0 0.0
    %449 = vmatprep.subr.mxu0 0.0
    %450 = vmatpush1.msra.mxu0 0.0
    %451 = vmatprep.subr.mxu0 0.0
    %452 = vmatpush1.msra.mxu0 0.0
    %453 = vmatprep.subr.mxu0 0.0
    %454 = vmatpush1.msra.mxu0 0.0
    %455 = vmatprep.subr.mxu0 0.0
    %456 = vmatpush1.msra.mxu0 0.0
    %457 = vmatprep.subr.mxu0 0.0
    %458 = vmatpush1.msra.mxu0 0.0
    %459 = vmatprep.subr.mxu0 0.0
    %460 = vmatpush1.msra.mxu0 0.0
    %461 = vmatprep.subr.mxu0 0.0
    %462 = vmatpush1.msra.mxu0 0.0
    %463 = vmatprep.subr.mxu0 0.0
    %464 = vmatpush1.msra.mxu0 0.0
    %465 = vmatprep.subr.mxu0 0.0
    %466 = vmatpush1.msra.mxu0 0.0
    %467 = vmatprep.subr.mxu0 0.0
    %468 = vmatpush1.msra.mxu0 0.0
    %469 = vmatprep.subr.mxu0 0.0
    %470 = vmatpush1.msra.mxu0 0.0
    %471 = vmatprep.subr.mxu0 0.0
    %472 = vmatpush1.msra.mxu0 0.0
    %473 = vmatprep.subr.mxu0 0.0
    %474 = vmatpush1.msra.mxu0 0.0
    %475 = vmatprep.subr.mxu0 0.0
    %476 = vmatpush1.msra.mxu0 0.0
    %477 = vmatprep.subr.mxu0 0.0
    %478 = vmatpush1.msra.mxu0 0.0
    %479 = vmatprep.subr.mxu0 0.0
    %480 = vmatpush1.msra.mxu0 0.0
    %481 = vmatprep.subr.mxu0 0.0
    %482 = vmatpush1.msra.mxu0 0.0
    %483 = vmatprep.subr.mxu0 0.0
    %484 = vmatpush1.msra.mxu0 0.0
    %485 = vmatprep.subr.mxu0 0.0
    %486 = vmatpush1.msra.mxu0 0.0
    %487 = vmatprep.subr.mxu0 0.0
    %488 = vmatpush1.msra.mxu0 0.0
    %489 = vmatprep.subr.mxu0 0.0
    %490 = vmatpush1.msra.mxu0 0.0
    %491 = vmatprep.subr.mxu0 0.0
    %492 = vmatpush1.msra.mxu0 0.0
    %493 = vmatprep.subr.mxu0 0.0
    %494 = vmatpush1.msra.mxu0 0.0
    %495 = vmatprep.subr.mxu0 0.0
    %496 = vmatpush1.msra.mxu0 0.0
    %497 = vmatprep.subr.mxu0 0.0
    %498 = vmatpush1.msra.mxu0 0.0
    %499 = vmatprep.subr.mxu0 0.0
    %500 = vmatpush1.msra.mxu0 0.0
    %501 = vmatprep.subr.mxu0 0.0
    %502 = vmatpush1.msra.mxu0 0.0
    %503 = vmatprep.subr.mxu0 0.0
    %504 = vmatpush1.msra.mxu0 0.0
    %505 = vmatprep.mubr.f32.mxu0 0.0
    %506 = vmatmul.mubr.f32.gmra.mrb[0].mxu0 %v439
    %v507 = vpop.f32.mrb[0].mxu0
    %v508 = vadd.f32 %v435, %v507
    %v509 = vpop.f32.mrb[0].mxu0
    %510 = vdwg.mxu0
    %v511 = vld [vmem:[#allocation10] sm:$0xff]
    %v512 = vsub.f32 %v511, %v508
    %vm513 = vcmp.gt.f32.partialorder %v512, 0.0
    %v514 = vmul.f32 %v512, 0.1
    %v515 = vsel %vm513, %v512, %v514
    %516 = vst [vmem:[#allocation17] sm:$0xff] %v515
    %v517 = vadd.s32 %v187, 128
    %v518 = vadd.s32 %v187, 256
    %v519 = vadd.s32 %v187, 384
    %v520 = vand.u32 %v187, 255
    %v521 = vand.u32 %v517, 255
    %v522 = vand.u32 %v518, 255
    %v523 = vand.u32 %v519, 255
    %v524 = vld [vmem:[#allocation11] sm:$0xff]
    %v525 = vld [vmem:[#allocation11 + $0x8] sm:$0xff]
    %v526 = vld [vmem:[#allocation11 + $0x10] sm:$0xff]
    %v527 = vld [vmem:[#allocation11 + $0x18] sm:$0xff]
    %v528 = vld [vmem:[#allocation11 + $0x20] sm:$0xff]
    %v529 = vld [vmem:[#allocation11 + $0x28] sm:$0xff]
    %v530 = vld [vmem:[#allocation11 + $0x30] sm:$0xff]
    %v531 = vld [vmem:[#allocation11 + $0x38] sm:$0xff]
    %v532 = vld [vmem:[#allocation11 + $0x40] sm:$0xff]
    %v533 = vld [vmem:[#allocation11 + $0x48] sm:$0xff]
    %v534 = vld [vmem:[#allocation11 + $0x50] sm:$0xff]
    %v535 = vld [vmem:[#allocation11 + $0x58] sm:$0xff]
    %v536 = vld [vmem:[#allocation11 + $0x60] sm:$0xff]
    %v537 = vld [vmem:[#allocation11 + $0x68] sm:$0xff]
    %v538 = vld [vmem:[#allocation11 + $0x70] sm:$0xff]
    %v539 = vld [vmem:[#allocation11 + $0x78] sm:$0xff]
    %v540 = vld [vmem:[#allocation11 + $0x80] sm:$0xff]
    %v541 = vld [vmem:[#allocation11 + $0x88] sm:$0xff]
    %v542 = vld [vmem:[#allocation11 + $0x90] sm:$0xff]
    %v543 = vld [vmem:[#allocation11 + $0x98] sm:$0xff]
    %v544 = vld [vmem:[#allocation11 + $0xa0] sm:$0xff]
    %v545 = vld [vmem:[#allocation11 + $0xa8] sm:$0xff]
    %v546 = vld [vmem:[#allocation11 + $0xb0] sm:$0xff]
    %v547 = vld [vmem:[#allocation11 + $0xb8] sm:$0xff]
    %v548 = vld [vmem:[#allocation11 + $0xc0] sm:$0xff]
    %v549 = vld [vmem:[#allocation11 + $0xc8] sm:$0xff]
    %v550 = vld [vmem:[#allocation11 + $0xd0] sm:$0xff]
    %v551 = vld [vmem:[#allocation11 + $0xd8] sm:$0xff]
    %v552 = vld [vmem:[#allocation11 + $0xe0] sm:$0xff]
    %v553 = vld [vmem:[#allocation11 + $0xe8] sm:$0xff]
    %v554 = vld [vmem:[#allocation11 + $0xf0] sm:$0xff]
    %v555 = vld [vmem:[#allocation11 + $0xf8] sm:$0xff]
    %v556 = vld [vmem:[#allocation11 + $0x100] sm:$0xff]
    %v557 = vld [vmem:[#allocation11 + $0x108] sm:$0xff]
    %v558 = vld [vmem:[#allocation11 + $0x110] sm:$0xff]
    %v559 = vld [vmem:[#allocation11 + $0x118] sm:$0xff]
    %v560 = vld [vmem:[#allocation11 + $0x120] sm:$0xff]
    %v561 = vld [vmem:[#allocation11 + $0x128] sm:$0xff]
    %v562 = vld [vmem:[#allocation11 + $0x130] sm:$0xff]
    %v563 = vld [vmem:[#allocation11 + $0x138] sm:$0xff]
    %v564 = vld [vmem:[#allocation11 + $0x140] sm:$0xff]
    %v565 = vld [vmem:[#allocation11 + $0x148] sm:$0xff]
    %v566 = vld [vmem:[#allocation11 + $0x150] sm:$0xff]
    %v567 = vld [vmem:[#allocation11 + $0x158] sm:$0xff]
    %v568 = vld [vmem:[#allocation11 + $0x160] sm:$0xff]
    %v569 = vld [vmem:[#allocation11 + $0x168] sm:$0xff]
    %v570 = vld [vmem:[#allocation11 + $0x170] sm:$0xff]
    %v571 = vld [vmem:[#allocation11 + $0x178] sm:$0xff]
    %v572 = vld [vmem:[#allocation11 + $0x180] sm:$0xff]
    %v573 = vld [vmem:[#allocation11 + $0x188] sm:$0xff]
    %v574 = vld [vmem:[#allocation11 + $0x190] sm:$0xff]
    %v575 = vld [vmem:[#allocation11 + $0x198] sm:$0xff]
    %v576 = vld [vmem:[#allocation11 + $0x1a0] sm:$0xff]
    %v577 = vld [vmem:[#allocation11 + $0x1a8] sm:$0xff]
    %v578 = vld [vmem:[#allocation11 + $0x1b0] sm:$0xff]
    %v579 = vld [vmem:[#allocation11 + $0x1b8] sm:$0xff]
    %v580 = vld [vmem:[#allocation11 + $0x1c0] sm:$0xff]
    %v581 = vld [vmem:[#allocation11 + $0x1c8] sm:$0xff]
    %v582 = vld [vmem:[#allocation11 + $0x1d0] sm:$0xff]
    %v583 = vld [vmem:[#allocation11 + $0x1d8] sm:$0xff]
    %v584 = vld [vmem:[#allocation11 + $0x1e0] sm:$0xff]
    %v585 = vld [vmem:[#allocation11 + $0x1e8] sm:$0xff]
    %v586 = vld [vmem:[#allocation11 + $0x1f0] sm:$0xff]
    %v587 = vld [vmem:[#allocation11 + $0x1f8] sm:$0xff]
    %588 = vmatprep.subr.mxu0 %v525
    %589 = vmatpush1.msra.mxu0 %v524
    %590 = vmatprep.subr.mxu0 %v529
    %591 = vmatpush1.msra.mxu0 %v528
    %592 = vmatprep.subr.mxu0 %v533
    %593 = vmatpush1.msra.mxu0 %v532
    %594 = vmatprep.subr.mxu0 %v537
    %595 = vmatpush1.msra.mxu0 %v536
    %596 = vmatprep.subr.mxu0 %v541
    %597 = vmatpush1.msra.mxu0 %v540
    %598 = vmatprep.subr.mxu0 %v545
    %599 = vmatpush1.msra.mxu0 %v544
    %600 = vmatprep.subr.mxu0 %v549
    %601 = vmatpush1.msra.mxu0 %v548
    %602 = vmatprep.subr.mxu0 %v553
    %603 = vmatpush1.msra.mxu0 %v552
    %604 = vmatprep.subr.mxu0 %v557
    %605 = vmatpush1.msra.mxu0 %v556
    %606 = vmatprep.subr.mxu0 %v561
    %607 = vmatpush1.msra.mxu0 %v560
    %608 = vmatprep.subr.mxu0 %v565
    %609 = vmatpush1.msra.mxu0 %v564
    %610 = vmatprep.subr.mxu0 %v569
    %611 = vmatpush1.msra.mxu0 %v568
    %612 = vmatprep.subr.mxu0 %v573
    %613 = vmatpush1.msra.mxu0 %v572
    %614 = vmatprep.subr.mxu0 %v577
    %615 = vmatpush1.msra.mxu0 %v576
    %616 = vmatprep.subr.mxu0 %v581
    %617 = vmatpush1.msra.mxu0 %v580
    %618 = vmatprep.subr.mxu0 %v585
    %619 = vmatpush1.msra.mxu0 %v584
    %620 = vmatprep.subr.mxu0 0.0
    %621 = vmatpush1.msra.mxu0 0.0
    %622 = vmatprep.subr.mxu0 0.0
    %623 = vmatpush1.msra.mxu0 0.0
    %624 = vmatprep.subr.mxu0 0.0
    %625 = vmatpush1.msra.mxu0 0.0
    %626 = vmatprep.subr.mxu0 0.0
    %627 = vmatpush1.msra.mxu0 0.0
    %628 = vmatprep.subr.mxu0 0.0
    %629 = vmatpush1.msra.mxu0 0.0
    %630 = vmatprep.subr.mxu0 0.0
    %631 = vmatpush1.msra.mxu0 0.0
    %632 = vmatprep.subr.mxu0 0.0
    %633 = vmatpush1.msra.mxu0 0.0
    %634 = vmatprep.subr.mxu0 0.0
    %635 = vmatpush1.msra.mxu0 0.0
    %636 = vmatprep.subr.mxu0 0.0
    %637 = vmatpush1.msra.mxu0 0.0
    %638 = vmatprep.subr.mxu0 0.0
    %639 = vmatpush1.msra.mxu0 0.0
    %640 = vmatprep.subr.mxu0 0.0
    %641 = vmatpush1.msra.mxu0 0.0
    %642 = vmatprep.subr.mxu0 0.0
    %643 = vmatpush1.msra.mxu0 0.0
    %644 = vmatprep.subr.mxu0 0.0
    %645 = vmatpush1.msra.mxu0 0.0
    %646 = vmatprep.subr.mxu0 0.0
    %647 = vmatpush1.msra.mxu0 0.0
    %648 = vmatprep.subr.mxu0 0.0
    %649 = vmatpush1.msra.mxu0 0.0
    %650 = vmatprep.subr.mxu0 0.0
    %651 = vmatpush1.msra.mxu0 0.0
    %652 = vmatprep.mubr.f32.mxu0 0.0
    %653 = vmatmul.mubr.f32.gmra.mrb[0].mxu0 %v515
    %v654 = vpop.f32.mrb[0].mxu0
    %v655 = vadd.f32 0.0, %v654
    %v656 = vpop.f32.mrb[0].mxu0
    %v657 = vadd.f32 0.0, %v656
    %658 = vdwg.mxu0
    %659 = vmatprep.subr.mxu0 %v527
    %660 = vmatpush1.msra.mxu0 %v526
    %661 = vmatprep.subr.mxu0 %v531
    %662 = vmatpush1.msra.mxu0 %v530
    %663 = vmatprep.subr.mxu0 %v535
    %664 = vmatpush1.msra.mxu0 %v534
    %665 = vmatprep.subr.mxu0 %v539
    %666 = vmatpush1.msra.mxu0 %v538
    %667 = vmatprep.subr.mxu0 %v543
    %668 = vmatpush1.msra.mxu0 %v542
    %669 = vmatprep.subr.mxu0 %v547
    %670 = vmatpush1.msra.mxu0 %v546
    %671 = vmatprep.subr.mxu0 %v551
    %672 = vmatpush1.msra.mxu0 %v550
    %673 = vmatprep.subr.mxu0 %v555
    %674 = vmatpush1.msra.mxu0 %v554
    %675 = vmatprep.subr.mxu0 %v559
    %676 = vmatpush1.msra.mxu0 %v558
    %677 = vmatprep.subr.mxu0 %v563
    %678 = vmatpush1.msra.mxu0 %v562
    %679 = vmatprep.subr.mxu0 %v567
    %680 = vmatpush1.msra.mxu0 %v566
    %681 = vmatprep.subr.mxu0 %v571
    %682 = vmatpush1.msra.mxu0 %v570
    %683 = vmatprep.subr.mxu0 %v575
    %684 = vmatpush1.msra.mxu0 %v574
    %685 = vmatprep.subr.mxu0 %v579
    %686 = vmatpush1.msra.mxu0 %v578
    %687 = vmatprep.subr.mxu0 %v583
    %688 = vmatpush1.msra.mxu0 %v582
    %689 = vmatprep.subr.mxu0 %v587
    %690 = vmatpush1.msra.mxu0 %v586
    %691 = vmatprep.subr.mxu0 0.0
    %692 = vmatpush1.msra.mxu0 0.0
    %693 = vmatprep.subr.mxu0 0.0
    %694 = vmatpush1.msra.mxu0 0.0
    %695 = vmatprep.subr.mxu0 0.0
    %696 = vmatpush1.msra.mxu0 0.0
    %697 = vmatprep.subr.mxu0 0.0
    %698 = vmatpush1.msra.mxu0 0.0
    %699 = vmatprep.subr.mxu0 0.0
    %700 = vmatpush1.msra.mxu0 0.0
    %701 = vmatprep.subr.mxu0 0.0
    %702 = vmatpush1.msra.mxu0 0.0
    %703 = vmatprep.subr.mxu0 0.0
    %704 = vmatpush1.msra.mxu0 0.0
    %705 = vmatprep.subr.mxu0 0.0
    %706 = vmatpush1.msra.mxu0 0.0
    %707 = vmatprep.subr.mxu0 0.0
    %708 = vmatpush1.msra.mxu0 0.0
    %709 = vmatprep.subr.mxu0 0.0
    %710 = vmatpush1.msra.mxu0 0.0
    %711 = vmatprep.subr.mxu0 0.0
    %712 = vmatpush1.msra.mxu0 0.0
    %713 = vmatprep.subr.mxu0 0.0
    %714 = vmatpush1.msra.mxu0 0.0
    %715 = vmatprep.subr.mxu0 0.0
    %716 = vmatpush1.msra.mxu0 0.0
    %717 = vmatprep.subr.mxu0 0.0
    %718 = vmatpush1.msra.mxu0 0.0
    %719 = vmatprep.subr.mxu0 0.0
    %720 = vmatpush1.msra.mxu0 0.0
    %721 = vmatprep.subr.mxu0 0.0
    %722 = vmatpush1.msra.mxu0 0.0
    %723 = vmatprep.mubr.f32.mxu0 0.0
    %724 = vmatmul.mubr.f32.gmra.mrb[0].mxu0 %v515
    %v725 = vpop.f32.mrb[0].mxu0
    %v726 = vadd.f32 0.0, %v725
    %v727 = vpop.f32.mrb[0].mxu0
    %v728 = vadd.f32 0.0, %v727
    %729 = vdwg.mxu0
    %730 = vrot.lane.b32.xlu0 %v655, 4
    %v731 = vpop.permute.xlu0 %730
    %732 = vrot.lane.b32.xlu0 %v657, 4
    %v733 = vpop.permute.xlu0 %732
    %734 = vrot.lane.b32.xlu0 %v726, 4
    %v735 = vpop.permute.xlu0 %734
    %736 = vrot.lane.b32.xlu0 %v728, 4
    %v737 = vpop.permute.xlu0 %736
    %vm738 = vcmp.lt.s32.totalorder %v187, 4
    %v739 = vsel %vm738, %v735, %v737
    %v740 = vsel %vm738, %v733, %v735
    %v741 = vsel %vm738, %v731, %v733
    %v742 = vsel %vm738, %v737, %v731
    %vm743 = vcmp.ge.s32.totalorder %v520, 4
    %vm744 = vcmp.ge.s32.totalorder %v521, 4
    %vm745 = vcmp.ge.s32.totalorder %v522, 4
    %vm746 = vcmp.ge.s32.totalorder %v523, 4
    %v747 = vsel %vm743, 1, 0
    %v748 = vsel %vm744, 1, 0
    %v749 = vsel %vm745, 1, 0
    %v750 = vsel %vm746, 1, 0
    %vm751 = vcmp.eq.s32.totalorder %v747, 1
    %vm752 = vcmp.eq.s32.totalorder %v748, 1
    %vm753 = vcmp.eq.s32.totalorder %v749, 1
    %vm754 = vcmp.eq.s32.totalorder %v750, 1
    %v755 = vsel %vm751, %v742, 0.0
    %v756 = vsel %vm752, %v741, 0.0
    %v757 = vsel %vm753, %v740, 0.0
    %v758 = vsel %vm754, %v739, 0.0
    %v759 = vld [vmem:[%s8] sm:$0xff]
    %v760 = vld [vmem:[%s8 + $0x8] sm:$0xff]
    %v761 = vld [vmem:[%s8 + $0x10] sm:$0xff]
    %v762 = vld [vmem:[%s8 + $0x18] sm:$0xff]
    %v764 = vsel %vm191, %v759, 0
    %v767 = vsel %vm191, %v760, 0
    %v770 = vsel %vm191, %v761, 0
    %v773 = vsel %vm191, %v762, 0
    %775 = vmatprep.subr.mxu0 %v657
    %776 = vmatpush1.msra.mxu0 %v655
    %777 = vmatprep.subr.mxu0 %v756
    %778 = vmatpush1.msra.mxu0 %v755
    %779 = vmatprep.subr.mxu0 0.0
    %780 = vmatpush1.msra.mxu0 0.0
    %781 = vmatprep.subr.mxu0 0.0
    %782 = vmatpush1.msra.mxu0 0.0
    %783 = vmatprep.subr.mxu0 0.0
    %784 = vmatpush1.msra.mxu0 0.0
    %785 = vmatprep.subr.mxu0 0.0
    %786 = vmatpush1.msra.mxu0 0.0
    %787 = vmatprep.subr.mxu0 0.0
    %788 = vmatpush1.msra.mxu0 0.0
    %789 = vmatprep.subr.mxu0 0.0
    %790 = vmatpush1.msra.mxu0 0.0
    %791 = vmatprep.subr.mxu0 0.0
    %792 = vmatpush1.msra.mxu0 0.0
    %793 = vmatprep.subr.mxu0 0.0
    %794 = vmatpush1.msra.mxu0 0.0
    %795 = vmatprep.subr.mxu0 0.0
    %796 = vmatpush1.msra.mxu0 0.0
    %797 = vmatprep.subr.mxu0 0.0
    %798 = vmatpush1.msra.mxu0 0.0
    %799 = vmatprep.subr.mxu0 0.0
    %800 = vmatpush1.msra.mxu0 0.0
    %801 = vmatprep.subr.mxu0 0.0
    %802 = vmatpush1.msra.mxu0 0.0
    %803 = vmatprep.subr.mxu0 0.0
    %804 = vmatpush1.msra.mxu0 0.0
    %805 = vmatprep.subr.mxu0 0.0
    %806 = vmatpush1.msra.mxu0 0.0
    %807 = vmatprep.subr.mxu0 0.0
    %808 = vmatpush1.msra.mxu0 0.0
    %809 = vmatprep.subr.mxu0 0.0
    %810 = vmatpush1.msra.mxu0 0.0
    %811 = vmatprep.subr.mxu0 0.0
    %812 = vmatpush1.msra.mxu0 0.0
    %813 = vmatprep.subr.mxu0 0.0
    %814 = vmatpush1.msra.mxu0 0.0
    %815 = vmatprep.subr.mxu0 0.0
    %816 = vmatpush1.msra.mxu0 0.0
    %817 = vmatprep.subr.mxu0 0.0
    %818 = vmatpush1.msra.mxu0 0.0
    %819 = vmatprep.subr.mxu0 0.0
    %820 = vmatpush1.msra.mxu0 0.0
    %821 = vmatprep.subr.mxu0 0.0
    %822 = vmatpush1.msra.mxu0 0.0
    %823 = vmatprep.subr.mxu0 0.0
    %824 = vmatpush1.msra.mxu0 0.0
    %825 = vmatprep.subr.mxu0 0.0
    %826 = vmatpush1.msra.mxu0 0.0
    %827 = vmatprep.subr.mxu0 0.0
    %828 = vmatpush1.msra.mxu0 0.0
    %829 = vmatprep.subr.mxu0 0.0
    %830 = vmatpush1.msra.mxu0 0.0
    %831 = vmatprep.subr.mxu0 0.0
    %832 = vmatpush1.msra.mxu0 0.0
    %833 = vmatprep.subr.mxu0 0.0
    %834 = vmatpush1.msra.mxu0 0.0
    %835 = vmatprep.subr.mxu0 0.0
    %836 = vmatpush1.msra.mxu0 0.0
    %837 = vmatprep.subr.mxu0 0.0
    %838 = vmatpush1.msra.mxu0 0.0
    %839 = vmatprep.mubr.f32.mxu0 0.0
    %840 = vmatmul.mubr.f32.gmra.mrb[0].mxu0 %v764
    %v841 = vpop.f32.mrb[0].mxu0
    %v842 = vadd.f32 0.0, %v841
    %v843 = vpop.f32.mrb[0].mxu0
    %v844 = vadd.f32 0.0, %v843
    %845 = vmatprep.mubr.f32.mxu0 0.0
    %846 = vmatmul.mubr.f32.gmra.mrb[0].mxu0 %v767
    %v847 = vpop.f32.mrb[0].mxu0
    %v848 = vadd.f32 0.0, %v847
    %v849 = vpop.f32.mrb[0].mxu0
    %v850 = vadd.f32 0.0, %v849
    %851 = vmatprep.mubr.f32.mxu0 0.0
    %852 = vmatmul.mubr.f32.gmra.mrb[0].mxu0 %v770
    %v853 = vpop.f32.mrb[0].mxu0
    %v854 = vadd.f32 0.0, %v853
    %v855 = vpop.f32.mrb[0].mxu0
    %v856 = vadd.f32 0.0, %v855
    %857 = vmatprep.mubr.f32.mxu0 0.0
    %858 = vmatmul.mubr.f32.gmra.mrb[0].mxu0 %v773
    %v859 = vpop.f32.mrb[0].mxu0
    %v860 = vadd.f32 0.0, %v859
    %v861 = vpop.f32.mrb[0].mxu0
    %v862 = vadd.f32 0.0, %v861
    %863 = vdwg.mxu0
    %864 = vmatprep.subr.mxu0 %v728
    %865 = vmatpush1.msra.mxu0 %v726
    %866 = vmatprep.subr.mxu0 %v758
    %867 = vmatpush1.msra.mxu0 %v757
    %868 = vmatprep.subr.mxu0 0.0
    %869 = vmatpush1.msra.mxu0 0.0
    %870 = vmatprep.subr.mxu0 0.0
    %871 = vmatpush1.msra.mxu0 0.0
    %872 = vmatprep.subr.mxu0 0.0
    %873 = vmatpush1.msra.mxu0 0.0
    %874 = vmatprep.subr.mxu0 0.0
    %875 = vmatpush1.msra.mxu0 0.0
    %876 = vmatprep.subr.mxu0 0.0
    %877 = vmatpush1.msra.mxu0 0.0
    %878 = vmatprep.subr.mxu0 0.0
    %879 = vmatpush1.msra.mxu0 0.0
    %880 = vmatprep.subr.mxu0 0.0
    %881 = vmatpush1.msra.mxu0 0.0
    %882 = vmatprep.subr.mxu0 0.0
    %883 = vmatpush1.msra.mxu0 0.0
    %884 = vmatprep.subr.mxu0 0.0
    %885 = vmatpush1.msra.mxu0 0.0
    %886 = vmatprep.subr.mxu0 0.0
    %887 = vmatpush1.msra.mxu0 0.0
    %888 = vmatprep.subr.mxu0 0.0
    %889 = vmatpush1.msra.mxu0 0.0
    %890 = vmatprep.subr.mxu0 0.0
    %891 = vmatpush1.msra.mxu0 0.0
    %892 = vmatprep.subr.mxu0 0.0
    %893 = vmatpush1.msra.mxu0 0.0
    %894 = vmatprep.subr.mxu0 0.0
    %895 = vmatpush1.msra.mxu0 0.0
    %896 = vmatprep.subr.mxu0 0.0
    %897 = vmatpush1.msra.mxu0 0.0
    %898 = vmatprep.subr.mxu0 0.0
    %899 = vmatpush1.msra.mxu0 0.0
    %900 = vmatprep.subr.mxu0 0.0
    %901 = vmatpush1.msra.mxu0 0.0
    %902 = vmatprep.subr.mxu0 0.0
    %903 = vmatpush1.msra.mxu0 0.0
    %904 = vmatprep.subr.mxu0 0.0
    %905 = vmatpush1.msra.mxu0 0.0
    %906 = vmatprep.subr.mxu0 0.0
    %907 = vmatpush1.msra.mxu0 0.0
    %908 = vmatprep.subr.mxu0 0.0
    %909 = vmatpush1.msra.mxu0 0.0
    %910 = vmatprep.subr.mxu0 0.0
    %911 = vmatpush1.msra.mxu0 0.0
    %912 = vmatprep.subr.mxu0 0.0
    %913 = vmatpush1.msra.mxu0 0.0
    %914 = vmatprep.subr.mxu0 0.0
    %915 = vmatpush1.msra.mxu0 0.0
    %916 = vmatprep.subr.mxu0 0.0
    %917 = vmatpush1.msra.mxu0 0.0
    %918 = vmatprep.subr.mxu0 0.0
    %919 = vmatpush1.msra.mxu0 0.0
    %920 = vmatprep.subr.mxu0 0.0
    %921 = vmatpush1.msra.mxu0 0.0
    %922 = vmatprep.subr.mxu0 0.0
    %923 = vmatpush1.msra.mxu0 0.0
    %924 = vmatprep.subr.mxu0 0.0
    %925 = vmatpush1.msra.mxu0 0.0
    %926 = vmatprep.subr.mxu0 0.0
    %927 = vmatpush1.msra.mxu0 0.0
    %928 = vmatprep.mubr.f32.mxu0 0.0
    %929 = vmatmul.mubr.f32.gmra.mrb[0].mxu0 %v764
    %v930 = vpop.f32.mrb[0].mxu0
    %v931 = vadd.f32 0.0, %v930
    %v932 = vpop.f32.mrb[0].mxu0
    %v933 = vadd.f32 0.0, %v932
    %934 = vmatprep.mubr.f32.mxu0 0.0
    %935 = vmatmul.mubr.f32.gmra.mrb[0].mxu0 %v767
    %v936 = vpop.f32.mrb[0].mxu0
    %v937 = vadd.f32 0.0, %v936
    %v938 = vpop.f32.mrb[0].mxu0
    %v939 = vadd.f32 0.0, %v938
    %940 = vmatprep.mubr.f32.mxu0 0.0
    %941 = vmatmul.mubr.f32.gmra.mrb[0].mxu0 %v770
    %v942 = vpop.f32.mrb[0].mxu0
    %v943 = vadd.f32 0.0, %v942
    %v944 = vpop.f32.mrb[0].mxu0
    %v945 = vadd.f32 0.0, %v944
    %946 = vmatprep.mubr.f32.mxu0 0.0
    %947 = vmatmul.mubr.f32.gmra.mrb[0].mxu0 %v773
    %v948 = vpop.f32.mrb[0].mxu0
    %v949 = vadd.f32 0.0, %v948
    %v950 = vpop.f32.mrb[0].mxu0
    %v951 = vadd.f32 0.0, %v950
    %952 = vdwg.mxu0
    %v953 = vand.u32 %v517, 3
    %v954 = vand.u32 %v518, 3
    %v955 = vand.u32 %v519, 3
    %vm956 = vcmp.eq.s32.totalorder %v953, 0
    %vm957 = vcmp.eq.s32.totalorder %v954, 0
    %vm958 = vcmp.eq.s32.totalorder %v955, 0
    %v959 = vsel %vm956, 1, 0
    %v960 = vsel %vm957, 1, 0
    %v961 = vsel %vm958, 1, 0
    %vm962 = vcmp.eq.s32.totalorder %v959, 1
    %vm963 = vcmp.eq.s32.totalorder %v960, 1
    %vm964 = vcmp.eq.s32.totalorder %v961, 1
    %v965 = vsel %vm387, %v842, 0.0
    %v966 = vsel %vm962, %v844, 0.0
    %v967 = vsel %vm963, %v931, 0.0
    %v968 = vsel %vm964, %v933, 0.0
    %vm969 = vcmp.eq.s32.totalorder %v953, 1
    %vm970 = vcmp.eq.s32.totalorder %v954, 1
    %vm971 = vcmp.eq.s32.totalorder %v955, 1
    %v972 = vsel %vm969, 1, 0
    %v973 = vsel %vm970, 1, 0
    %v974 = vsel %vm971, 1, 0
    %vm975 = vcmp.eq.s32.totalorder %v972, 1
    %vm976 = vcmp.eq.s32.totalorder %v973, 1
    %vm977 = vcmp.eq.s32.totalorder %v974, 1
    %v978 = vsel %vm391, %v848, 0.0
    %v979 = vsel %vm975, %v850, 0.0
    %v980 = vsel %vm976, %v937, 0.0
    %v981 = vsel %vm977, %v939, 0.0
    %v982 = vadd.f32 %v965, %v978
    %v983 = vadd.f32 %v966, %v979
    %v984 = vadd.f32 %v967, %v980
    %v985 = vadd.f32 %v968, %v981
    %vm986 = vcmp.eq.s32.totalorder %v953, 2
    %vm987 = vcmp.eq.s32.totalorder %v954, 2
    %vm988 = vcmp.eq.s32.totalorder %v955, 2
    %v989 = vsel %vm986, 1, 0
    %v990 = vsel %vm987, 1, 0
    %v991 = vsel %vm988, 1, 0
    %vm992 = vcmp.eq.s32.totalorder %v989, 1
    %vm993 = vcmp.eq.s32.totalorder %v990, 1
    %vm994 = vcmp.eq.s32.totalorder %v991, 1
    %v995 = vsel %vm396, %v854, 0.0
    %v996 = vsel %vm992, %v856, 0.0
    %v997 = vsel %vm993, %v943, 0.0
    %v998 = vsel %vm994, %v945, 0.0
    %v999 = vadd.f32 %v982, %v995
    %v1000 = vadd.f32 %v983, %v996
    %v1001 = vadd.f32 %v984, %v997
    %v1002 = vadd.f32 %v985, %v998
    %vm1003 = vcmp.eq.s32.totalorder %v953, 3
    %vm1004 = vcmp.eq.s32.totalorder %v954, 3
    %vm1005 = vcmp.eq.s32.totalorder %v955, 3
    %v1006 = vsel %vm1003, 1, 0
    %v1007 = vsel %vm1004, 1, 0
    %v1008 = vsel %vm1005, 1, 0
    %vm1009 = vcmp.eq.s32.totalorder %v1006, 1
    %vm1010 = vcmp.eq.s32.totalorder %v1007, 1
    %vm1011 = vcmp.eq.s32.totalorder %v1008, 1
    %v1012 = vsel %vm401, %v860, 0.0
    %v1013 = vsel %vm1009, %v862, 0.0
    %v1014 = vsel %vm1010, %v949, 0.0
    %v1015 = vsel %vm1011, %v951, 0.0
    %v1016 = vadd.f32 %v999, %v1012
    %v1017 = vadd.f32 %v1000, %v1013
    %v1018 = vadd.f32 %v1001, %v1014
    %v1019 = vadd.f32 %v1002, %v1015
    %v1020 = vld [vmem:[%s9] sm:$0xff]
    %1022 = vset.pattern.permute.xlu0 0
    %1023 = vperm.xlu0 %1022, %v1020
    %v1024 = vpop.permute.xlu0 %1023
    %v1026 = vadd.f32 %v1016, %v1024
    %v1027 = vadd.f32 %v1017, %v1024
    %v1028 = vadd.f32 %v1018, %v1024
    %v1029 = vadd.f32 %v1019, %v1024
    %vm1030 = vcmp.gt.f32.partialorder %v1026, 0.0
    %vm1031 = vcmp.gt.f32.partialorder %v1027, 0.0
    %vm1032 = vcmp.gt.f32.partialorder %v1028, 0.0
    %vm1033 = vcmp.gt.f32.partialorder %v1029, 0.0
    %v1034 = vmul.f32 %v1026, 0.1
    %v1035 = vmul.f32 %v1027, 0.1
    %v1036 = vmul.f32 %v1028, 0.1
    %v1037 = vmul.f32 %v1029, 0.1
    %v1038 = vsel %vm1030, %v1026, %v1034
    %v1039 = vsel %vm1031, %v1027, %v1035
    %v1040 = vsel %vm1032, %v1028, %v1036
    %v1041 = vsel %vm1033, %v1029, %v1037
    %vm1042 = vcmp.lt.s32.totalorder %v520, 133
    %vm1043 = vcmp.lt.s32.totalorder %v521, 133
    %vm1044 = vcmp.lt.s32.totalorder %v522, 133
    %vm1045 = vcmp.lt.s32.totalorder %v523, 133
    %v1046 = vsel %vm1042, 1, 0
    %v1047 = vsel %vm1043, 1, 0
    %v1048 = vsel %vm1044, 1, 0
    %v1049 = vsel %vm1045, 1, 0
    %vm1050 = vcmp.eq.s32.totalorder %v1046, 1
    %vm1051 = vcmp.eq.s32.totalorder %v1047, 1
    %vm1052 = vcmp.eq.s32.totalorder %v1048, 1
    %vm1053 = vcmp.eq.s32.totalorder %v1049, 1
    %v1054 = vsel %vm1050, %v1038, 0.0
    %v1055 = vsel %vm1051, %v1039, 0.0
    %v1056 = vsel %vm1052, %v1040, 0.0
    %v1057 = vsel %vm1053, %v1041, 0.0
    %vm1058 = vcmp.ge.s32.totalorder %v520, 1
    %vm1059 = vcmp.ge.s32.totalorder %v521, 1
    %vm1060 = vcmp.ge.s32.totalorder %v522, 1
    %vm1061 = vcmp.ge.s32.totalorder %v523, 1
    %1062 = vrot.lane.b32.xlu0 %v1054, 1
    %v1063 = vpop.permute.xlu0 %1062
    %1064 = vrot.lane.b32.xlu0 %v1055, 1
    %v1065 = vpop.permute.xlu0 %1064
    %1066 = vrot.lane.b32.xlu0 %v1056, 1
    %v1067 = vpop.permute.xlu0 %1066
    %1068 = vrot.lane.b32.xlu0 %v1057, 1
    %v1069 = vpop.permute.xlu0 %1068
    %vm1070 = vcmp.lt.s32.totalorder %v187, 1
    %v1071 = vsel %vm1070, %v1067, %v1069
    %v1072 = vsel %vm1070, %v1065, %v1067
    %v1073 = vsel %vm1070, %v1063, %v1065
    %v1074 = vsel %vm1070, %v1069, %v1063
    %v1075 = vsel %vm1058, 1, 0
    %v1076 = vsel %vm1059, 1, 0
    %v1077 = vsel %vm1060, 1, 0
    %v1078 = vsel %vm1061, 1, 0
    %vm1079 = vcmp.eq.s32.totalorder %v1075, 1
    %vm1080 = vcmp.eq.s32.totalorder %v1076, 1
    %vm1081 = vcmp.eq.s32.totalorder %v1077, 1
    %vm1082 = vcmp.eq.s32.totalorder %v1078, 1
    %v1083 = vsel %vm1079, %v1074, 0.0
    %v1084 = vsel %vm1080, %v1073, 0.0
    %v1085 = vsel %vm1081, %v1072, 0.0
    %v1086 = vsel %vm1082, %v1071, 0.0
    %vm1087 = vcmp.le.s32.totalorder %v520, 254
    %vm1088 = vcmp.le.s32.totalorder %v521, 254
    %vm1089 = vcmp.le.s32.totalorder %v522, 254
    %vm1090 = vcmp.le.s32.totalorder %v523, 254
    %1091 = vrot.lane.b32.xlu0 %v1054, 127
    %v1092 = vpop.permute.xlu0 %1091
    %1093 = vrot.lane.b32.xlu0 %v1055, 127
    %v1094 = vpop.permute.xlu0 %1093
    %1095 = vrot.lane.b32.xlu0 %v1056, 127
    %v1096 = vpop.permute.xlu0 %1095
    %1097 = vrot.lane.b32.xlu0 %v1057, 127
    %v1098 = vpop.permute.xlu0 %1097
    %vm1099 = vcmp.lt.s32.totalorder %v187, 127
    %v1100 = vsel %vm1099, %v1096, %v1098
    %v1101 = vsel %vm1099, %v1094, %v1096
    %v1102 = vsel %vm1099, %v1092, %v1094
    %v1103 = vsel %vm1099, %v1098, %v1092
    %v1104 = vsel %vm1087, 1, 0
    %v1105 = vsel %vm1088, 1, 0
    %v1106 = vsel %vm1089, 1, 0
    %v1107 = vsel %vm1090, 1, 0
    %vm1108 = vcmp.eq.s32.totalorder %v1104, 1
    %vm1109 = vcmp.eq.s32.totalorder %v1105, 1
    %vm1110 = vcmp.eq.s32.totalorder %v1106, 1
    %vm1111 = vcmp.eq.s32.totalorder %v1107, 1
    %v1112 = vsel %vm1108, %v1102, 0.0
    %v1113 = vsel %vm1109, %v1101, 0.0
    %v1114 = vsel %vm1110, %v1100, 0.0
    %v1115 = vsel %vm1111, %v1103, 0.0
    %v1116 = vld [vmem:[#allocation13] sm:$0xff]
    %v1117 = vld [vmem:[%s11] sm:$0xff]
    %1119 = vset.pattern.permute.xlu0 0
    %1120 = vperm.xlu0 %1119, %v1117
    %v1121 = vpop.permute.xlu0 %1120
    %v1124 = vsel %vm437, %v1116, 0
    %1126 = vmatprep.subr.mxu0 %v1084
    %1127 = vmatpush1.msra.mxu0 %v1083
    %1128 = vmatprep.subr.mxu0 %v1055
    %1129 = vmatpush1.msra.mxu0 %v1054
    %1130 = vmatprep.subr.mxu0 %v1113
    %1131 = vmatpush1.msra.mxu0 %v1112
    %1132 = vmatprep.subr.mxu0 0.0
    %1133 = vmatpush1.msra.mxu0 0.0
    %1134 = vmatprep.subr.mxu0 0.0
    %1135 = vmatpush1.msra.mxu0 0.0
    %1136 = vmatprep.subr.mxu0 0.0
    %1137 = vmatpush1.msra.mxu0 0.0
    %1138 = vmatprep.subr.mxu0 0.0
    %1139 = vmatpush1.msra.mxu0 0.0
    %1140 = vmatprep.subr.mxu0 0.0
    %1141 = vmatpush1.msra.mxu0 0.0
    %1142 = vmatprep.subr.mxu0 0.0
    %1143 = vmatpush1.msra.mxu0 0.0
    %1144 = vmatprep.subr.mxu0 0.0
    %1145 = vmatpush1.msra.mxu0 0.0
    %1146 = vmatprep.subr.mxu0 0.0
    %1147 = vmatpush1.msra.mxu0 0.0
    %1148 = vmatprep.subr.mxu0 0.0
    %1149 = vmatpush1.msra.mxu0 0.0
    %1150 = vmatprep.subr.mxu0 0.0
    %1151 = vmatpush1.msra.mxu0 0.0
    %1152 = vmatprep.subr.mxu0 0.0
    %1153 = vmatpush1.msra.mxu0 0.0
    %1154 = vmatprep.subr.mxu0 0.0
    %1155 = vmatpush1.msra.mxu0 0.0
    %1156 = vmatprep.subr.mxu0 0.0
    %1157 = vmatpush1.msra.mxu0 0.0
    %1158 = vmatprep.subr.mxu0 0.0
    %1159 = vmatpush1.msra.mxu0 0.0
    %1160 = vmatprep.subr.mxu0 0.0
    %1161 = vmatpush1.msra.mxu0 0.0
    %1162 = vmatprep.subr.mxu0 0.0
    %1163 = vmatpush1.msra.mxu0 0.0
    %1164 = vmatprep.subr.mxu0 0.0
    %1165 = vmatpush1.msra.mxu0 0.0
    %1166 = vmatprep.subr.mxu0 0.0
    %1167 = vmatpush1.msra.mxu0 0.0
    %1168 = vmatprep.subr.mxu0 0.0
    %1169 = vmatpush1.msra.mxu0 0.0
    %1170 = vmatprep.subr.mxu0 0.0
    %1171 = vmatpush1.msra.mxu0 0.0
    %1172 = vmatprep.subr.mxu0 0.0
    %1173 = vmatpush1.msra.mxu0 0.0
    %1174 = vmatprep.subr.mxu0 0.0
    %1175 = vmatpush1.msra.mxu0 0.0
    %1176 = vmatprep.subr.mxu0 0.0
    %1177 = vmatpush1.msra.mxu0 0.0
    %1178 = vmatprep.subr.mxu0 0.0
    %1179 = vmatpush1.msra.mxu0 0.0
    %1180 = vmatprep.subr.mxu0 0.0
    %1181 = vmatpush1.msra.mxu0 0.0
    %1182 = vmatprep.subr.mxu0 0.0
    %1183 = vmatpush1.msra.mxu0 0.0
    %1184 = vmatprep.subr.mxu0 0.0
    %1185 = vmatpush1.msra.mxu0 0.0
    %1186 = vmatprep.subr.mxu0 0.0
    %1187 = vmatpush1.msra.mxu0 0.0
    %1188 = vmatprep.subr.mxu0 0.0
    %1189 = vmatpush1.msra.mxu0 0.0
    %1190 = vmatprep.mubr.f32.mxu0 0.0
    %1191 = vmatmul.mubr.f32.gmra.mrb[0].mxu0 %v1124
    %v1192 = vpop.f32.mrb[0].mxu0
    %v1193 = vadd.f32 %v1121, %v1192
    %v1194 = vpop.f32.mrb[0].mxu0
    %v1195 = vadd.f32 %v1121, %v1194
    %1196 = vdwg.mxu0
    %1197 = vmatprep.subr.mxu0 %v1086
    %1198 = vmatpush1.msra.mxu0 %v1085
    %1199 = vmatprep.subr.mxu0 %v1057
    %1200 = vmatpush1.msra.mxu0 %v1056
    %1201 = vmatprep.subr.mxu0 %v1115
    %1202 = vmatpush1.msra.mxu0 %v1114
    %1203 = vmatprep.subr.mxu0 0.0
    %1204 = vmatpush1.msra.mxu0 0.0
    %1205 = vmatprep.subr.mxu0 0.0
    %1206 = vmatpush1.msra.mxu0 0.0
    %1207 = vmatprep.subr.mxu0 0.0
    %1208 = vmatpush1.msra.mxu0 0.0
    %1209 = vmatprep.subr.mxu0 0.0
    %1210 = vmatpush1.msra.mxu0 0.0
    %1211 = vmatprep.subr.mxu0 0.0
    %1212 = vmatpush1.msra.mxu0 0.0
    %1213 = vmatprep.subr.mxu0 0.0
    %1214 = vmatpush1.msra.mxu0 0.0
    %1215 = vmatprep.subr.mxu0 0.0
    %1216 = vmatpush1.msra.mxu0 0.0
    %1217 = vmatprep.subr.mxu0 0.0
    %1218 = vmatpush1.msra.mxu0 0.0
    %1219 = vmatprep.subr.mxu0 0.0
    %1220 = vmatpush1.msra.mxu0 0.0
    %1221 = vmatprep.subr.mxu0 0.0
    %1222 = vmatpush1.msra.mxu0 0.0
    %1223 = vmatprep.subr.mxu0 0.0
    %1224 = vmatpush1.msra.mxu0 0.0
    %1225 = vmatprep.subr.mxu0 0.0
    %1226 = vmatpush1.msra.mxu0 0.0
    %1227 = vmatprep.subr.mxu0 0.0
    %1228 = vmatpush1.msra.mxu0 0.0
    %1229 = vmatprep.subr.mxu0 0.0
    %1230 = vmatpush1.msra.mxu0 0.0
    %1231 = vmatprep.subr.mxu0 0.0
    %1232 = vmatpush1.msra.mxu0 0.0
    %1233 = vmatprep.subr.mxu0 0.0
    %1234 = vmatpush1.msra.mxu0 0.0
    %1235 = vmatprep.subr.mxu0 0.0
    %1236 = vmatpush1.msra.mxu0 0.0
    %1237 = vmatprep.subr.mxu0 0.0
    %1238 = vmatpush1.msra.mxu0 0.0
    %1239 = vmatprep.subr.mxu0 0.0
    %1240 = vmatpush1.msra.mxu0 0.0
    %1241 = vmatprep.subr.mxu0 0.0
    %1242 = vmatpush1.msra.mxu0 0.0
    %1243 = vmatprep.subr.mxu0 0.0
    %1244 = vmatpush1.msra.mxu0 0.0
    %1245 = vmatprep.subr.mxu0 0.0
    %1246 = vmatpush1.msra.mxu0 0.0
    %1247 = vmatprep.subr.mxu0 0.0
    %1248 = vmatpush1.msra.mxu0 0.0
    %1249 = vmatprep.subr.mxu0 0.0
    %1250 = vmatpush1.msra.mxu0 0.0
    %1251 = vmatprep.subr.mxu0 0.0
    %1252 = vmatpush1.msra.mxu0 0.0
    %1253 = vmatprep.subr.mxu0 0.0
    %1254 = vmatpush1.msra.mxu0 0.0
    %1255 = vmatprep.subr.mxu0 0.0
    %1256 = vmatpush1.msra.mxu0 0.0
    %1257 = vmatprep.subr.mxu0 0.0
    %1258 = vmatpush1.msra.mxu0 0.0
    %1259 = vmatprep.subr.mxu0 0.0
    %1260 = vmatpush1.msra.mxu0 0.0
    %1261 = vmatprep.mubr.f32.mxu0 0.0
    %1262 = vmatmul.mubr.f32.gmra.mrb[0].mxu0 %v1124
    %v1263 = vpop.f32.mrb[0].mxu0
    %v1264 = vadd.f32 %v1121, %v1263
    %v1265 = vpop.f32.mrb[0].mxu0
    %v1266 = vadd.f32 %v1121, %v1265
    %1267 = vdwg.mxu0
    %v1268 = vld [vmem:[#allocation14] sm:$0xff]
    %v1269 = vld [vmem:[#allocation14 + $0x8] sm:$0xff]
    %v1270 = vld [vmem:[#allocation14 + $0x10] sm:$0xff]
    %v1271 = vld [vmem:[#allocation14 + $0x18] sm:$0xff]
    %v1272 = vsub.f32 %v1268, %v1193
    %v1273 = vsub.f32 %v1269, %v1195
    %v1274 = vsub.f32 %v1270, %v1264
    %v1275 = vsub.f32 %v1271, %v1266
    %vm1276 = vcmp.gt.f32.partialorder %v1272, 0.0
    %vm1277 = vcmp.gt.f32.partialorder %v1273, 0.0
    %vm1278 = vcmp.gt.f32.partialorder %v1274, 0.0
    %vm1279 = vcmp.gt.f32.partialorder %v1275, 0.0
    %v1280 = vmul.f32 %v1272, 0.1
    %v1281 = vmul.f32 %v1273, 0.1
    %v1282 = vmul.f32 %v1274, 0.1
    %v1283 = vmul.f32 %v1275, 0.1
    %v1284 = vsel %vm1276, %v1272, %v1280
    %v1285 = vsel %vm1277, %v1273, %v1281
    %v1286 = vsel %vm1278, %v1274, %v1282
    %v1287 = vsel %vm1279, %v1275, %v1283
    %1288 = vst [vmem:[#allocation18] sm:$0xff] %v1284
    %1289 = vst [vmem:[#allocation18 + $0x8] sm:$0xff] %v1285
    %1290 = vst [vmem:[#allocation18 + $0x10] sm:$0xff] %v1286
    %1291 = vst [vmem:[#allocation18 + $0x18] sm:$0xff] %v1287
    %v1292 = vadd.s32 %v187, 512
    %v1293 = vadd.s32 %v187, 640
    %v1294 = vadd.s32 %v187, 768
    %v1295 = vadd.s32 %v187, 896
    %v1296 = vand.u32 %v187, 511
    %v1297 = vand.u32 %v517, 511
    %v1298 = vand.u32 %v518, 511
    %v1299 = vand.u32 %v519, 511
    %v1300 = vand.u32 %v1292, 511
    %v1301 = vand.u32 %v1293, 511
    %v1302 = vand.u32 %v1294, 511
    %v1303 = vand.u32 %v1295, 511
    %v1304 = vld [vmem:[#allocation16] sm:$0xff]
    %v1305 = vld [vmem:[#allocation16 + $0x8] sm:$0xff]
    %v1306 = vld [vmem:[#allocation16 + $0x10] sm:$0xff]
    %v1307 = vld [vmem:[#allocation16 + $0x18] sm:$0xff]
    %v1308 = vld [vmem:[#allocation16 + $0x20] sm:$0xff]
    %v1309 = vld [vmem:[#allocation16 + $0x28] sm:$0xff]
    %v1310 = vld [vmem:[#allocation16 + $0x30] sm:$0xff]
    %v1311 = vld [vmem:[#allocation16 + $0x38] sm:$0xff]
    %v1312 = vld [vmem:[#allocation16 + $0x40] sm:$0xff]
    %v1313 = vld [vmem:[#allocation16 + $0x48] sm:$0xff]
    %v1314 = vld [vmem:[#allocation16 + $0x50] sm:$0xff]
    %v1315 = vld [vmem:[#allocation16 + $0x58] sm:$0xff]
    %v1316 = vld [vmem:[#allocation16 + $0x60] sm:$0xff]
    %v1317 = vld [vmem:[#allocation16 + $0x68] sm:$0xff]
    %v1318 = vld [vmem:[#allocation16 + $0x70] sm:$0xff]
    %v1319 = vld [vmem:[#allocation16 + $0x78] sm:$0xff]
    %v1320 = vld [vmem:[#allocation16 + $0x80] sm:$0xff]
    %v1321 = vld [vmem:[#allocation16 + $0x88] sm:$0xff]
    %v1322 = vld [vmem:[#allocation16 + $0x90] sm:$0xff]
    %v1323 = vld [vmem:[#allocation16 + $0x98] sm:$0xff]
    %v1324 = vld [vmem:[#allocation16 + $0xa0] sm:$0xff]
    %v1325 = vld [vmem:[#allocation16 + $0xa8] sm:$0xff]
    %v1326 = vld [vmem:[#allocation16 + $0xb0] sm:$0xff]
    %v1327 = vld [vmem:[#allocation16 + $0xb8] sm:$0xff]
    %v1328 = vld [vmem:[#allocation16 + $0xc0] sm:$0xff]
    %v1329 = vld [vmem:[#allocation16 + $0xc8] sm:$0xff]
    %v1330 = vld [vmem:[#allocation16 + $0xd0] sm:$0xff]
    %v1331 = vld [vmem:[#allocation16 + $0xd8] sm:$0xff]
    %v1332 = vld [vmem:[#allocation16 + $0xe0] sm:$0xff]
    %v1333 = vld [vmem:[#allocation16 + $0xe8] sm:$0xff]
    %v1334 = vld [vmem:[#allocation16 + $0xf0] sm:$0xff]
    %v1335 = vld [vmem:[#allocation16 + $0xf8] sm:$0xff]
    %v1336 = vld [vmem:[#allocation16 + $0x100] sm:$0xff]
    %v1337 = vld [vmem:[#allocation16 + $0x108] sm:$0xff]
    %v1338 = vld [vmem:[#allocation16 + $0x110] sm:$0xff]
    %v1339 = vld [vmem:[#allocation16 + $0x118] sm:$0xff]
    %v1340 = vld [vmem:[#allocation16 + $0x120] sm:$0xff]
    %v1341 = vld [vmem:[#allocation16 + $0x128] sm:$0xff]
    %v1342 = vld [vmem:[#allocation16 + $0x130] sm:$0xff]
    %v1343 = vld [vmem:[#allocation16 + $0x138] sm:$0xff]
    %v1344 = vld [vmem:[#allocation16 + $0x140] sm:$0xff]
    %v1345 = vld [vmem:[#allocation16 + $0x148] sm:$0xff]
    %v1346 = vld [vmem:[#allocation16 + $0x150] sm:$0xff]
    %v1347 = vld [vmem:[#allocation16 + $0x158] sm:$0xff]
    %v1348 = vld [vmem:[#allocation16 + $0x160] sm:$0xff]
    %v1349 = vld [vmem:[#allocation16 + $0x168] sm:$0xff]
    %v1350 = vld [vmem:[#allocation16 + $0x170] sm:$0xff]
    %v1351 = vld [vmem:[#allocation16 + $0x178] sm:$0xff]
    %v1352 = vld [vmem:[#allocation16 + $0x180] sm:$0xff]
    %v1353 = vld [vmem:[#allocation16 + $0x188] sm:$0xff]
    %v1354 = vld [vmem:[#allocation16 + $0x190] sm:$0xff]
    %v1355 = vld [vmem:[#allocation16 + $0x198] sm:$0xff]
    %v1356 = vld [vmem:[#allocation16 + $0x1a0] sm:$0xff]
    %v1357 = vld [vmem:[#allocation16 + $0x1a8] sm:$0xff]
    %v1358 = vld [vmem:[#allocation16 + $0x1b0] sm:$0xff]
    %v1359 = vld [vmem:[#allocation16 + $0x1b8] sm:$0xff]
    %v1360 = vld [vmem:[#allocation16 + $0x1c0] sm:$0xff]
    %v1361 = vld [vmem:[#allocation16 + $0x1c8] sm:$0xff]
    %v1362 = vld [vmem:[#allocation16 + $0x1d0] sm:$0xff]
    %v1363 = vld [vmem:[#allocation16 + $0x1d8] sm:$0xff]
    %v1364 = vld [vmem:[#allocation16 + $0x1e0] sm:$0xff]
    %v1365 = vld [vmem:[#allocation16 + $0x1e8] sm:$0xff]
    %v1366 = vld [vmem:[#allocation16 + $0x1f0] sm:$0xff]
    %v1367 = vld [vmem:[#allocation16 + $0x1f8] sm:$0xff]
    %v1368 = vld [vmem:[#allocation16 + $0x200] sm:$0xff]
    %v1369 = vld [vmem:[#allocation16 + $0x208] sm:$0xff]
    %v1370 = vld [vmem:[#allocation16 + $0x210] sm:$0xff]
    %v1371 = vld [vmem:[#allocation16 + $0x218] sm:$0xff]
    %v1372 = vld [vmem:[#allocation16 + $0x220] sm:$0xff]
    %v1373 = vld [vmem:[#allocation16 + $0x228] sm:$0xff]
    %v1374 = vld [vmem:[#allocation16 + $0x230] sm:$0xff]
    %v1375 = vld [vmem:[#allocation16 + $0x238] sm:$0xff]
    %v1376 = vld [vmem:[#allocation16 + $0x240] sm:$0xff]
    %v1377 = vld [vmem:[#allocation16 + $0x248] sm:$0xff]
    %v1378 = vld [vmem:[#allocation16 + $0x250] sm:$0xff]
    %v1379 = vld [vmem:[#allocation16 + $0x258] sm:$0xff]
    %v1380 = vld [vmem:[#allocation16 + $0x260] sm:$0xff]
    %v1381 = vld [vmem:[#allocation16 + $0x268] sm:$0xff]
    %v1382 = vld [vmem:[#allocation16 + $0x270] sm:$0xff]
    %v1383 = vld [vmem:[#allocation16 + $0x278] sm:$0xff]
    %v1384 = vld [vmem:[#allocation16 + $0x280] sm:$0xff]
    %v1385 = vld [vmem:[#allocation16 + $0x288] sm:$0xff]
    %v1386 = vld [vmem:[#allocation16 + $0x290] sm:$0xff]
    %v1387 = vld [vmem:[#allocation16 + $0x298] sm:$0xff]
    %v1388 = vld [vmem:[#allocation16 + $0x2a0] sm:$0xff]
    %v1389 = vld [vmem:[#allocation16 + $0x2a8] sm:$0xff]
    %v1390 = vld [vmem:[#allocation16 + $0x2b0] sm:$0xff]
    %v1391 = vld [vmem:[#allocation16 + $0x2b8] sm:$0xff]
    %v1392 = vld [vmem:[#allocation16 + $0x2c0] sm:$0xff]
    %v1393 = vld [vmem:[#allocation16 + $0x2c8] sm:$0xff]
    %v1394 = vld [vmem:[#allocation16 + $0x2d0] sm:$0xff]
    %v1395 = vld [vmem:[#allocation16 + $0x2d8] sm:$0xff]
    %v1396 = vld [vmem:[#allocation16 + $0x2e0] sm:$0xff]
    %v1397 = vld [vmem:[#allocation16 + $0x2e8] sm:$0xff]
    %v1398 = vld [vmem:[#allocation16 + $0x2f0] sm:$0xff]
    %v1399 = vld [vmem:[#allocation16 + $0x2f8] sm:$0xff]
    %v1400 = vld [vmem:[#allocation16 + $0x300] sm:$0xff]
    %v1401 = vld [vmem:[#allocation16 + $0x308] sm:$0xff]
    %v1402 = vld [vmem:[#allocation16 + $0x310] sm:$0xff]
    %v1403 = vld [vmem:[#allocation16 + $0x318] sm:$0xff]
    %v1404 = vld [vmem:[#allocation16 + $0x320] sm:$0xff]
    %v1405 = vld [vmem:[#allocation16 + $0x328] sm:$0xff]
    %v1406 = vld [vmem:[#allocation16 + $0x330] sm:$0xff]
    %v1407 = vld [vmem:[#allocation16 + $0x338] sm:$0xff]
    %v1408 = vld [vmem:[#allocation16 + $0x340] sm:$0xff]
    %v1409 = vld [vmem:[#allocation16 + $0x348] sm:$0xff]
    %v1410 = vld [vmem:[#allocation16 + $0x350] sm:$0xff]
    %v1411 = vld [vmem:[#allocation16 + $0x358] sm:$0xff]
    %v1412 = vld [vmem:[#allocation16 + $0x360] sm:$0xff]
    %v1413 = vld [vmem:[#allocation16 + $0x368] sm:$0xff]
    %v1414 = vld [vmem:[#allocation16 + $0x370] sm:$0xff]
    %v1415 = vld [vmem:[#allocation16 + $0x378] sm:$0xff]
    %v1416 = vld [vmem:[#allocation16 + $0x380] sm:$0xff]
    %v1417 = vld [vmem:[#allocation16 + $0x388] sm:$0xff]
    %v1418 = vld [vmem:[#allocation16 + $0x390] sm:$0xff]
    %v1419 = vld [vmem:[#allocation16 + $0x398] sm:$0xff]
    %v1420 = vld [vmem:[#allocation16 + $0x3a0] sm:$0xff]
    %v1421 = vld [vmem:[#allocation16 + $0x3a8] sm:$0xff]
    %v1422 = vld [vmem:[#allocation16 + $0x3b0] sm:$0xff]
    %v1423 = vld [vmem:[#allocation16 + $0x3b8] sm:$0xff]
    %v1424 = vld [vmem:[#allocation16 + $0x3c0] sm:$0xff]
    %v1425 = vld [vmem:[#allocation16 + $0x3c8] sm:$0xff]
    %v1426 = vld [vmem:[#allocation16 + $0x3d0] sm:$0xff]
    %v1427 = vld [vmem:[#allocation16 + $0x3d8] sm:$0xff]
    %v1428 = vld [vmem:[#allocation16 + $0x3e0] sm:$0xff]
    %v1429 = vld [vmem:[#allocation16 + $0x3e8] sm:$0xff]
    %v1430 = vld [vmem:[#allocation16 + $0x3f0] sm:$0xff]
    %v1431 = vld [vmem:[#allocation16 + $0x3f8] sm:$0xff]
    %v1432 = vld [vmem:[#allocation16 + $0x400] sm:$0xff]
    %v1433 = vld [vmem:[#allocation16 + $0x408] sm:$0xff]
    %v1434 = vld [vmem:[#allocation16 + $0x410] sm:$0xff]
    %v1435 = vld [vmem:[#allocation16 + $0x418] sm:$0xff]
    %v1436 = vld [vmem:[#allocation16 + $0x420] sm:$0xff]
    %v1437 = vld [vmem:[#allocation16 + $0x428] sm:$0xff]
    %v1438 = vld [vmem:[#allocation16 + $0x430] sm:$0xff]
    %v1439 = vld [vmem:[#allocation16 + $0x438] sm:$0xff]
    %v1440 = vld [vmem:[#allocation16 + $0x440] sm:$0xff]
    %v1441 = vld [vmem:[#allocation16 + $0x448] sm:$0xff]
    %v1442 = vld [vmem:[#allocation16 + $0x450] sm:$0xff]
    %v1443 = vld [vmem:[#allocation16 + $0x458] sm:$0xff]
    %v1444 = vld [vmem:[#allocation16 + $0x460] sm:$0xff]
    %v1445 = vld [vmem:[#allocation16 + $0x468] sm:$0xff]
    %v1446 = vld [vmem:[#allocation16 + $0x470] sm:$0xff]
    %v1447 = vld [vmem:[#allocation16 + $0x478] sm:$0xff]
    %v1448 = vld [vmem:[#allocation16 + $0x480] sm:$0xff]
    %v1449 = vld [vmem:[#allocation16 + $0x488] sm:$0xff]
    %v1450 = vld [vmem:[#allocation16 + $0x490] sm:$0xff]
    %v1451 = vld [vmem:[#allocation16 + $0x498] sm:$0xff]
    %v1452 = vld [vmem:[#allocation16 + $0x4a0] sm:$0xff]
    %v1453 = vld [vmem:[#allocation16 + $0x4a8] sm:$0xff]
    %v1454 = vld [vmem:[#allocation16 + $0x4b0] sm:$0xff]
    %v1455 = vld [vmem:[#allocation16 + $0x4b8] sm:$0xff]
    %v1456 = vld [vmem:[#allocation16 + $0x4c0] sm:$0xff]
    %v1457 = vld [vmem:[#allocation16 + $0x4c8] sm:$0xff]
    %v1458 = vld [vmem:[#allocation16 + $0x4d0] sm:$0xff]
    %v1459 = vld [vmem:[#allocation16 + $0x4d8] sm:$0xff]
    %v1460 = vld [vmem:[#allocation16 + $0x4e0] sm:$0xff]
    %v1461 = vld [vmem:[#allocation16 + $0x4e8] sm:$0xff]
    %v1462 = vld [vmem:[#allocation16 + $0x4f0] sm:$0xff]
    %v1463 = vld [vmem:[#allocation16 + $0x4f8] sm:$0xff]
    %v1464 = vld [vmem:[#allocation16 + $0x500] sm:$0xff]
    %v1465 = vld [vmem:[#allocation16 + $0x508] sm:$0xff]
    %v1466 = vld [vmem:[#allocation16 + $0x510] sm:$0xff]
    %v1467 = vld [vmem:[#allocation16 + $0x518] sm:$0xff]
    %v1468 = vld [vmem:[#allocation16 + $0x520] sm:$0xff]
    %v1469 = vld [vmem:[#allocation16 + $0x528] sm:$0xff]
    %v1470 = vld [vmem:[#allocation16 + $0x530] sm:$0xff]
    %v1471 = vld [vmem:[#allocation16 + $0x538] sm:$0xff]
    %v1472 = vld [vmem:[#allocation16 + $0x540] sm:$0xff]
    %v1473 = vld [vmem:[#allocation16 + $0x548] sm:$0xff]
    %v1474 = vld [vmem:[#allocation16 + $0x550] sm:$0xff]
    %v1475 = vld [vmem:[#allocation16 + $0x558] sm:$0xff]
    %v1476 = vld [vmem:[#allocation16 + $0x560] sm:$0xff]
    %v1477 = vld [vmem:[#allocation16 + $0x568] sm:$0xff]
    %v1478 = vld [vmem:[#allocation16 + $0x570] sm:$0xff]
    %v1479 = vld [vmem:[#allocation16 + $0x578] sm:$0xff]
    %v1480 = vld [vmem:[#allocation16 + $0x580] sm:$0xff]
    %v1481 = vld [vmem:[#allocation16 + $0x588] sm:$0xff]
    %v1482 = vld [vmem:[#allocation16 + $0x590] sm:$0xff]
    %v1483 = vld [vmem:[#allocation16 + $0x598] sm:$0xff]
    %v1484 = vld [vmem:[#allocation16 + $0x5a0] sm:$0xff]
    %v1485 = vld [vmem:[#allocation16 + $0x5a8] sm:$0xff]
    %v1486 = vld [vmem:[#allocation16 + $0x5b0] sm:$0xff]
    %v1487 = vld [vmem:[#allocation16 + $0x5b8] sm:$0xff]
    %v1488 = vld [vmem:[#allocation16 + $0x5c0] sm:$0xff]
    %v1489 = vld [vmem:[#allocation16 + $0x5c8] sm:$0xff]
    %v1490 = vld [vmem:[#allocation16 + $0x5d0] sm:$0xff]
    %v1491 = vld [vmem:[#allocation16 + $0x5d8] sm:$0xff]
    %v1492 = vld [vmem:[#allocation16 + $0x5e0] sm:$0xff]
    %v1493 = vld [vmem:[#allocation16 + $0x5e8] sm:$0xff]
    %v1494 = vld [vmem:[#allocation16 + $0x5f0] sm:$0xff]
    %v1495 = vld [vmem:[#allocation16 + $0x5f8] sm:$0xff]
    %v1496 = vld [vmem:[#allocation16 + $0x600] sm:$0xff]
    %v1497 = vld [vmem:[#allocation16 + $0x608] sm:$0xff]
    %v1498 = vld [vmem:[#allocation16 + $0x610] sm:$0xff]
    %v1499 = vld [vmem:[#allocation16 + $0x618] sm:$0xff]
    %v1500 = vld [vmem:[#allocation16 + $0x620] sm:$0xff]
    %v1501 = vld [vmem:[#allocation16 + $0x628] sm:$0xff]
    %v1502 = vld [vmem:[#allocation16 + $0x630] sm:$0xff]
    %v1503 = vld [vmem:[#allocation16 + $0x638] sm:$0xff]
    %v1504 = vld [vmem:[#allocation16 + $0x640] sm:$0xff]
    %v1505 = vld [vmem:[#allocation16 + $0x648] sm:$0xff]
    %v1506 = vld [vmem:[#allocation16 + $0x650] sm:$0xff]
    %v1507 = vld [vmem:[#allocation16 + $0x658] sm:$0xff]
    %v1508 = vld [vmem:[#allocation16 + $0x660] sm:$0xff]
    %v1509 = vld [vmem:[#allocation16 + $0x668] sm:$0xff]
    %v1510 = vld [vmem:[#allocation16 + $0x670] sm:$0xff]
    %v1511 = vld [vmem:[#allocation16 + $0x678] sm:$0xff]
    %v1512 = vld [vmem:[#allocation16 + $0x680] sm:$0xff]
    %v1513 = vld [vmem:[#allocation16 + $0x688] sm:$0xff]
    %v1514 = vld [vmem:[#allocation16 + $0x690] sm:$0xff]
    %v1515 = vld [vmem:[#allocation16 + $0x698] sm:$0xff]
    %v1516 = vld [vmem:[#allocation16 + $0x6a0] sm:$0xff]
    %v1517 = vld [vmem:[#allocation16 + $0x6a8] sm:$0xff]
    %v1518 = vld [vmem:[#allocation16 + $0x6b0] sm:$0xff]
    %v1519 = vld [vmem:[#allocation16 + $0x6b8] sm:$0xff]
    %v1520 = vld [vmem:[#allocation16 + $0x6c0] sm:$0xff]
    %v1521 = vld [vmem:[#allocation16 + $0x6c8] sm:$0xff]
    %v1522 = vld [vmem:[#allocation16 + $0x6d0] sm:$0xff]
    %v1523 = vld [vmem:[#allocation16 + $0x6d8] sm:$0xff]
    %v1524 = vld [vmem:[#allocation16 + $0x6e0] sm:$0xff]
    %v1525 = vld [vmem:[#allocation16 + $0x6e8] sm:$0xff]
    %v1526 = vld [vmem:[#allocation16 + $0x6f0] sm:$0xff]
    %v1527 = vld [vmem:[#allocation16 + $0x6f8] sm:$0xff]
    %v1528 = vld [vmem:[#allocation16 + $0x700] sm:$0xff]
    %v1529 = vld [vmem:[#allocation16 + $0x708] sm:$0xff]
    %v1530 = vld [vmem:[#allocation16 + $0x710] sm:$0xff]
    %v1531 = vld [vmem:[#allocation16 + $0x718] sm:$0xff]
    %v1532 = vld [vmem:[#allocation16 + $0x720] sm:$0xff]
    %v1533 = vld [vmem:[#allocation16 + $0x728] sm:$0xff]
    %v1534 = vld [vmem:[#allocation16 + $0x730] sm:$0xff]
    %v1535 = vld [vmem:[#allocation16 + $0x738] sm:$0xff]
    %v1536 = vld [vmem:[#allocation16 + $0x740] sm:$0xff]
    %v1537 = vld [vmem:[#allocation16 + $0x748] sm:$0xff]
    %v1538 = vld [vmem:[#allocation16 + $0x750] sm:$0xff]
    %v1539 = vld [vmem:[#allocation16 + $0x758] sm:$0xff]
    %v1540 = vld [vmem:[#allocation16 + $0x760] sm:$0xff]
    %v1541 = vld [vmem:[#allocation16 + $0x768] sm:$0xff]
    %v1542 = vld [vmem:[#allocation16 + $0x770] sm:$0xff]
    %v1543 = vld [vmem:[#allocation16 + $0x778] sm:$0xff]
    %v1544 = vld [vmem:[#allocation16 + $0x780] sm:$0xff]
    %v1545 = vld [vmem:[#allocation16 + $0x788] sm:$0xff]
    %v1546 = vld [vmem:[#allocation16 + $0x790] sm:$0xff]
    %v1547 = vld [vmem:[#allocation16 + $0x798] sm:$0xff]
    %v1548 = vld [vmem:[#allocation16 + $0x7a0] sm:$0xff]
    %v1549 = vld [vmem:[#allocation16 + $0x7a8] sm:$0xff]
    %v1550 = vld [vmem:[#allocation16 + $0x7b0] sm:$0xff]
    %v1551 = vld [vmem:[#allocation16 + $0x7b8] sm:$0xff]
    %v1552 = vld [vmem:[#allocation16 + $0x7c0] sm:$0xff]
    %v1553 = vld [vmem:[#allocation16 + $0x7c8] sm:$0xff]
    %v1554 = vld [vmem:[#allocation16 + $0x7d0] sm:$0xff]
    %v1555 = vld [vmem:[#allocation16 + $0x7d8] sm:$0xff]
    %v1556 = vld [vmem:[#allocation16 + $0x7e0] sm:$0xff]
    %v1557 = vld [vmem:[#allocation16 + $0x7e8] sm:$0xff]
    %v1558 = vld [vmem:[#allocation16 + $0x7f0] sm:$0xff]
    %v1559 = vld [vmem:[#allocation16 + $0x7f8] sm:$0xff]
    %v1560 = vld [vmem:[#allocation16 + $0x800] sm:$0xff]
    %v1561 = vld [vmem:[#allocation16 + $0x808] sm:$0xff]
    %v1562 = vld [vmem:[#allocation16 + $0x810] sm:$0xff]
    %v1563 = vld [vmem:[#allocation16 + $0x818] sm:$0xff]
    %v1564 = vld [vmem:[#allocation16 + $0x820] sm:$0xff]
    %v1565 = vld [vmem:[#allocation16 + $0x828] sm:$0xff]
    %v1566 = vld [vmem:[#allocation16 + $0x830] sm:$0xff]
    %v1567 = vld [vmem:[#allocation16 + $0x838] sm:$0xff]
    %v1568 = vld [vmem:[#allocation16 + $0x840] sm:$0xff]
    %v1569 = vld [vmem:[#allocation16 + $0x848] sm:$0xff]
    %v1570 = vld [vmem:[#allocation16 + $0x850] sm:$0xff]
    %v1571 = vld [vmem:[#allocation16 + $0x858] sm:$0xff]
    %v1572 = vld [vmem:[#allocation16 + $0x860] sm:$0xff]
    %v1573 = vld [vmem:[#allocation16 + $0x868] sm:$0xff]
    %v1574 = vld [vmem:[#allocation16 + $0x870] sm:$0xff]
    %v1575 = vld [vmem:[#allocation16 + $0x878] sm:$0xff]
    %v1576 = vld [vmem:[#allocation16 + $0x880] sm:$0xff]
    %v1577 = vld [vmem:[#allocation16 + $0x888] sm:$0xff]
    %v1578 = vld [vmem:[#allocation16 + $0x890] sm:$0xff]
    %v1579 = vld [vmem:[#allocation16 + $0x898] sm:$0xff]
    %v1580 = vld [vmem:[#allocation16 + $0x8a0] sm:$0xff]
    %v1581 = vld [vmem:[#allocation16 + $0x8a8] sm:$0xff]
    %v1582 = vld [vmem:[#allocation16 + $0x8b0] sm:$0xff]
    %v1583 = vld [vmem:[#allocation16 + $0x8b8] sm:$0xff]
    %v1584 = vld [vmem:[#allocation16 + $0x8c0] sm:$0xff]
    %v1585 = vld [vmem:[#allocation16 + $0x8c8] sm:$0xff]
    %v1586 = vld [vmem:[#allocation16 + $0x8d0] sm:$0xff]
    %v1587 = vld [vmem:[#allocation16 + $0x8d8] sm:$0xff]
    %v1588 = vld [vmem:[#allocation16 + $0x8e0] sm:$0xff]
    %v1589 = vld [vmem:[#allocation16 + $0x8e8] sm:$0xff]
    %v1590 = vld [vmem:[#allocation16 + $0x8f0] sm:$0xff]
    %v1591 = vld [vmem:[#allocation16 + $0x8f8] sm:$0xff]
    %v1592 = vld [vmem:[#allocation16 + $0x900] sm:$0xff]
    %v1593 = vld [vmem:[#allocation16 + $0x908] sm:$0xff]
    %v1594 = vld [vmem:[#allocation16 + $0x910] sm:$0xff]
    %v1595 = vld [vmem:[#allocation16 + $0x918] sm:$0xff]
    %v1596 = vld [vmem:[#allocation16 + $0x920] sm:$0xff]
    %v1597 = vld [vmem:[#allocation16 + $0x928] sm:$0xff]
    %v1598 = vld [vmem:[#allocation16 + $0x930] sm:$0xff]
    %v1599 = vld [vmem:[#allocation16 + $0x938] sm:$0xff]
    %v1600 = vld [vmem:[#allocation16 + $0x940] sm:$0xff]
    %v1601 = vld [vmem:[#allocation16 + $0x948] sm:$0xff]
    %v1602 = vld [vmem:[#allocation16 + $0x950] sm:$0xff]
    %v1603 = vld [vmem:[#allocation16 + $0x958] sm:$0xff]
    %v1604 = vld [vmem:[#allocation16 + $0x960] sm:$0xff]
    %v1605 = vld [vmem:[#allocation16 + $0x968] sm:$0xff]
    %v1606 = vld [vmem:[#allocation16 + $0x970] sm:$0xff]
    %v1607 = vld [vmem:[#allocation16 + $0x978] sm:$0xff]
    %v1608 = vld [vmem:[#allocation16 + $0x980] sm:$0xff]
    %v1609 = vld [vmem:[#allocation16 + $0x988] sm:$0xff]
    %v1610 = vld [vmem:[#allocation16 + $0x990] sm:$0xff]
    %v1611 = vld [vmem:[#allocation16 + $0x998] sm:$0xff]
    %v1612 = vld [vmem:[#allocation16 + $0x9a0] sm:$0xff]
    %v1613 = vld [vmem:[#allocation16 + $0x9a8] sm:$0xff]
    %v1614 = vld [vmem:[#allocation16 + $0x9b0] sm:$0xff]
    %v1615 = vld [vmem:[#allocation16 + $0x9b8] sm:$0xff]
    %v1616 = vld [vmem:[#allocation16 + $0x9c0] sm:$0xff]
    %v1617 = vld [vmem:[#allocation16 + $0x9c8] sm:$0xff]
    %v1618 = vld [vmem:[#allocation16 + $0x9d0] sm:$0xff]
    %v1619 = vld [vmem:[#allocation16 + $0x9d8] sm:$0xff]
    %v1620 = vld [vmem:[#allocation16 + $0x9e0] sm:$0xff]
    %v1621 = vld [vmem:[#allocation16 + $0x9e8] sm:$0xff]
    %v1622 = vld [vmem:[#allocation16 + $0x9f0] sm:$0xff]
    %v1623 = vld [vmem:[#allocation16 + $0x9f8] sm:$0xff]
    %v1624 = vld [vmem:[#allocation16 + $0xa00] sm:$0xff]
    %v1625 = vld [vmem:[#allocation16 + $0xa08] sm:$0xff]
    %v1626 = vld [vmem:[#allocation16 + $0xa10] sm:$0xff]
    %v1627 = vld [vmem:[#allocation16 + $0xa18] sm:$0xff]
    %v1628 = vld [vmem:[#allocation16 + $0xa20] sm:$0xff]
    %v1629 = vld [vmem:[#allocation16 + $0xa28] sm:$0xff]
    %v1630 = vld [vmem:[#allocation16 + $0xa30] sm:$0xff]
    %v1631 = vld [vmem:[#allocation16 + $0xa38] sm:$0xff]
    %v1632 = vld [vmem:[#allocation16 + $0xa40] sm:$0xff]
    %v1633 = vld [vmem:[#allocation16 + $0xa48] sm:$0xff]
    %v1634 = vld [vmem:[#allocation16 + $0xa50] sm:$0xff]
    %v1635 = vld [vmem:[#allocation16 + $0xa58] sm:$0xff]
    %v1636 = vld [vmem:[#allocation16 + $0xa60] sm:$0xff]
    %v1637 = vld [vmem:[#allocation16 + $0xa68] sm:$0xff]
    %v1638 = vld [vmem:[#allocation16 + $0xa70] sm:$0xff]
    %v1639 = vld [vmem:[#allocation16 + $0xa78] sm:$0xff]
    %v1640 = vld [vmem:[#allocation16 + $0xa80] sm:$0xff]
    %v1641 = vld [vmem:[#allocation16 + $0xa88] sm:$0xff]
    %v1642 = vld [vmem:[#allocation16 + $0xa90] sm:$0xff]
    %v1643 = vld [vmem:[#allocation16 + $0xa98] sm:$0xff]
    %v1644 = vld [vmem:[#allocation16 + $0xaa0] sm:$0xff]
    %v1645 = vld [vmem:[#allocation16 + $0xaa8] sm:$0xff]
    %v1646 = vld [vmem:[#allocation16 + $0xab0] sm:$0xff]
    %v1647 = vld [vmem:[#allocation16 + $0xab8] sm:$0xff]
    %v1648 = vld [vmem:[#allocation16 + $0xac0] sm:$0xff]
    %v1649 = vld [vmem:[#allocation16 + $0xac8] sm:$0xff]
    %v1650 = vld [vmem:[#allocation16 + $0xad0] sm:$0xff]
    %v1651 = vld [vmem:[#allocation16 + $0xad8] sm:$0xff]
    %v1652 = vld [vmem:[#allocation16 + $0xae0] sm:$0xff]
    %v1653 = vld [vmem:[#allocation16 + $0xae8] sm:$0xff]
    %v1654 = vld [vmem:[#allocation16 + $0xaf0] sm:$0xff]
    %v1655 = vld [vmem:[#allocation16 + $0xaf8] sm:$0xff]
    %v1656 = vld [vmem:[#allocation16 + $0xb00] sm:$0xff]
    %v1657 = vld [vmem:[#allocation16 + $0xb08] sm:$0xff]
    %v1658 = vld [vmem:[#allocation16 + $0xb10] sm:$0xff]
    %v1659 = vld [vmem:[#allocation16 + $0xb18] sm:$0xff]
    %v1660 = vld [vmem:[#allocation16 + $0xb20] sm:$0xff]
    %v1661 = vld [vmem:[#allocation16 + $0xb28] sm:$0xff]
    %v1662 = vld [vmem:[#allocation16 + $0xb30] sm:$0xff]
    %v1663 = vld [vmem:[#allocation16 + $0xb38] sm:$0xff]
    %v1664 = vld [vmem:[#allocation16 + $0xb40] sm:$0xff]
    %v1665 = vld [vmem:[#allocation16 + $0xb48] sm:$0xff]
    %v1666 = vld [vmem:[#allocation16 + $0xb50] sm:$0xff]
    %v1667 = vld [vmem:[#allocation16 + $0xb58] sm:$0xff]
    %v1668 = vld [vmem:[#allocation16 + $0xb60] sm:$0xff]
    %v1669 = vld [vmem:[#allocation16 + $0xb68] sm:$0xff]
    %v1670 = vld [vmem:[#allocation16 + $0xb70] sm:$0xff]
    %v1671 = vld [vmem:[#allocation16 + $0xb78] sm:$0xff]
    %v1672 = vld [vmem:[#allocation16 + $0xb80] sm:$0xff]
    %v1673 = vld [vmem:[#allocation16 + $0xb88] sm:$0xff]
    %v1674 = vld [vmem:[#allocation16 + $0xb90] sm:$0xff]
    %v1675 = vld [vmem:[#allocation16 + $0xb98] sm:$0xff]
    %v1676 = vld [vmem:[#allocation16 + $0xba0] sm:$0xff]
    %v1677 = vld [vmem:[#allocation16 + $0xba8] sm:$0xff]
    %v1678 = vld [vmem:[#allocation16 + $0xbb0] sm:$0xff]
    %v1679 = vld [vmem:[#allocation16 + $0xbb8] sm:$0xff]
    %v1680 = vld [vmem:[#allocation16 + $0xbc0] sm:$0xff]
    %v1681 = vld [vmem:[#allocation16 + $0xbc8] sm:$0xff]
    %v1682 = vld [vmem:[#allocation16 + $0xbd0] sm:$0xff]
    %v1683 = vld [vmem:[#allocation16 + $0xbd8] sm:$0xff]
    %v1684 = vld [vmem:[#allocation16 + $0xbe0] sm:$0xff]
    %v1685 = vld [vmem:[#allocation16 + $0xbe8] sm:$0xff]
    %v1686 = vld [vmem:[#allocation16 + $0xbf0] sm:$0xff]
    %v1687 = vld [vmem:[#allocation16 + $0xbf8] sm:$0xff]
    %v1688 = vld [vmem:[#allocation16 + $0xc00] sm:$0xff]
    %v1689 = vld [vmem:[#allocation16 + $0xc08] sm:$0xff]
    %v1690 = vld [vmem:[#allocation16 + $0xc10] sm:$0xff]
    %v1691 = vld [vmem:[#allocation16 + $0xc18] sm:$0xff]
    %v1692 = vld [vmem:[#allocation16 + $0xc20] sm:$0xff]
    %v1693 = vld [vmem:[#allocation16 + $0xc28] sm:$0xff]
    %v1694 = vld [vmem:[#allocation16 + $0xc30] sm:$0xff]
    %v1695 = vld [vmem:[#allocation16 + $0xc38] sm:$0xff]
    %v1696 = vld [vmem:[#allocation16 + $0xc40] sm:$0xff]
    %v1697 = vld [vmem:[#allocation16 + $0xc48] sm:$0xff]
    %v1698 = vld [vmem:[#allocation16 + $0xc50] sm:$0xff]
    %v1699 = vld [vmem:[#allocation16 + $0xc58] sm:$0xff]
    %v1700 = vld [vmem:[#allocation16 + $0xc60] sm:$0xff]
    %v1701 = vld [vmem:[#allocation16 + $0xc68] sm:$0xff]
    %v1702 = vld [vmem:[#allocation16 + $0xc70] sm:$0xff]
    %v1703 = vld [vmem:[#allocation16 + $0xc78] sm:$0xff]
    %v1704 = vld [vmem:[#allocation16 + $0xc80] sm:$0xff]
    %v1705 = vld [vmem:[#allocation16 + $0xc88] sm:$0xff]
    %v1706 = vld [vmem:[#allocation16 + $0xc90] sm:$0xff]
    %v1707 = vld [vmem:[#allocation16 + $0xc98] sm:$0xff]
    %v1708 = vld [vmem:[#allocation16 + $0xca0] sm:$0xff]
    %v1709 = vld [vmem:[#allocation16 + $0xca8] sm:$0xff]
    %v1710 = vld [vmem:[#allocation16 + $0xcb0] sm:$0xff]
    %v1711 = vld [vmem:[#allocation16 + $0xcb8] sm:$0xff]
    %v1712 = vld [vmem:[#allocation16 + $0xcc0] sm:$0xff]
    %v1713 = vld [vmem:[#allocation16 + $0xcc8] sm:$0xff]
    %v1714 = vld [vmem:[#allocation16 + $0xcd0] sm:$0xff]
    %v1715 = vld [vmem:[#allocation16 + $0xcd8] sm:$0xff]
    %v1716 = vld [vmem:[#allocation16 + $0xce0] sm:$0xff]
    %v1717 = vld [vmem:[#allocation16 + $0xce8] sm:$0xff]
    %v1718 = vld [vmem:[#allocation16 + $0xcf0] sm:$0xff]
    %v1719 = vld [vmem:[#allocation16 + $0xcf8] sm:$0xff]
    %v1720 = vld [vmem:[#allocation16 + $0xd00] sm:$0xff]
    %v1721 = vld [vmem:[#allocation16 + $0xd08] sm:$0xff]
    %v1722 = vld [vmem:[#allocation16 + $0xd10] sm:$0xff]
    %v1723 = vld [vmem:[#allocation16 + $0xd18] sm:$0xff]
    %v1724 = vld [vmem:[#allocation16 + $0xd20] sm:$0xff]
    %v1725 = vld [vmem:[#allocation16 + $0xd28] sm:$0xff]
    %v1726 = vld [vmem:[#allocation16 + $0xd30] sm:$0xff]
    %v1727 = vld [vmem:[#allocation16 + $0xd38] sm:$0xff]
    %v1728 = vld [vmem:[#allocation16 + $0xd40] sm:$0xff]
    %v1729 = vld [vmem:[#allocation16 + $0xd48] sm:$0xff]
    %v1730 = vld [vmem:[#allocation16 + $0xd50] sm:$0xff]
    %v1731 = vld [vmem:[#allocation16 + $0xd58] sm:$0xff]
    %v1732 = vld [vmem:[#allocation16 + $0xd60] sm:$0xff]
    %v1733 = vld [vmem:[#allocation16 + $0xd68] sm:$0xff]
    %v1734 = vld [vmem:[#allocation16 + $0xd70] sm:$0xff]
    %v1735 = vld [vmem:[#allocation16 + $0xd78] sm:$0xff]
    %v1736 = vld [vmem:[#allocation16 + $0xd80] sm:$0xff]
    %v1737 = vld [vmem:[#allocation16 + $0xd88] sm:$0xff]
    %v1738 = vld [vmem:[#allocation16 + $0xd90] sm:$0xff]
    %v1739 = vld [vmem:[#allocation16 + $0xd98] sm:$0xff]
    %v1740 = vld [vmem:[#allocation16 + $0xda0] sm:$0xff]
    %v1741 = vld [vmem:[#allocation16 + $0xda8] sm:$0xff]
    %v1742 = vld [vmem:[#allocation16 + $0xdb0] sm:$0xff]
    %v1743 = vld [vmem:[#allocation16 + $0xdb8] sm:$0xff]
    %v1744 = vld [vmem:[#allocation16 + $0xdc0] sm:$0xff]
    %v1745 = vld [vmem:[#allocation16 + $0xdc8] sm:$0xff]
    %v1746 = vld [vmem:[#allocation16 + $0xdd0] sm:$0xff]
    %v1747 = vld [vmem:[#allocation16 + $0xdd8] sm:$0xff]
    %v1748 = vld [vmem:[#allocation16 + $0xde0] sm:$0xff]
    %v1749 = vld [vmem:[#allocation16 + $0xde8] sm:$0xff]
    %v1750 = vld [vmem:[#allocation16 + $0xdf0] sm:$0xff]
    %v1751 = vld [vmem:[#allocation16 + $0xdf8] sm:$0xff]
    %v1752 = vld [vmem:[#allocation16 + $0xe00] sm:$0xff]
    %v1753 = vld [vmem:[#allocation16 + $0xe08] sm:$0xff]
    %v1754 = vld [vmem:[#allocation16 + $0xe10] sm:$0xff]
    %v1755 = vld [vmem:[#allocation16 + $0xe18] sm:$0xff]
    %v1756 = vld [vmem:[#allocation16 + $0xe20] sm:$0xff]
    %v1757 = vld [vmem:[#allocation16 + $0xe28] sm:$0xff]
    %v1758 = vld [vmem:[#allocation16 + $0xe30] sm:$0xff]
    %v1759 = vld [vmem:[#allocation16 + $0xe38] sm:$0xff]
    %v1760 = vld [vmem:[#allocation16 + $0xe40] sm:$0xff]
    %v1761 = vld [vmem:[#allocation16 + $0xe48] sm:$0xff]
    %v1762 = vld [vmem:[#allocation16 + $0xe50] sm:$0xff]
    %v1763 = vld [vmem:[#allocation16 + $0xe58] sm:$0xff]
    %v1764 = vld [vmem:[#allocation16 + $0xe60] sm:$0xff]
    %v1765 = vld [vmem:[#allocation16 + $0xe68] sm:$0xff]
    %v1766 = vld [vmem:[#allocation16 + $0xe70] sm:$0xff]
    %v1767 = vld [vmem:[#allocation16 + $0xe78] sm:$0xff]
    %v1768 = vld [vmem:[#allocation16 + $0xe80] sm:$0xff]
    %v1769 = vld [vmem:[#allocation16 + $0xe88] sm:$0xff]
    %v1770 = vld [vmem:[#allocation16 + $0xe90] sm:$0xff]
    %v1771 = vld [vmem:[#allocation16 + $0xe98] sm:$0xff]
    %v1772 = vld [vmem:[#allocation16 + $0xea0] sm:$0xff]
    %v1773 = vld [vmem:[#allocation16 + $0xea8] sm:$0xff]
    %v1774 = vld [vmem:[#allocation16 + $0xeb0] sm:$0xff]
    %v1775 = vld [vmem:[#allocation16 + $0xeb8] sm:$0xff]
    %v1776 = vld [vmem:[#allocation16 + $0xec0] sm:$0xff]
    %v1777 = vld [vmem:[#allocation16 + $0xec8] sm:$0xff]
    %v1778 = vld [vmem:[#allocation16 + $0xed0] sm:$0xff]
    %v1779 = vld [vmem:[#allocation16 + $0xed8] sm:$0xff]
    %v1780 = vld [vmem:[#allocation16 + $0xee0] sm:$0xff]
    %v1781 = vld [vmem:[#allocation16 + $0xee8] sm:$0xff]
    %v1782 = vld [vmem:[#allocation16 + $0xef0] sm:$0xff]
    %v1783 = vld [vmem:[#allocation16 + $0xef8] sm:$0xff]
    %v1784 = vld [vmem:[#allocation16 + $0xf00] sm:$0xff]
    %v1785 = vld [vmem:[#allocation16 + $0xf08] sm:$0xff]
    %v1786 = vld [vmem:[#allocation16 + $0xf10] sm:$0xff]
    %v1787 = vld [vmem:[#allocation16 + $0xf18] sm:$0xff]
    %v1788 = vld [vmem:[#allocation16 + $0xf20] sm:$0xff]
    %v1789 = vld [vmem:[#allocation16 + $0xf28] sm:$0xff]
    %v1790 = vld [vmem:[#allocation16 + $0xf30] sm:$0xff]
    %v1791 = vld [vmem:[#allocation16 + $0xf38] sm:$0xff]
    %v1792 = vld [vmem:[#allocation16 + $0xf40] sm:$0xff]
    %v1793 = vld [vmem:[#allocation16 + $0xf48] sm:$0xff]
    %v1794 = vld [vmem:[#allocation16 + $0xf50] sm:$0xff]
    %v1795 = vld [vmem:[#allocation16 + $0xf58] sm:$0xff]
    %v1796 = vld [vmem:[#allocation16 + $0xf60] sm:$0xff]
    %v1797 = vld [vmem:[#allocation16 + $0xf68] sm:$0xff]
    %v1798 = vld [vmem:[#allocation16 + $0xf70] sm:$0xff]
    %v1799 = vld [vmem:[#allocation16 + $0xf78] sm:$0xff]
    %v1800 = vld [vmem:[#allocation16 + $0xf80] sm:$0xff]
    %v1801 = vld [vmem:[#allocation16 + $0xf88] sm:$0xff]
    %v1802 = vld [vmem:[#allocation16 + $0xf90] sm:$0xff]
    %v1803 = vld [vmem:[#allocation16 + $0xf98] sm:$0xff]
    %v1804 = vld [vmem:[#allocation16 + $0xfa0] sm:$0xff]
    %v1805 = vld [vmem:[#allocation16 + $0xfa8] sm:$0xff]
    %v1806 = vld [vmem:[#allocation16 + $0xfb0] sm:$0xff]
    %v1807 = vld [vmem:[#allocation16 + $0xfb8] sm:$0xff]
    %v1808 = vld [vmem:[#allocation16 + $0xfc0] sm:$0xff]
    %v1809 = vld [vmem:[#allocation16 + $0xfc8] sm:$0xff]
    %v1810 = vld [vmem:[#allocation16 + $0xfd0] sm:$0xff]
    %v1811 = vld [vmem:[#allocation16 + $0xfd8] sm:$0xff]
    %v1812 = vld [vmem:[#allocation16 + $0xfe0] sm:$0xff]
    %v1813 = vld [vmem:[#allocation16 + $0xfe8] sm:$0xff]
    %v1814 = vld [vmem:[#allocation16 + $0xff0] sm:$0xff]
    %v1815 = vld [vmem:[#allocation16 + $0xff8] sm:$0xff]
    %1816 = vmatprep.subr.mxu0 %v1305
    %1817 = vmatpush1.msra.mxu0 %v1304
    %1818 = vmatprep.subr.mxu0 %v1313
    %1819 = vmatpush1.msra.mxu0 %v1312
    %1820 = vmatprep.subr.mxu0 %v1321
    %1821 = vmatpush1.msra.mxu0 %v1320
    %1822 = vmatprep.subr.mxu0 %v1329
    %1823 = vmatpush1.msra.mxu0 %v1328
    %1824 = vmatprep.subr.mxu0 %v1337
    %1825 = vmatpush1.msra.mxu0 %v1336
    %1826 = vmatprep.subr.mxu0 %v1345
    %1827 = vmatpush1.msra.mxu0 %v1344
    %1828 = vmatprep.subr.mxu0 %v1353
    %1829 = vmatpush1.msra.mxu0 %v1352
    %1830 = vmatprep.subr.mxu0 %v1361
    %1831 = vmatpush1.msra.mxu0 %v1360
    %1832 = vmatprep.subr.mxu0 %v1369
    %1833 = vmatpush1.msra.mxu0 %v1368
    %1834 = vmatprep.subr.mxu0 %v1377
    %1835 = vmatpush1.msra.mxu0 %v1376
    %1836 = vmatprep.subr.mxu0 %v1385
    %1837 = vmatpush1.msra.mxu0 %v1384
    %1838 = vmatprep.subr.mxu0 %v1393
    %1839 = vmatpush1.msra.mxu0 %v1392
    %1840 = vmatprep.subr.mxu0 %v1401
    %1841 = vmatpush1.msra.mxu0 %v1400
    %1842 = vmatprep.subr.mxu0 %v1409
    %1843 = vmatpush1.msra.mxu0 %v1408
    %1844 = vmatprep.subr.mxu0 %v1417
    %1845 = vmatpush1.msra.mxu0 %v1416
    %1846 = vmatprep.subr.mxu0 %v1425
    %1847 = vmatpush1.msra.mxu0 %v1424
    %1848 = vmatprep.subr.mxu0 %v1433
    %1849 = vmatpush1.msra.mxu0 %v1432
    %1850 = vmatprep.subr.mxu0 %v1441
    %1851 = vmatpush1.msra.mxu0 %v1440
    %1852 = vmatprep.subr.mxu0 %v1449
    %1853 = vmatpush1.msra.mxu0 %v1448
    %1854 = vmatprep.subr.mxu0 %v1457
    %1855 = vmatpush1.msra.mxu0 %v1456
    %1856 = vmatprep.subr.mxu0 %v1465
    %1857 = vmatpush1.msra.mxu0 %v1464
    %1858 = vmatprep.subr.mxu0 %v1473
    %1859 = vmatpush1.msra.mxu0 %v1472
    %1860 = vmatprep.subr.mxu0 %v1481
    %1861 = vmatpush1.msra.mxu0 %v1480
    %1862 = vmatprep.subr.mxu0 %v1489
    %1863 = vmatpush1.msra.mxu0 %v1488
    %1864 = vmatprep.subr.mxu0 %v1497
    %1865 = vmatpush1.msra.mxu0 %v1496
    %1866 = vmatprep.subr.mxu0 %v1505
    %1867 = vmatpush1.msra.mxu0 %v1504
    %1868 = vmatprep.subr.mxu0 %v1513
    %1869 = vmatpush1.msra.mxu0 %v1512
    %1870 = vmatprep.subr.mxu0 %v1521
    %1871 = vmatpush1.msra.mxu0 %v1520
    %1872 = vmatprep.subr.mxu0 %v1529
    %1873 = vmatpush1.msra.mxu0 %v1528
    %1874 = vmatprep.subr.mxu0 %v1537
    %1875 = vmatpush1.msra.mxu0 %v1536
    %1876 = vmatprep.subr.mxu0 %v1545
    %1877 = vmatpush1.msra.mxu0 %v1544
    %1878 = vmatprep.subr.mxu0 %v1553
    %1879 = vmatpush1.msra.mxu0 %v1552
    %1880 = vmatprep.mubr.f32.mxu0 %v1285
    %1881 = vmatmul.mubr.f32.gmra.mrb[0].mxu0 %v1284
    %v1882 = vpop.f32.mrb[0].mxu0
    %v1883 = vadd.f32 0.0, %v1882
    %v1884 = vpop.f32.mrb[0].mxu0
    %v1885 = vadd.f32 0.0, %v1884
    %1886 = vdwg.mxu0
    %1887 = vmatprep.subr.mxu0 %v1561
    %1888 = vmatpush1.msra.mxu0 %v1560
    %1889 = vmatprep.subr.mxu0 %v1569
    %1890 = vmatpush1.msra.mxu0 %v1568
    %1891 = vmatprep.subr.mxu0 %v1577
    %1892 = vmatpush1.msra.mxu0 %v1576
    %1893 = vmatprep.subr.mxu0 %v1585
    %1894 = vmatpush1.msra.mxu0 %v1584
    %1895 = vmatprep.subr.mxu0 %v1593
    %1896 = vmatpush1.msra.mxu0 %v1592
    %1897 = vmatprep.subr.mxu0 %v1601
    %1898 = vmatpush1.msra.mxu0 %v1600
    %1899 = vmatprep.subr.mxu0 %v1609
    %1900 = vmatpush1.msra.mxu0 %v1608
    %1901 = vmatprep.subr.mxu0 %v1617
    %1902 = vmatpush1.msra.mxu0 %v1616
    %1903 = vmatprep.subr.mxu0 %v1625
    %1904 = vmatpush1.msra.mxu0 %v1624
    %1905 = vmatprep.subr.mxu0 %v1633
    %1906 = vmatpush1.msra.mxu0 %v1632
    %1907 = vmatprep.subr.mxu0 %v1641
    %1908 = vmatpush1.msra.mxu0 %v1640
    %1909 = vmatprep.subr.mxu0 %v1649
    %1910 = vmatpush1.msra.mxu0 %v1648
    %1911 = vmatprep.subr.mxu0 %v1657
    %1912 = vmatpush1.msra.mxu0 %v1656
    %1913 = vmatprep.subr.mxu0 %v1665
    %1914 = vmatpush1.msra.mxu0 %v1664
    %1915 = vmatprep.subr.mxu0 %v1673
    %1916 = vmatpush1.msra.mxu0 %v1672
    %1917 = vmatprep.subr.mxu0 %v1681
    %1918 = vmatpush1.msra.mxu0 %v1680
    %1919 = vmatprep.subr.mxu0 %v1689
    %1920 = vmatpush1.msra.mxu0 %v1688
    %1921 = vmatprep.subr.mxu0 %v1697
    %1922 = vmatpush1.msra.mxu0 %v1696
    %1923 = vmatprep.subr.mxu0 %v1705
    %1924 = vmatpush1.msra.mxu0 %v1704
    %1925 = vmatprep.subr.mxu0 %v1713
    %1926 = vmatpush1.msra.mxu0 %v1712
    %1927 = vmatprep.subr.mxu0 %v1721
    %1928 = vmatpush1.msra.mxu0 %v1720
    %1929 = vmatprep.subr.mxu0 %v1729
    %1930 = vmatpush1.msra.mxu0 %v1728
    %1931 = vmatprep.subr.mxu0 %v1737
    %1932 = vmatpush1.msra.mxu0 %v1736
    %1933 = vmatprep.subr.mxu0 %v1745
    %1934 = vmatpush1.msra.mxu0 %v1744
    %1935 = vmatprep.subr.mxu0 %v1753
    %1936 = vmatpush1.msra.mxu0 %v1752
    %1937 = vmatprep.subr.mxu0 %v1761
    %1938 = vmatpush1.msra.mxu0 %v1760
    %1939 = vmatprep.subr.mxu0 %v1769
    %1940 = vmatpush1.msra.mxu0 %v1768
    %1941 = vmatprep.subr.mxu0 %v1777
    %1942 = vmatpush1.msra.mxu0 %v1776
    %1943 = vmatprep.subr.mxu0 %v1785
    %1944 = vmatpush1.msra.mxu0 %v1784
    %1945 = vmatprep.subr.mxu0 %v1793
    %1946 = vmatpush1.msra.mxu0 %v1792
    %1947 = vmatprep.subr.mxu0 %v1801
    %1948 = vmatpush1.msra.mxu0 %v1800
    %1949 = vmatprep.subr.mxu0 %v1809
    %1950 = vmatpush1.msra.mxu0 %v1808
    %1951 = vmatprep.mubr.f32.mxu0 %v1287
    %1952 = vmatmul.mubr.f32.gmra.mrb[0].mxu0 %v1286
    %v1953 = vpop.f32.mrb[0].mxu0
    %v1954 = vadd.f32 %v1883, %v1953
    %v1955 = vpop.f32.mrb[0].mxu0
    %v1956 = vadd.f32 %v1885, %v1955
    %1957 = vdwg.mxu0
    %1958 = vmatprep.subr.mxu0 %v1307
    %1959 = vmatpush1.msra.mxu0 %v1306
    %1960 = vmatprep.subr.mxu0 %v1315
    %1961 = vmatpush1.msra.mxu0 %v1314
    %1962 = vmatprep.subr.mxu0 %v1323
    %1963 = vmatpush1.msra.mxu0 %v1322
    %1964 = vmatprep.subr.mxu0 %v1331
    %1965 = vmatpush1.msra.mxu0 %v1330
    %1966 = vmatprep.subr.mxu0 %v1339
    %1967 = vmatpush1.msra.mxu0 %v1338
    %1968 = vmatprep.subr.mxu0 %v1347
    %1969 = vmatpush1.msra.mxu0 %v1346
    %1970 = vmatprep.subr.mxu0 %v1355
    %1971 = vmatpush1.msra.mxu0 %v1354
    %1972 = vmatprep.subr.mxu0 %v1363
    %1973 = vmatpush1.msra.mxu0 %v1362
    %1974 = vmatprep.subr.mxu0 %v1371
    %1975 = vmatpush1.msra.mxu0 %v1370
    %1976 = vmatprep.subr.mxu0 %v1379
    %1977 = vmatpush1.msra.mxu0 %v1378
    %1978 = vmatprep.subr.mxu0 %v1387
    %1979 = vmatpush1.msra.mxu0 %v1386
    %1980 = vmatprep.subr.mxu0 %v1395
    %1981 = vmatpush1.msra.mxu0 %v1394
    %1982 = vmatprep.subr.mxu0 %v1403
    %1983 = vmatpush1.msra.mxu0 %v1402
    %1984 = vmatprep.subr.mxu0 %v1411
    %1985 = vmatpush1.msra.mxu0 %v1410
    %1986 = vmatprep.subr.mxu0 %v1419
    %1987 = vmatpush1.msra.mxu0 %v1418
    %1988 = vmatprep.subr.mxu0 %v1427
    %1989 = vmatpush1.msra.mxu0 %v1426
    %1990 = vmatprep.subr.mxu0 %v1435
    %1991 = vmatpush1.msra.mxu0 %v1434
    %1992 = vmatprep.subr.mxu0 %v1443
    %1993 = vmatpush1.msra.mxu0 %v1442
    %1994 = vmatprep.subr.mxu0 %v1451
    %1995 = vmatpush1.msra.mxu0 %v1450
    %1996 = vmatprep.subr.mxu0 %v1459
    %1997 = vmatpush1.msra.mxu0 %v1458
    %1998 = vmatprep.subr.mxu0 %v1467
    %1999 = vmatpush1.msra.mxu0 %v1466
    %2000 = vmatprep.subr.mxu0 %v1475
    %2001 = vmatpush1.msra.mxu0 %v1474
    %2002 = vmatprep.subr.mxu0 %v1483
    %2003 = vmatpush1.msra.mxu0 %v1482
    %2004 = vmatprep.subr.mxu0 %v1491
    %2005 = vmatpush1.msra.mxu0 %v1490
    %2006 = vmatprep.subr.mxu0 %v1499
    %2007 = vmatpush1.msra.mxu0 %v1498
    %2008 = vmatprep.subr.mxu0 %v1507
    %2009 = vmatpush1.msra.mxu0 %v1506
    %2010 = vmatprep.subr.mxu0 %v1515
    %2011 = vmatpush1.msra.mxu0 %v1514
    %2012 = vmatprep.subr.mxu0 %v1523
    %2013 = vmatpush1.msra.mxu0 %v1522
    %2014 = vmatprep.subr.mxu0 %v1531
    %2015 = vmatpush1.msra.mxu0 %v1530
    %2016 = vmatprep.subr.mxu0 %v1539
    %2017 = vmatpush1.msra.mxu0 %v1538
    %2018 = vmatprep.subr.mxu0 %v1547
    %2019 = vmatpush1.msra.mxu0 %v1546
    %2020 = vmatprep.subr.mxu0 %v1555
    %2021 = vmatpush1.msra.mxu0 %v1554
    %2022 = vmatprep.mubr.f32.mxu0 %v1285
    %2023 = vmatmul.mubr.f32.gmra.mrb[0].mxu0 %v1284
    %v2024 = vpop.f32.mrb[0].mxu0
    %v2025 = vadd.f32 0.0, %v2024
    %v2026 = vpop.f32.mrb[0].mxu0
    %v2027 = vadd.f32 0.0, %v2026
    %2028 = vdwg.mxu0
    %2029 = vmatprep.subr.mxu0 %v1563
    %2030 = vmatpush1.msra.mxu0 %v1562
    %2031 = vmatprep.subr.mxu0 %v1571
    %2032 = vmatpush1.msra.mxu0 %v1570
    %2033 = vmatprep.subr.mxu0 %v1579
    %2034 = vmatpush1.msra.mxu0 %v1578
    %2035 = vmatprep.subr.mxu0 %v1587
    %2036 = vmatpush1.msra.mxu0 %v1586
    %2037 = vmatprep.subr.mxu0 %v1595
    %2038 = vmatpush1.msra.mxu0 %v1594
    %2039 = vmatprep.subr.mxu0 %v1603
    %2040 = vmatpush1.msra.mxu0 %v1602
    %2041 = vmatprep.subr.mxu0 %v1611
    %2042 = vmatpush1.msra.mxu0 %v1610
    %2043 = vmatprep.subr.mxu0 %v1619
    %2044 = vmatpush1.msra.mxu0 %v1618
    %2045 = vmatprep.subr.mxu0 %v1627
    %2046 = vmatpush1.msra.mxu0 %v1626
    %2047 = vmatprep.subr.mxu0 %v1635
    %2048 = vmatpush1.msra.mxu0 %v1634
    %2049 = vmatprep.subr.mxu0 %v1643
    %2050 = vmatpush1.msra.mxu0 %v1642
    %2051 = vmatprep.subr.mxu0 %v1651
    %2052 = vmatpush1.msra.mxu0 %v1650
    %2053 = vmatprep.subr.mxu0 %v1659
    %2054 = vmatpush1.msra.mxu0 %v1658
    %2055 = vmatprep.subr.mxu0 %v1667
    %2056 = vmatpush1.msra.mxu0 %v1666
    %2057 = vmatprep.subr.mxu0 %v1675
    %2058 = vmatpush1.msra.mxu0 %v1674
    %2059 = vmatprep.subr.mxu0 %v1683
    %2060 = vmatpush1.msra.mxu0 %v1682
    %2061 = vmatprep.subr.mxu0 %v1691
    %2062 = vmatpush1.msra.mxu0 %v1690
    %2063 = vmatprep.subr.mxu0 %v1699
    %2064 = vmatpush1.msra.mxu0 %v1698
    %2065 = vmatprep.subr.mxu0 %v1707
    %2066 = vmatpush1.msra.mxu0 %v1706
    %2067 = vmatprep.subr.mxu0 %v1715
    %2068 = vmatpush1.msra.mxu0 %v1714
    %2069 = vmatprep.subr.mxu0 %v1723
    %2070 = vmatpush1.msra.mxu0 %v1722
    %2071 = vmatprep.subr.mxu0 %v1731
    %2072 = vmatpush1.msra.mxu0 %v1730
    %2073 = vmatprep.subr.mxu0 %v1739
    %2074 = vmatpush1.msra.mxu0 %v1738
    %2075 = vmatprep.subr.mxu0 %v1747
    %2076 = vmatpush1.msra.mxu0 %v1746
    %2077 = vmatprep.subr.mxu0 %v1755
    %2078 = vmatpush1.msra.mxu0 %v1754
    %2079 = vmatprep.subr.mxu0 %v1763
    %2080 = vmatpush1.msra.mxu0 %v1762
    %2081 = vmatprep.subr.mxu0 %v1771
    %2082 = vmatpush1.msra.mxu0 %v1770
    %2083 = vmatprep.subr.mxu0 %v1779
    %2084 = vmatpush1.msra.mxu0 %v1778
    %2085 = vmatprep.subr.mxu0 %v1787
    %2086 = vmatpush1.msra.mxu0 %v1786
    %2087 = vmatprep.subr.mxu0 %v1795
    %2088 = vmatpush1.msra.mxu0 %v1794
    %2089 = vmatprep.subr.mxu0 %v1803
    %2090 = vmatpush1.msra.mxu0 %v1802
    %2091 = vmatprep.subr.mxu0 %v1811
    %2092 = vmatpush1.msra.mxu0 %v1810
    %2093 = vmatprep.mubr.f32.mxu0 %v1287
    %2094 = vmatmul.mubr.f32.gmra.mrb[0].mxu0 %v1286
    %v2095 = vpop.f32.mrb[0].mxu0
    %v2096 = vadd.f32 %v2025, %v2095
    %v2097 = vpop.f32.mrb[0].mxu0
    %v2098 = vadd.f32 %v2027, %v2097
    %2099 = vdwg.mxu0
    %2100 = vmatprep.subr.mxu0 %v1309
    %2101 = vmatpush1.msra.mxu0 %v1308
    %2102 = vmatprep.subr.mxu0 %v1317
    %2103 = vmatpush1.msra.mxu0 %v1316
    %2104 = vmatprep.subr.mxu0 %v1325
    %2105 = vmatpush1.msra.mxu0 %v1324
    %2106 = vmatprep.subr.mxu0 %v1333
    %2107 = vmatpush1.msra.mxu0 %v1332
    %2108 = vmatprep.subr.mxu0 %v1341
    %2109 = vmatpush1.msra.mxu0 %v1340
    %2110 = vmatprep.subr.mxu0 %v1349
    %2111 = vmatpush1.msra.mxu0 %v1348
    %2112 = vmatprep.subr.mxu0 %v1357
    %2113 = vmatpush1.msra.mxu0 %v1356
    %2114 = vmatprep.subr.mxu0 %v1365
    %2115 = vmatpush1.msra.mxu0 %v1364
    %2116 = vmatprep.subr.mxu0 %v1373
    %2117 = vmatpush1.msra.mxu0 %v1372
    %2118 = vmatprep.subr.mxu0 %v1381
    %2119 = vmatpush1.msra.mxu0 %v1380
    %2120 = vmatprep.subr.mxu0 %v1389
    %2121 = vmatpush1.msra.mxu0 %v1388
    %2122 = vmatprep.subr.mxu0 %v1397
    %2123 = vmatpush1.msra.mxu0 %v1396
    %2124 = vmatprep.subr.mxu0 %v1405
    %2125 = vmatpush1.msra.mxu0 %v1404
    %2126 = vmatprep.subr.mxu0 %v1413
    %2127 = vmatpush1.msra.mxu0 %v1412
    %2128 = vmatprep.subr.mxu0 %v1421
    %2129 = vmatpush1.msra.mxu0 %v1420
    %2130 = vmatprep.subr.mxu0 %v1429
    %2131 = vmatpush1.msra.mxu0 %v1428
    %2132 = vmatprep.subr.mxu0 %v1437
    %2133 = vmatpush1.msra.mxu0 %v1436
    %2134 = vmatprep.subr.mxu0 %v1445
    %2135 = vmatpush1.msra.mxu0 %v1444
    %2136 = vmatprep.subr.mxu0 %v1453
    %2137 = vmatpush1.msra.mxu0 %v1452
    %2138 = vmatprep.subr.mxu0 %v1461
    %2139 = vmatpush1.msra.mxu0 %v1460
    %2140 = vmatprep.subr.mxu0 %v1469
    %2141 = vmatpush1.msra.mxu0 %v1468
    %2142 = vmatprep.subr.mxu0 %v1477
    %2143 = vmatpush1.msra.mxu0 %v1476
    %2144 = vmatprep.subr.mxu0 %v1485
    %2145 = vmatpush1.msra.mxu0 %v1484
    %2146 = vmatprep.subr.mxu0 %v1493
    %2147 = vmatpush1.msra.mxu0 %v1492
    %2148 = vmatprep.subr.mxu0 %v1501
    %2149 = vmatpush1.msra.mxu0 %v1500
    %2150 = vmatprep.subr.mxu0 %v1509
    %2151 = vmatpush1.msra.mxu0 %v1508
    %2152 = vmatprep.subr.mxu0 %v1517
    %2153 = vmatpush1.msra.mxu0 %v1516
    %2154 = vmatprep.subr.mxu0 %v1525
    %2155 = vmatpush1.msra.mxu0 %v1524
    %2156 = vmatprep.subr.mxu0 %v1533
    %2157 = vmatpush1.msra.mxu0 %v1532
    %2158 = vmatprep.subr.mxu0 %v1541
    %2159 = vmatpush1.msra.mxu0 %v1540
    %2160 = vmatprep.subr.mxu0 %v1549
    %2161 = vmatpush1.msra.mxu0 %v1548
    %2162 = vmatprep.subr.mxu0 %v1557
    %2163 = vmatpush1.msra.mxu0 %v1556
    %2164 = vmatprep.mubr.f32.mxu0 %v1285
    %2165 = vmatmul.mubr.f32.gmra.mrb[0].mxu0 %v1284
    %v2166 = vpop.f32.mrb[0].mxu0
    %v2167 = vadd.f32 0.0, %v2166
    %v2168 = vpop.f32.mrb[0].mxu0
    %v2169 = vadd.f32 0.0, %v2168
    %2170 = vdwg.mxu0
    %2171 = vmatprep.subr.mxu0 %v1565
    %2172 = vmatpush1.msra.mxu0 %v1564
    %2173 = vmatprep.subr.mxu0 %v1573
    %2174 = vmatpush1.msra.mxu0 %v1572
    %2175 = vmatprep.subr.mxu0 %v1581
    %2176 = vmatpush1.msra.mxu0 %v1580
    %2177 = vmatprep.subr.mxu0 %v1589
    %2178 = vmatpush1.msra.mxu0 %v1588
    %2179 = vmatprep.subr.mxu0 %v1597
    %2180 = vmatpush1.msra.mxu0 %v1596
    %2181 = vmatprep.subr.mxu0 %v1605
    %2182 = vmatpush1.msra.mxu0 %v1604
    %2183 = vmatprep.subr.mxu0 %v1613
    %2184 = vmatpush1.msra.mxu0 %v1612
    %2185 = vmatprep.subr.mxu0 %v1621
    %2186 = vmatpush1.msra.mxu0 %v1620
    %2187 = vmatprep.subr.mxu0 %v1629
    %2188 = vmatpush1.msra.mxu0 %v1628
    %2189 = vmatprep.subr.mxu0 %v1637
    %2190 = vmatpush1.msra.mxu0 %v1636
    %2191 = vmatprep.subr.mxu0 %v1645
    %2192 = vmatpush1.msra.mxu0 %v1644
    %2193 = vmatprep.subr.mxu0 %v1653
    %2194 = vmatpush1.msra.mxu0 %v1652
    %2195 = vmatprep.subr.mxu0 %v1661
    %2196 = vmatpush1.msra.mxu0 %v1660
    %2197 = vmatprep.subr.mxu0 %v1669
    %2198 = vmatpush1.msra.mxu0 %v1668
    %2199 = vmatprep.subr.mxu0 %v1677
    %2200 = vmatpush1.msra.mxu0 %v1676
    %2201 = vmatprep.subr.mxu0 %v1685
    %2202 = vmatpush1.msra.mxu0 %v1684
    %2203 = vmatprep.subr.mxu0 %v1693
    %2204 = vmatpush1.msra.mxu0 %v1692
    %2205 = vmatprep.subr.mxu0 %v1701
    %2206 = vmatpush1.msra.mxu0 %v1700
    %2207 = vmatprep.subr.mxu0 %v1709
    %2208 = vmatpush1.msra.mxu0 %v1708
    %2209 = vmatprep.subr.mxu0 %v1717
    %2210 = vmatpush1.msra.mxu0 %v1716
    %2211 = vmatprep.subr.mxu0 %v1725
    %2212 = vmatpush1.msra.mxu0 %v1724
    %2213 = vmatprep.subr.mxu0 %v1733
    %2214 = vmatpush1.msra.mxu0 %v1732
    %2215 = vmatprep.subr.mxu0 %v1741
    %2216 = vmatpush1.msra.mxu0 %v1740
    %2217 = vmatprep.subr.mxu0 %v1749
    %2218 = vmatpush1.msra.mxu0 %v1748
    %2219 = vmatprep.subr.mxu0 %v1757
    %2220 = vmatpush1.msra.mxu0 %v1756
    %2221 = vmatprep.subr.mxu0 %v1765
    %2222 = vmatpush1.msra.mxu0 %v1764
    %2223 = vmatprep.subr.mxu0 %v1773
    %2224 = vmatpush1.msra.mxu0 %v1772
    %2225 = vmatprep.subr.mxu0 %v1781
    %2226 = vmatpush1.msra.mxu0 %v1780
    %2227 = vmatprep.subr.mxu0 %v1789
    %2228 = vmatpush1.msra.mxu0 %v1788
    %2229 = vmatprep.subr.mxu0 %v1797
    %2230 = vmatpush1.msra.mxu0 %v1796
    %2231 = vmatprep.subr.mxu0 %v1805
    %2232 = vmatpush1.msra.mxu0 %v1804
    %2233 = vmatprep.subr.mxu0 %v1813
    %2234 = vmatpush1.msra.mxu0 %v1812
    %2235 = vmatprep.mubr.f32.mxu0 %v1287
    %2236 = vmatmul.mubr.f32.gmra.mrb[0].mxu0 %v1286
    %v2237 = vpop.f32.mrb[0].mxu0
    %v2238 = vadd.f32 %v2167, %v2237
    %v2239 = vpop.f32.mrb[0].mxu0
    %v2240 = vadd.f32 %v2169, %v2239
    %2241 = vdwg.mxu0
    %2242 = vmatprep.subr.mxu0 %v1311
    %2243 = vmatpush1.msra.mxu0 %v1310
    %2244 = vmatprep.subr.mxu0 %v1319
    %2245 = vmatpush1.msra.mxu0 %v1318
    %2246 = vmatprep.subr.mxu0 %v1327
    %2247 = vmatpush1.msra.mxu0 %v1326
    %2248 = vmatprep.subr.mxu0 %v1335
    %2249 = vmatpush1.msra.mxu0 %v1334
    %2250 = vmatprep.subr.mxu0 %v1343
    %2251 = vmatpush1.msra.mxu0 %v1342
    %2252 = vmatprep.subr.mxu0 %v1351
    %2253 = vmatpush1.msra.mxu0 %v1350
    %2254 = vmatprep.subr.mxu0 %v1359
    %2255 = vmatpush1.msra.mxu0 %v1358
    %2256 = vmatprep.subr.mxu0 %v1367
    %2257 = vmatpush1.msra.mxu0 %v1366
    %2258 = vmatprep.subr.mxu0 %v1375
    %2259 = vmatpush1.msra.mxu0 %v1374
    %2260 = vmatprep.subr.mxu0 %v1383
    %2261 = vmatpush1.msra.mxu0 %v1382
    %2262 = vmatprep.subr.mxu0 %v1391
    %2263 = vmatpush1.msra.mxu0 %v1390
    %2264 = vmatprep.subr.mxu0 %v1399
    %2265 = vmatpush1.msra.mxu0 %v1398
    %2266 = vmatprep.subr.mxu0 %v1407
    %2267 = vmatpush1.msra.mxu0 %v1406
    %2268 = vmatprep.subr.mxu0 %v1415
    %2269 = vmatpush1.msra.mxu0 %v1414
    %2270 = vmatprep.subr.mxu0 %v1423
    %2271 = vmatpush1.msra.mxu0 %v1422
    %2272 = vmatprep.subr.mxu0 %v1431
    %2273 = vmatpush1.msra.mxu0 %v1430
    %2274 = vmatprep.subr.mxu0 %v1439
    %2275 = vmatpush1.msra.mxu0 %v1438
    %2276 = vmatprep.subr.mxu0 %v1447
    %2277 = vmatpush1.msra.mxu0 %v1446
    %2278 = vmatprep.subr.mxu0 %v1455
    %2279 = vmatpush1.msra.mxu0 %v1454
    %2280 = vmatprep.subr.mxu0 %v1463
    %2281 = vmatpush1.msra.mxu0 %v1462
    %2282 = vmatprep.subr.mxu0 %v1471
    %2283 = vmatpush1.msra.mxu0 %v1470
    %2284 = vmatprep.subr.mxu0 %v1479
    %2285 = vmatpush1.msra.mxu0 %v1478
    %2286 = vmatprep.subr.mxu0 %v1487
    %2287 = vmatpush1.msra.mxu0 %v1486
    %2288 = vmatprep.subr.mxu0 %v1495
    %2289 = vmatpush1.msra.mxu0 %v1494
    %2290 = vmatprep.subr.mxu0 %v1503
    %2291 = vmatpush1.msra.mxu0 %v1502
    %2292 = vmatprep.subr.mxu0 %v1511
    %2293 = vmatpush1.msra.mxu0 %v1510
    %2294 = vmatprep.subr.mxu0 %v1519
    %2295 = vmatpush1.msra.mxu0 %v1518
    %2296 = vmatprep.subr.mxu0 %v1527
    %2297 = vmatpush1.msra.mxu0 %v1526
    %2298 = vmatprep.subr.mxu0 %v1535
    %2299 = vmatpush1.msra.mxu0 %v1534
    %2300 = vmatprep.subr.mxu0 %v1543
    %2301 = vmatpush1.msra.mxu0 %v1542
    %2302 = vmatprep.subr.mxu0 %v1551
    %2303 = vmatpush1.msra.mxu0 %v1550
    %2304 = vmatprep.subr.mxu0 %v1559
    %2305 = vmatpush1.msra.mxu0 %v1558
    %2306 = vmatprep.mubr.f32.mxu0 %v1285
    %2307 = vmatmul.mubr.f32.gmra.mrb[0].mxu0 %v1284
    %v2308 = vpop.f32.mrb[0].mxu0
    %v2309 = vadd.f32 0.0, %v2308
    %v2310 = vpop.f32.mrb[0].mxu0
    %v2311 = vadd.f32 0.0, %v2310
    %2312 = vdwg.mxu0
    %2313 = vmatprep.subr.mxu0 %v1567
    %2314 = vmatpush1.msra.mxu0 %v1566
    %2315 = vmatprep.subr.mxu0 %v1575
    %2316 = vmatpush1.msra.mxu0 %v1574
    %2317 = vmatprep.subr.mxu0 %v1583
    %2318 = vmatpush1.msra.mxu0 %v1582
    %2319 = vmatprep.subr.mxu0 %v1591
    %2320 = vmatpush1.msra.mxu0 %v1590
    %2321 = vmatprep.subr.mxu0 %v1599
    %2322 = vmatpush1.msra.mxu0 %v1598
    %2323 = vmatprep.subr.mxu0 %v1607
    %2324 = vmatpush1.msra.mxu0 %v1606
    %2325 = vmatprep.subr.mxu0 %v1615
    %2326 = vmatpush1.msra.mxu0 %v1614
    %2327 = vmatprep.subr.mxu0 %v1623
    %2328 = vmatpush1.msra.mxu0 %v1622
    %2329 = vmatprep.subr.mxu0 %v1631
    %2330 = vmatpush1.msra.mxu0 %v1630
    %2331 = vmatprep.subr.mxu0 %v1639
    %2332 = vmatpush1.msra.mxu0 %v1638
    %2333 = vmatprep.subr.mxu0 %v1647
    %2334 = vmatpush1.msra.mxu0 %v1646
    %2335 = vmatprep.subr.mxu0 %v1655
    %2336 = vmatpush1.msra.mxu0 %v1654
    %2337 = vmatprep.subr.mxu0 %v1663
    %2338 = vmatpush1.msra.mxu0 %v1662
    %2339 = vmatprep.subr.mxu0 %v1671
    %2340 = vmatpush1.msra.mxu0 %v1670
    %2341 = vmatprep.subr.mxu0 %v1679
    %2342 = vmatpush1.msra.mxu0 %v1678
    %2343 = vmatprep.subr.mxu0 %v1687
    %2344 = vmatpush1.msra.mxu0 %v1686
    %2345 = vmatprep.subr.mxu0 %v1695
    %2346 = vmatpush1.msra.mxu0 %v1694
    %2347 = vmatprep.subr.mxu0 %v1703
    %2348 = vmatpush1.msra.mxu0 %v1702
    %2349 = vmatprep.subr.mxu0 %v1711
    %2350 = vmatpush1.msra.mxu0 %v1710
    %2351 = vmatprep.subr.mxu0 %v1719
    %2352 = vmatpush1.msra.mxu0 %v1718
    %2353 = vmatprep.subr.mxu0 %v1727
    %2354 = vmatpush1.msra.mxu0 %v1726
    %2355 = vmatprep.subr.mxu0 %v1735
    %2356 = vmatpush1.msra.mxu0 %v1734
    %2357 = vmatprep.subr.mxu0 %v1743
    %2358 = vmatpush1.msra.mxu0 %v1742
    %2359 = vmatprep.subr.mxu0 %v1751
    %2360 = vmatpush1.msra.mxu0 %v1750
    %2361 = vmatprep.subr.mxu0 %v1759
    %2362 = vmatpush1.msra.mxu0 %v1758
    %2363 = vmatprep.subr.mxu0 %v1767
    %2364 = vmatpush1.msra.mxu0 %v1766
    %2365 = vmatprep.subr.mxu0 %v1775
    %2366 = vmatpush1.msra.mxu0 %v1774
    %2367 = vmatprep.subr.mxu0 %v1783
    %2368 = vmatpush1.msra.mxu0 %v1782
    %2369 = vmatprep.subr.mxu0 %v1791
    %2370 = vmatpush1.msra.mxu0 %v1790
    %2371 = vmatprep.subr.mxu0 %v1799
    %2372 = vmatpush1.msra.mxu0 %v1798
    %2373 = vmatprep.subr.mxu0 %v1807
    %2374 = vmatpush1.msra.mxu0 %v1806
    %2375 = vmatprep.subr.mxu0 %v1815
    %2376 = vmatpush1.msra.mxu0 %v1814
    %2377 = vmatprep.mubr.f32.mxu0 %v1287
    %2378 = vmatmul.mubr.f32.gmra.mrb[0].mxu0 %v1286
    %v2379 = vpop.f32.mrb[0].mxu0
    %v2380 = vadd.f32 %v2309, %v2379
    %v2381 = vpop.f32.mrb[0].mxu0
    %v2382 = vadd.f32 %v2311, %v2381
    %2383 = vdwg.mxu0
    %2384 = vrot.lane.b32.xlu0 %v1954, 4
    %v2385 = vpop.permute.xlu0 %2384
    %2386 = vrot.lane.b32.xlu0 %v1956, 4
    %v2387 = vpop.permute.xlu0 %2386
    %2388 = vrot.lane.b32.xlu0 %v2096, 4
    %v2389 = vpop.permute.xlu0 %2388
    %2390 = vrot.lane.b32.xlu0 %v2098, 4
    %v2391 = vpop.permute.xlu0 %2390
    %2392 = vrot.lane.b32.xlu0 %v2238, 4
    %v2393 = vpop.permute.xlu0 %2392
    %2394 = vrot.lane.b32.xlu0 %v2240, 4
    %v2395 = vpop.permute.xlu0 %2394
    %2396 = vrot.lane.b32.xlu0 %v2380, 4
    %v2397 = vpop.permute.xlu0 %2396
    %2398 = vrot.lane.b32.xlu0 %v2382, 4
    %v2399 = vpop.permute.xlu0 %2398
    %v2400 = vsel %vm738, %v2397, %v2399
    %v2401 = vsel %vm738, %v2395, %v2397
    %v2402 = vsel %vm738, %v2393, %v2395
    %v2403 = vsel %vm738, %v2391, %v2393
    %v2404 = vsel %vm738, %v2389, %v2391
    %v2405 = vsel %vm738, %v2387, %v2389
    %v2406 = vsel %vm738, %v2385, %v2387
    %v2407 = vsel %vm738, %v2399, %v2385
    %vm2408 = vcmp.ge.s32.totalorder %v1296, 4
    %vm2409 = vcmp.ge.s32.totalorder %v1297, 4
    %vm2410 = vcmp.ge.s32.totalorder %v1298, 4
    %vm2411 = vcmp.ge.s32.totalorder %v1299, 4
    %vm2412 = vcmp.ge.s32.totalorder %v1300, 4
    %vm2413 = vcmp.ge.s32.totalorder %v1301, 4
    %vm2414 = vcmp.ge.s32.totalorder %v1302, 4
    %vm2415 = vcmp.ge.s32.totalorder %v1303, 4
    %v2416 = vsel %vm2408, 1, 0
    %v2417 = vsel %vm2409, 1, 0
    %v2418 = vsel %vm2410, 1, 0
    %v2419 = vsel %vm2411, 1, 0
    %v2420 = vsel %vm2412, 1, 0
    %v2421 = vsel %vm2413, 1, 0
    %v2422 = vsel %vm2414, 1, 0
    %v2423 = vsel %vm2415, 1, 0
    %vm2424 = vcmp.eq.s32.totalorder %v2416, 1
    %vm2425 = vcmp.eq.s32.totalorder %v2417, 1
    %vm2426 = vcmp.eq.s32.totalorder %v2418, 1
    %vm2427 = vcmp.eq.s32.totalorder %v2419, 1
    %vm2428 = vcmp.eq.s32.totalorder %v2420, 1
    %vm2429 = vcmp.eq.s32.totalorder %v2421, 1
    %vm2430 = vcmp.eq.s32.totalorder %v2422, 1
    %vm2431 = vcmp.eq.s32.totalorder %v2423, 1
    %v2432 = vsel %vm2424, %v2407, 0.0
    %v2433 = vsel %vm2425, %v2406, 0.0
    %v2434 = vsel %vm2426, %v2405, 0.0
    %v2435 = vsel %vm2427, %v2404, 0.0
    %v2436 = vsel %vm2428, %v2403, 0.0
    %v2437 = vsel %vm2429, %v2402, 0.0
    %v2438 = vsel %vm2430, %v2401, 0.0
    %v2439 = vsel %vm2431, %v2400, 0.0
    %v2440 = vld [vmem:[%s14] sm:$0xff]
    %v2441 = vld [vmem:[%s14 + $0x8] sm:$0xff]
    %v2442 = vld [vmem:[%s14 + $0x10] sm:$0xff]
    %v2443 = vld [vmem:[%s14 + $0x18] sm:$0xff]
    %v2445 = vsel %vm191, %v2440, 0
    %v2448 = vsel %vm191, %v2441, 0
    %v2451 = vsel %vm191, %v2442, 0
    %v2454 = vsel %vm191, %v2443, 0
    %2456 = vmatprep.subr.mxu0 %v1956
    %2457 = vmatpush1.msra.mxu0 %v1954
    %2458 = vmatprep.subr.mxu0 %v2433
    %2459 = vmatpush1.msra.mxu0 %v2432
    %2460 = vmatprep.subr.mxu0 0.0
    %2461 = vmatpush1.msra.mxu0 0.0
    %2462 = vmatprep.subr.mxu0 0.0
    %2463 = vmatpush1.msra.mxu0 0.0
    %2464 = vmatprep.subr.mxu0 0.0
    %2465 = vmatpush1.msra.mxu0 0.0
    %2466 = vmatprep.subr.mxu0 0.0
    %2467 = vmatpush1.msra.mxu0 0.0
    %2468 = vmatprep.subr.mxu0 0.0
    %2469 = vmatpush1.msra.mxu0 0.0
    %2470 = vmatprep.subr.mxu0 0.0
    %2471 = vmatpush1.msra.mxu0 0.0
    %2472 = vmatprep.subr.mxu0 0.0
    %2473 = vmatpush1.msra.mxu0 0.0
    %2474 = vmatprep.subr.mxu0 0.0
    %2475 = vmatpush1.msra.mxu0 0.0
    %2476 = vmatprep.subr.mxu0 0.0
    %2477 = vmatpush1.msra.mxu0 0.0
    %2478 = vmatprep.subr.mxu0 0.0
    %2479 = vmatpush1.msra.mxu0 0.0
    %2480 = vmatprep.subr.mxu0 0.0
    %2481 = vmatpush1.msra.mxu0 0.0
    %2482 = vmatprep.subr.mxu0 0.0
    %2483 = vmatpush1.msra.mxu0 0.0
    %2484 = vmatprep.subr.mxu0 0.0
    %2485 = vmatpush1.msra.mxu0 0.0
    %2486 = vmatprep.subr.mxu0 0.0
    %2487 = vmatpush1.msra.mxu0 0.0
    %2488 = vmatprep.subr.mxu0 0.0
    %2489 = vmatpush1.msra.mxu0 0.0
    %2490 = vmatprep.subr.mxu0 0.0
    %2491 = vmatpush1.msra.mxu0 0.0
    %2492 = vmatprep.subr.mxu0 0.0
    %2493 = vmatpush1.msra.mxu0 0.0
    %2494 = vmatprep.subr.mxu0 0.0
    %2495 = vmatpush1.msra.mxu0 0.0
    %2496 = vmatprep.subr.mxu0 0.0
    %2497 = vmatpush1.msra.mxu0 0.0
    %2498 = vmatprep.subr.mxu0 0.0
    %2499 = vmatpush1.msra.mxu0 0.0
    %2500 = vmatprep.subr.mxu0 0.0
    %2501 = vmatpush1.msra.mxu0 0.0
    %2502 = vmatprep.subr.mxu0 0.0
    %2503 = vmatpush1.msra.mxu0 0.0
    %2504 = vmatprep.subr.mxu0 0.0
    %2505 = vmatpush1.msra.mxu0 0.0
    %2506 = vmatprep.subr.mxu0 0.0
    %2507 = vmatpush1.msra.mxu0 0.0
    %2508 = vmatprep.subr.mxu0 0.0
    %2509 = vmatpush1.msra.mxu0 0.0
    %2510 = vmatprep.subr.mxu0 0.0
    %2511 = vmatpush1.msra.mxu0 0.0
    %2512 = vmatprep.subr.mxu0 0.0
    %2513 = vmatpush1.msra.mxu0 0.0
    %2514 = vmatprep.subr.mxu0 0.0
    %2515 = vmatpush1.msra.mxu0 0.0
    %2516 = vmatprep.subr.mxu0 0.0
    %2517 = vmatpush1.msra.mxu0 0.0
    %2518 = vmatprep.subr.mxu0 0.0
    %2519 = vmatpush1.msra.mxu0 0.0
    %2520 = vmatprep.mubr.f32.mxu0 0.0
    %2521 = vmatmul.mubr.f32.gmra.mrb[0].mxu0 %v2445
    %v2522 = vpop.f32.mrb[0].mxu0
    %v2523 = vadd.f32 0.0, %v2522
    %v2524 = vpop.f32.mrb[0].mxu0
    %v2525 = vadd.f32 0.0, %v2524
    %2526 = vmatprep.mubr.f32.mxu0 0.0
    %2527 = vmatmul.mubr.f32.gmra.mrb[0].mxu0 %v2448
    %v2528 = vpop.f32.mrb[0].mxu0
    %v2529 = vadd.f32 0.0, %v2528
    %v2530 = vpop.f32.mrb[0].mxu0
    %v2531 = vadd.f32 0.0, %v2530
    %2532 = vmatprep.mubr.f32.mxu0 0.0
    %2533 = vmatmul.mubr.f32.gmra.mrb[0].mxu0 %v2451
    %v2534 = vpop.f32.mrb[0].mxu0
    %v2535 = vadd.f32 0.0, %v2534
    %v2536 = vpop.f32.mrb[0].mxu0
    %v2537 = vadd.f32 0.0, %v2536
    %2538 = vmatprep.mubr.f32.mxu0 0.0
    %2539 = vmatmul.mubr.f32.gmra.mrb[0].mxu0 %v2454
    %v2540 = vpop.f32.mrb[0].mxu0
    %v2541 = vadd.f32 0.0, %v2540
    %v2542 = vpop.f32.mrb[0].mxu0
    %v2543 = vadd.f32 0.0, %v2542
    %2544 = vdwg.mxu0
    %2545 = vmatprep.subr.mxu0 %v2098
    %2546 = vmatpush1.msra.mxu0 %v2096
    %2547 = vmatprep.subr.mxu0 %v2435
    %2548 = vmatpush1.msra.mxu0 %v2434
    %2549 = vmatprep.subr.mxu0 0.0
    %2550 = vmatpush1.msra.mxu0 0.0
    %2551 = vmatprep.subr.mxu0 0.0
    %2552 = vmatpush1.msra.mxu0 0.0
    %2553 = vmatprep.subr.mxu0 0.0
    %2554 = vmatpush1.msra.mxu0 0.0
    %2555 = vmatprep.subr.mxu0 0.0
    %2556 = vmatpush1.msra.mxu0 0.0
    %2557 = vmatprep.subr.mxu0 0.0
    %2558 = vmatpush1.msra.mxu0 0.0
    %2559 = vmatprep.subr.mxu0 0.0
    %2560 = vmatpush1.msra.mxu0 0.0
    %2561 = vmatprep.subr.mxu0 0.0
    %2562 = vmatpush1.msra.mxu0 0.0
    %2563 = vmatprep.subr.mxu0 0.0
    %2564 = vmatpush1.msra.mxu0 0.0
    %2565 = vmatprep.subr.mxu0 0.0
    %2566 = vmatpush1.msra.mxu0 0.0
    %2567 = vmatprep.subr.mxu0 0.0
    %2568 = vmatpush1.msra.mxu0 0.0
    %2569 = vmatprep.subr.mxu0 0.0
    %2570 = vmatpush1.msra.mxu0 0.0
    %2571 = vmatprep.subr.mxu0 0.0
    %2572 = vmatpush1.msra.mxu0 0.0
    %2573 = vmatprep.subr.mxu0 0.0
    %2574 = vmatpush1.msra.mxu0 0.0
    %2575 = vmatprep.subr.mxu0 0.0
    %2576 = vmatpush1.msra.mxu0 0.0
    %2577 = vmatprep.subr.mxu0 0.0
    %2578 = vmatpush1.msra.mxu0 0.0
    %2579 = vmatprep.subr.mxu0 0.0
    %2580 = vmatpush1.msra.mxu0 0.0
    %2581 = vmatprep.subr.mxu0 0.0
    %2582 = vmatpush1.msra.mxu0 0.0
    %2583 = vmatprep.subr.mxu0 0.0
    %2584 = vmatpush1.msra.mxu0 0.0
    %2585 = vmatprep.subr.mxu0 0.0
    %2586 = vmatpush1.msra.mxu0 0.0
    %2587 = vmatprep.subr.mxu0 0.0
    %2588 = vmatpush1.msra.mxu0 0.0
    %2589 = vmatprep.subr.mxu0 0.0
    %2590 = vmatpush1.msra.mxu0 0.0
    %2591 = vmatprep.subr.mxu0 0.0
    %2592 = vmatpush1.msra.mxu0 0.0
    %2593 = vmatprep.subr.mxu0 0.0
    %2594 = vmatpush1.msra.mxu0 0.0
    %2595 = vmatprep.subr.mxu0 0.0
    %2596 = vmatpush1.msra.mxu0 0.0
    %2597 = vmatprep.subr.mxu0 0.0
    %2598 = vmatpush1.msra.mxu0 0.0
    %2599 = vmatprep.subr.mxu0 0.0
    %2600 = vmatpush1.msra.mxu0 0.0
    %2601 = vmatprep.subr.mxu0 0.0
    %2602 = vmatpush1.msra.mxu0 0.0
    %2603 = vmatprep.subr.mxu0 0.0
    %2604 = vmatpush1.msra.mxu0 0.0
    %2605 = vmatprep.subr.mxu0 0.0
    %2606 = vmatpush1.msra.mxu0 0.0
    %2607 = vmatprep.subr.mxu0 0.0
    %2608 = vmatpush1.msra.mxu0 0.0
    %2609 = vmatprep.mubr.f32.mxu0 0.0
    %2610 = vmatmul.mubr.f32.gmra.mrb[0].mxu0 %v2445
    %v2611 = vpop.f32.mrb[0].mxu0
    %v2612 = vadd.f32 0.0, %v2611
    %v2613 = vpop.f32.mrb[0].mxu0
    %v2614 = vadd.f32 0.0, %v2613
    %2615 = vmatprep.mubr.f32.mxu0 0.0
    %2616 = vmatmul.mubr.f32.gmra.mrb[0].mxu0 %v2448
    %v2617 = vpop.f32.mrb[0].mxu0
    %v2618 = vadd.f32 0.0, %v2617
    %v2619 = vpop.f32.mrb[0].mxu0
    %v2620 = vadd.f32 0.0, %v2619
    %2621 = vmatprep.mubr.f32.mxu0 0.0
    %2622 = vmatmul.mubr.f32.gmra.mrb[0].mxu0 %v2451
    %v2623 = vpop.f32.mrb[0].mxu0
    %v2624 = vadd.f32 0.0, %v2623
    %v2625 = vpop.f32.mrb[0].mxu0
    %v2626 = vadd.f32 0.0, %v2625
    %2627 = vmatprep.mubr.f32.mxu0 0.0
    %2628 = vmatmul.mubr.f32.gmra.mrb[0].mxu0 %v2454
    %v2629 = vpop.f32.mrb[0].mxu0
    %v2630 = vadd.f32 0.0, %v2629
    %v2631 = vpop.f32.mrb[0].mxu0
    %v2632 = vadd.f32 0.0, %v2631
    %2633 = vdwg.mxu0
    %2634 = vmatprep.subr.mxu0 %v2240
    %2635 = vmatpush1.msra.mxu0 %v2238
    %2636 = vmatprep.subr.mxu0 %v2437
    %2637 = vmatpush1.msra.mxu0 %v2436
    %2638 = vmatprep.subr.mxu0 0.0
    %2639 = vmatpush1.msra.mxu0 0.0
    %2640 = vmatprep.subr.mxu0 0.0
    %2641 = vmatpush1.msra.mxu0 0.0
    %2642 = vmatprep.subr.mxu0 0.0
    %2643 = vmatpush1.msra.mxu0 0.0
    %2644 = vmatprep.subr.mxu0 0.0
    %2645 = vmatpush1.msra.mxu0 0.0
    %2646 = vmatprep.subr.mxu0 0.0
    %2647 = vmatpush1.msra.mxu0 0.0
    %2648 = vmatprep.subr.mxu0 0.0
    %2649 = vmatpush1.msra.mxu0 0.0
    %2650 = vmatprep.subr.mxu0 0.0
    %2651 = vmatpush1.msra.mxu0 0.0
    %2652 = vmatprep.subr.mxu0 0.0
    %2653 = vmatpush1.msra.mxu0 0.0
    %2654 = vmatprep.subr.mxu0 0.0
    %2655 = vmatpush1.msra.mxu0 0.0
    %2656 = vmatprep.subr.mxu0 0.0
    %2657 = vmatpush1.msra.mxu0 0.0
    %2658 = vmatprep.subr.mxu0 0.0
    %2659 = vmatpush1.msra.mxu0 0.0
    %2660 = vmatprep.subr.mxu0 0.0
    %2661 = vmatpush1.msra.mxu0 0.0
    %2662 = vmatprep.subr.mxu0 0.0
    %2663 = vmatpush1.msra.mxu0 0.0
    %2664 = vmatprep.subr.mxu0 0.0
    %2665 = vmatpush1.msra.mxu0 0.0
    %2666 = vmatprep.subr.mxu0 0.0
    %2667 = vmatpush1.msra.mxu0 0.0
    %2668 = vmatprep.subr.mxu0 0.0
    %2669 = vmatpush1.msra.mxu0 0.0
    %2670 = vmatprep.subr.mxu0 0.0
    %2671 = vmatpush1.msra.mxu0 0.0
    %2672 = vmatprep.subr.mxu0 0.0
    %2673 = vmatpush1.msra.mxu0 0.0
    %2674 = vmatprep.subr.mxu0 0.0
    %2675 = vmatpush1.msra.mxu0 0.0
    %2676 = vmatprep.subr.mxu0 0.0
    %2677 = vmatpush1.msra.mxu0 0.0
    %2678 = vmatprep.subr.mxu0 0.0
    %2679 = vmatpush1.msra.mxu0 0.0
    %2680 = vmatprep.subr.mxu0 0.0
    %2681 = vmatpush1.msra.mxu0 0.0
    %2682 = vmatprep.subr.mxu0 0.0
    %2683 = vmatpush1.msra.mxu0 0.0
    %2684 = vmatprep.subr.mxu0 0.0
    %2685 = vmatpush1.msra.mxu0 0.0
    %2686 = vmatprep.subr.mxu0 0.0
    %2687 = vmatpush1.msra.mxu0 0.0
    %2688 = vmatprep.subr.mxu0 0.0
    %2689 = vmatpush1.msra.mxu0 0.0
    %2690 = vmatprep.subr.mxu0 0.0
    %2691 = vmatpush1.msra.mxu0 0.0
    %2692 = vmatprep.subr.mxu0 0.0
    %2693 = vmatpush1.msra.mxu0 0.0
    %2694 = vmatprep.subr.mxu0 0.0
    %2695 = vmatpush1.msra.mxu0 0.0
    %2696 = vmatprep.subr.mxu0 0.0
    %2697 = vmatpush1.msra.mxu0 0.0
    %2698 = vmatprep.mubr.f32.mxu0 0.0
    %2699 = vmatmul.mubr.f32.gmra.mrb[0].mxu0 %v2445
    %v2700 = vpop.f32.mrb[0].mxu0
    %v2701 = vadd.f32 0.0, %v2700
    %v2702 = vpop.f32.mrb[0].mxu0
    %v2703 = vadd.f32 0.0, %v2702
    %2704 = vmatprep.mubr.f32.mxu0 0.0
    %2705 = vmatmul.mubr.f32.gmra.mrb[0].mxu0 %v2448
    %v2706 = vpop.f32.mrb[0].mxu0
    %v2707 = vadd.f32 0.0, %v2706
    %v2708 = vpop.f32.mrb[0].mxu0
    %v2709 = vadd.f32 0.0, %v2708
    %2710 = vmatprep.mubr.f32.mxu0 0.0
    %2711 = vmatmul.mubr.f32.gmra.mrb[0].mxu0 %v2451
    %v2712 = vpop.f32.mrb[0].mxu0
    %v2713 = vadd.f32 0.0, %v2712
    %v2714 = vpop.f32.mrb[0].mxu0
    %v2715 = vadd.f32 0.0, %v2714
    %2716 = vmatprep.mubr.f32.mxu0 0.0
    %2717 = vmatmul.mubr.f32.gmra.mrb[0].mxu0 %v2454
    %v2718 = vpop.f32.mrb[0].mxu0
    %v2719 = vadd.f32 0.0, %v2718
    %v2720 = vpop.f32.mrb[0].mxu0
    %v2721 = vadd.f32 0.0, %v2720
    %2722 = vdwg.mxu0
    %2723 = vmatprep.subr.mxu0 %v2382
    %2724 = vmatpush1.msra.mxu0 %v2380
    %2725 = vmatprep.subr.mxu0 %v2439
    %2726 = vmatpush1.msra.mxu0 %v2438
    %2727 = vmatprep.subr.mxu0 0.0
    %2728 = vmatpush1.msra.mxu0 0.0
    %2729 = vmatprep.subr.mxu0 0.0
    %2730 = vmatpush1.msra.mxu0 0.0
    %2731 = vmatprep.subr.mxu0 0.0
    %2732 = vmatpush1.msra.mxu0 0.0
    %2733 = vmatprep.subr.mxu0 0.0
    %2734 = vmatpush1.msra.mxu0 0.0
    %2735 = vmatprep.subr.mxu0 0.0
    %2736 = vmatpush1.msra.mxu0 0.0
    %2737 = vmatprep.subr.mxu0 0.0
    %2738 = vmatpush1.msra.mxu0 0.0
    %2739 = vmatprep.subr.mxu0 0.0
    %2740 = vmatpush1.msra.mxu0 0.0
    %2741 = vmatprep.subr.mxu0 0.0
    %2742 = vmatpush1.msra.mxu0 0.0
    %2743 = vmatprep.subr.mxu0 0.0
    %2744 = vmatpush1.msra.mxu0 0.0
    %2745 = vmatprep.subr.mxu0 0.0
    %2746 = vmatpush1.msra.mxu0 0.0
    %2747 = vmatprep.subr.mxu0 0.0
    %2748 = vmatpush1.msra.mxu0 0.0
    %2749 = vmatprep.subr.mxu0 0.0
    %2750 = vmatpush1.msra.mxu0 0.0
    %2751 = vmatprep.subr.mxu0 0.0
    %2752 = vmatpush1.msra.mxu0 0.0
    %2753 = vmatprep.subr.mxu0 0.0
    %2754 = vmatpush1.msra.mxu0 0.0
    %2755 = vmatprep.subr.mxu0 0.0
    %2756 = vmatpush1.msra.mxu0 0.0
    %2757 = vmatprep.subr.mxu0 0.0
    %2758 = vmatpush1.msra.mxu0 0.0
    %2759 = vmatprep.subr.mxu0 0.0
    %2760 = vmatpush1.msra.mxu0 0.0
    %2761 = vmatprep.subr.mxu0 0.0
    %2762 = vmatpush1.msra.mxu0 0.0
    %2763 = vmatprep.subr.mxu0 0.0
    %2764 = vmatpush1.msra.mxu0 0.0
    %2765 = vmatprep.subr.mxu0 0.0
    %2766 = vmatpush1.msra.mxu0 0.0
    %2767 = vmatprep.subr.mxu0 0.0
    %2768 = vmatpush1.msra.mxu0 0.0
    %2769 = vmatprep.subr.mxu0 0.0
    %2770 = vmatpush1.msra.mxu0 0.0
    %2771 = vmatprep.subr.mxu0 0.0
    %2772 = vmatpush1.msra.mxu0 0.0
    %2773 = vmatprep.subr.mxu0 0.0
    %2774 = vmatpush1.msra.mxu0 0.0
    %2775 = vmatprep.subr.mxu0 0.0
    %2776 = vmatpush1.msra.mxu0 0.0
    %2777 = vmatprep.subr.mxu0 0.0
    %2778 = vmatpush1.msra.mxu0 0.0
    %2779 = vmatprep.subr.mxu0 0.0
    %2780 = vmatpush1.msra.mxu0 0.0
    %2781 = vmatprep.subr.mxu0 0.0
    %2782 = vmatpush1.msra.mxu0 0.0
    %2783 = vmatprep.subr.mxu0 0.0
    %2784 = vmatpush1.msra.mxu0 0.0
    %2785 = vmatprep.subr.mxu0 0.0
    %2786 = vmatpush1.msra.mxu0 0.0
    %2787 = vmatprep.mubr.f32.mxu0 0.0
    %2788 = vmatmul.mubr.f32.gmra.mrb[0].mxu0 %v2445
    %v2789 = vpop.f32.mrb[0].mxu0
    %v2790 = vadd.f32 0.0, %v2789
    %v2791 = vpop.f32.mrb[0].mxu0
    %v2792 = vadd.f32 0.0, %v2791
    %2793 = vmatprep.mubr.f32.mxu0 0.0
    %2794 = vmatmul.mubr.f32.gmra.mrb[0].mxu0 %v2448
    %v2795 = vpop.f32.mrb[0].mxu0
    %v2796 = vadd.f32 0.0, %v2795
    %v2797 = vpop.f32.mrb[0].mxu0
    %v2798 = vadd.f32 0.0, %v2797
    %2799 = vmatprep.mubr.f32.mxu0 0.0
    %2800 = vmatmul.mubr.f32.gmra.mrb[0].mxu0 %v2451
    %v2801 = vpop.f32.mrb[0].mxu0
    %v2802 = vadd.f32 0.0, %v2801
    %v2803 = vpop.f32.mrb[0].mxu0
    %v2804 = vadd.f32 0.0, %v2803
    %2805 = vmatprep.mubr.f32.mxu0 0.0
    %2806 = vmatmul.mubr.f32.gmra.mrb[0].mxu0 %v2454
    %v2807 = vpop.f32.mrb[0].mxu0
    %v2808 = vadd.f32 0.0, %v2807
    %v2809 = vpop.f32.mrb[0].mxu0
    %v2810 = vadd.f32 0.0, %v2809
    %2811 = vdwg.mxu0
    %v2812 = vand.u32 %v1292, 3
    %v2813 = vand.u32 %v1293, 3
    %v2814 = vand.u32 %v1294, 3
    %v2815 = vand.u32 %v1295, 3
    %vm2816 = vcmp.eq.s32.totalorder %v2812, 0
    %vm2817 = vcmp.eq.s32.totalorder %v2813, 0
    %vm2818 = vcmp.eq.s32.totalorder %v2814, 0
    %vm2819 = vcmp.eq.s32.totalorder %v2815, 0
    %v2820 = vsel %vm2816, 1, 0
    %v2821 = vsel %vm2817, 1, 0
    %v2822 = vsel %vm2818, 1, 0
    %v2823 = vsel %vm2819, 1, 0
    %vm2824 = vcmp.eq.s32.totalorder %v2820, 1
    %vm2825 = vcmp.eq.s32.totalorder %v2821, 1
    %vm2826 = vcmp.eq.s32.totalorder %v2822, 1
    %vm2827 = vcmp.eq.s32.totalorder %v2823, 1
    %v2828 = vsel %vm387, %v2523, 0.0
    %v2829 = vsel %vm962, %v2525, 0.0
    %v2830 = vsel %vm963, %v2612, 0.0
    %v2831 = vsel %vm964, %v2614, 0.0
    %v2832 = vsel %vm2824, %v2701, 0.0
    %v2833 = vsel %vm2825, %v2703, 0.0
    %v2834 = vsel %vm2826, %v2790, 0.0
    %v2835 = vsel %vm2827, %v2792, 0.0
    %vm2836 = vcmp.eq.s32.totalorder %v2812, 1
    %vm2837 = vcmp.eq.s32.totalorder %v2813, 1
    %vm2838 = vcmp.eq.s32.totalorder %v2814, 1
    %vm2839 = vcmp.eq.s32.totalorder %v2815, 1
    %v2840 = vsel %vm2836, 1, 0
    %v2841 = vsel %vm2837, 1, 0
    %v2842 = vsel %vm2838, 1, 0
    %v2843 = vsel %vm2839, 1, 0
    %vm2844 = vcmp.eq.s32.totalorder %v2840, 1
    %vm2845 = vcmp.eq.s32.totalorder %v2841, 1
    %vm2846 = vcmp.eq.s32.totalorder %v2842, 1
    %vm2847 = vcmp.eq.s32.totalorder %v2843, 1
    %v2848 = vsel %vm391, %v2529, 0.0
    %v2849 = vsel %vm975, %v2531, 0.0
    %v2850 = vsel %vm976, %v2618, 0.0
    %v2851 = vsel %vm977, %v2620, 0.0
    %v2852 = vsel %vm2844, %v2707, 0.0
    %v2853 = vsel %vm2845, %v2709, 0.0
    %v2854 = vsel %vm2846, %v2796, 0.0
    %v2855 = vsel %vm2847, %v2798, 0.0
    %v2856 = vadd.f32 %v2828, %v2848
    %v2857 = vadd.f32 %v2829, %v2849
    %v2858 = vadd.f32 %v2830, %v2850
    %v2859 = vadd.f32 %v2831, %v2851
    %v2860 = vadd.f32 %v2832, %v2852
    %v2861 = vadd.f32 %v2833, %v2853
    %v2862 = vadd.f32 %v2834, %v2854
    %v2863 = vadd.f32 %v2835, %v2855
    %vm2864 = vcmp.eq.s32.totalorder %v2812, 2
    %vm2865 = vcmp.eq.s32.totalorder %v2813, 2
    %vm2866 = vcmp.eq.s32.totalorder %v2814, 2
    %vm2867 = vcmp.eq.s32.totalorder %v2815, 2
    %v2868 = vsel %vm2864, 1, 0
    %v2869 = vsel %vm2865, 1, 0
    %v2870 = vsel %vm2866, 1, 0
    %v2871 = vsel %vm2867, 1, 0
    %vm2872 = vcmp.eq.s32.totalorder %v2868, 1
    %vm2873 = vcmp.eq.s32.totalorder %v2869, 1
    %vm2874 = vcmp.eq.s32.totalorder %v2870, 1
    %vm2875 = vcmp.eq.s32.totalorder %v2871, 1
    %v2876 = vsel %vm396, %v2535, 0.0
    %v2877 = vsel %vm992, %v2537, 0.0
    %v2878 = vsel %vm993, %v2624, 0.0
    %v2879 = vsel %vm994, %v2626, 0.0
    %v2880 = vsel %vm2872, %v2713, 0.0
    %v2881 = vsel %vm2873, %v2715, 0.0
    %v2882 = vsel %vm2874, %v2802, 0.0
    %v2883 = vsel %vm2875, %v2804, 0.0
    %v2884 = vadd.f32 %v2856, %v2876
    %v2885 = vadd.f32 %v2857, %v2877
    %v2886 = vadd.f32 %v2858, %v2878
    %v2887 = vadd.f32 %v2859, %v2879
    %v2888 = vadd.f32 %v2860, %v2880
    %v2889 = vadd.f32 %v2861, %v2881
    %v2890 = vadd.f32 %v2862, %v2882
    %v2891 = vadd.f32 %v2863, %v2883
    %vm2892 = vcmp.eq.s32.totalorder %v2812, 3
    %vm2893 = vcmp.eq.s32.totalorder %v2813, 3
    %vm2894 = vcmp.eq.s32.totalorder %v2814, 3
    %vm2895 = vcmp.eq.s32.totalorder %v2815, 3
    %v2896 = vsel %vm2892, 1, 0
    %v2897 = vsel %vm2893, 1, 0
    %v2898 = vsel %vm2894, 1, 0
    %v2899 = vsel %vm2895, 1, 0
    %vm2900 = vcmp.eq.s32.totalorder %v2896, 1
    %vm2901 = vcmp.eq.s32.totalorder %v2897, 1
    %vm2902 = vcmp.eq.s32.totalorder %v2898, 1
    %vm2903 = vcmp.eq.s32.totalorder %v2899, 1
    %v2904 = vsel %vm401, %v2541, 0.0
    %v2905 = vsel %vm1009, %v2543, 0.0
    %v2906 = vsel %vm1010, %v2630, 0.0
    %v2907 = vsel %vm1011, %v2632, 0.0
    %v2908 = vsel %vm2900, %v2719, 0.0
    %v2909 = vsel %vm2901, %v2721, 0.0
    %v2910 = vsel %vm2902, %v2808, 0.0
    %v2911 = vsel %vm2903, %v2810, 0.0
    %v2912 = vadd.f32 %v2884, %v2904
    %v2913 = vadd.f32 %v2885, %v2905
    %v2914 = vadd.f32 %v2886, %v2906
    %v2915 = vadd.f32 %v2887, %v2907
    %v2916 = vadd.f32 %v2888, %v2908
    %v2917 = vadd.f32 %v2889, %v2909
    %v2918 = vadd.f32 %v2890, %v2910
    %v2919 = vadd.f32 %v2891, %v2911
    %v2920 = vld [vmem:[%s15] sm:$0xff]
    %2922 = vset.pattern.permute.xlu0 0
    %2923 = vperm.xlu0 %2922, %v2920
    %v2924 = vpop.permute.xlu0 %2923
    %v2926 = vadd.f32 %v2912, %v2924
    %v2927 = vadd.f32 %v2913, %v2924
    %v2928 = vadd.f32 %v2914, %v2924
    %v2929 = vadd.f32 %v2915, %v2924
    %v2930 = vadd.f32 %v2916, %v2924
    %v2931 = vadd.f32 %v2917, %v2924
    %v2932 = vadd.f32 %v2918, %v2924
    %v2933 = vadd.f32 %v2919, %v2924
    %vm2934 = vcmp.gt.f32.partialorder %v2926, 0.0
    %vm2935 = vcmp.gt.f32.partialorder %v2927, 0.0
    %vm2936 = vcmp.gt.f32.partialorder %v2928, 0.0
    %vm2937 = vcmp.gt.f32.partialorder %v2929, 0.0
    %vm2938 = vcmp.gt.f32.partialorder %v2930, 0.0
    %vm2939 = vcmp.gt.f32.partialorder %v2931, 0.0
    %vm2940 = vcmp.gt.f32.partialorder %v2932, 0.0
    %vm2941 = vcmp.gt.f32.partialorder %v2933, 0.0
    %v2942 = vmul.f32 %v2926, 0.1
    %v2943 = vmul.f32 %v2927, 0.1
    %v2944 = vmul.f32 %v2928, 0.1
    %v2945 = vmul.f32 %v2929, 0.1
    %v2946 = vmul.f32 %v2930, 0.1
    %v2947 = vmul.f32 %v2931, 0.1
    %v2948 = vmul.f32 %v2932, 0.1
    %v2949 = vmul.f32 %v2933, 0.1
    %v2950 = vsel %vm2934, %v2926, %v2942
    %v2951 = vsel %vm2935, %v2927, %v2943
    %v2952 = vsel %vm2936, %v2928, %v2944
    %v2953 = vsel %vm2937, %v2929, %v2945
    %v2954 = vsel %vm2938, %v2930, %v2946
    %v2955 = vsel %vm2939, %v2931, %v2947
    %v2956 = vsel %vm2940, %v2932, %v2948
    %v2957 = vsel %vm2941, %v2933, %v2949
    %v2958 = vld [vmem:[%s16] sm:$0xff]
    %v2959 = vld [vmem:[%s16 + $0x8] sm:$0xff]
    %v2960 = vld [vmem:[%s16 + $0x10] sm:$0xff]
    %v2961 = vld [vmem:[%s16 + $0x18] sm:$0xff]
    %v2962 = vld [vmem:[%s16 + $0x20] sm:$0xff]
    %2964 = vset.pattern.permute.xlu0 0
    %2965 = vperm.xlu0 %2964, %v2960
    %v2966 = vpop.permute.xlu0 %2965
    %v2968 = vmul.f32 %v2966, %v2950
    %v2969 = vmul.f32 %v2966, %v2951
    %v2970 = vmul.f32 %v2966, %v2952
    %v2971 = vmul.f32 %v2966, %v2953
    %v2972 = vmul.f32 %v2966, %v2954
    %v2973 = vmul.f32 %v2966, %v2955
    %v2974 = vmul.f32 %v2966, %v2956
    %v2975 = vmul.f32 %v2966, %v2957
    %2976 = vrot.lane.b32.xlu0 %v2950, 2
    %v2977 = vpop.permute.xlu0 %2976
    %2978 = vrot.lane.b32.xlu0 %v2951, 2
    %v2979 = vpop.permute.xlu0 %2978
    %2980 = vrot.lane.b32.xlu0 %v2952, 2
    %v2981 = vpop.permute.xlu0 %2980
    %2982 = vrot.lane.b32.xlu0 %v2953, 2
    %v2983 = vpop.permute.xlu0 %2982
    %2984 = vrot.lane.b32.xlu0 %v2954, 2
    %v2985 = vpop.permute.xlu0 %2984
    %2986 = vrot.lane.b32.xlu0 %v2955, 2
    %v2987 = vpop.permute.xlu0 %2986
    %2988 = vrot.lane.b32.xlu0 %v2956, 2
    %v2989 = vpop.permute.xlu0 %2988
    %2990 = vrot.lane.b32.xlu0 %v2957, 2
    %v2991 = vpop.permute.xlu0 %2990
    %vm2992 = vcmp.lt.s32.totalorder %v187, 2
    %v2993 = vsel %vm2992, %v2989, %v2991
    %v2994 = vsel %vm2992, %v2987, %v2989
    %v2995 = vsel %vm2992, %v2985, %v2987
    %v2996 = vsel %vm2992, %v2983, %v2985
    %v2997 = vsel %vm2992, %v2981, %v2983
    %v2998 = vsel %vm2992, %v2979, %v2981
    %v2999 = vsel %vm2992, %v2977, %v2979
    %v3000 = vsel %vm2992, %v2991, %v2977
    %vm3001 = vcmp.ge.s32.totalorder %v1296, 2
    %vm3002 = vcmp.ge.s32.totalorder %v1297, 2
    %vm3003 = vcmp.ge.s32.totalorder %v1298, 2
    %vm3004 = vcmp.ge.s32.totalorder %v1299, 2
    %vm3005 = vcmp.ge.s32.totalorder %v1300, 2
    %vm3006 = vcmp.ge.s32.totalorder %v1301, 2
    %vm3007 = vcmp.ge.s32.totalorder %v1302, 2
    %vm3008 = vcmp.ge.s32.totalorder %v1303, 2
    %v3009 = vsel %vm3001, 1, 0
    %v3010 = vsel %vm3002, 1, 0
    %v3011 = vsel %vm3003, 1, 0
    %v3012 = vsel %vm3004, 1, 0
    %v3013 = vsel %vm3005, 1, 0
    %v3014 = vsel %vm3006, 1, 0
    %v3015 = vsel %vm3007, 1, 0
    %v3016 = vsel %vm3008, 1, 0
    %vm3017 = vcmp.eq.s32.totalorder %v3009, 1
    %vm3018 = vcmp.eq.s32.totalorder %v3010, 1
    %vm3019 = vcmp.eq.s32.totalorder %v3011, 1
    %vm3020 = vcmp.eq.s32.totalorder %v3012, 1
    %vm3021 = vcmp.eq.s32.totalorder %v3013, 1
    %vm3022 = vcmp.eq.s32.totalorder %v3014, 1
    %vm3023 = vcmp.eq.s32.totalorder %v3015, 1
    %vm3024 = vcmp.eq.s32.totalorder %v3016, 1
    %v3025 = vsel %vm3017, %v3000, 0.0
    %v3026 = vsel %vm3018, %v2999, 0.0
    %v3027 = vsel %vm3019, %v2998, 0.0
    %v3028 = vsel %vm3020, %v2997, 0.0
    %v3029 = vsel %vm3021, %v2996, 0.0
    %v3030 = vsel %vm3022, %v2995, 0.0
    %v3031 = vsel %vm3023, %v2994, 0.0
    %v3032 = vsel %vm3024, %v2993, 0.0
    %3034 = vset.pattern.permute.xlu0 0
    %3035 = vperm.xlu0 %3034, %v2958
    %v3036 = vpop.permute.xlu0 %3035
    %v3038 = vmul.f32 %v3036, %v3025
    %v3039 = vmul.f32 %v3036, %v3026
    %v3040 = vmul.f32 %v3036, %v3027
    %v3041 = vmul.f32 %v3036, %v3028
    %v3042 = vmul.f32 %v3036, %v3029
    %v3043 = vmul.f32 %v3036, %v3030
    %v3044 = vmul.f32 %v3036, %v3031
    %v3045 = vmul.f32 %v3036, %v3032
    %v3046 = vadd.f32 %v2968, %v3038
    %v3047 = vadd.f32 %v2969, %v3039
    %v3048 = vadd.f32 %v2970, %v3040
    %v3049 = vadd.f32 %v2971, %v3041
    %v3050 = vadd.f32 %v2972, %v3042
    %v3051 = vadd.f32 %v2973, %v3043
    %v3052 = vadd.f32 %v2974, %v3044
    %v3053 = vadd.f32 %v2975, %v3045
    %3054 = vrot.lane.b32.xlu0 %v2950, 1
    %v3055 = vpop.permute.xlu0 %3054
    %3056 = vrot.lane.b32.xlu0 %v2951, 1
    %v3057 = vpop.permute.xlu0 %3056
    %3058 = vrot.lane.b32.xlu0 %v2952, 1
    %v3059 = vpop.permute.xlu0 %3058
    %3060 = vrot.lane.b32.xlu0 %v2953, 1
    %v3061 = vpop.permute.xlu0 %3060
    %3062 = vrot.lane.b32.xlu0 %v2954, 1
    %v3063 = vpop.permute.xlu0 %3062
    %3064 = vrot.lane.b32.xlu0 %v2955, 1
    %v3065 = vpop.permute.xlu0 %3064
    %3066 = vrot.lane.b32.xlu0 %v2956, 1
    %v3067 = vpop.permute.xlu0 %3066
    %3068 = vrot.lane.b32.xlu0 %v2957, 1
    %v3069 = vpop.permute.xlu0 %3068
    %v3070 = vsel %vm1070, %v3067, %v3069
    %v3071 = vsel %vm1070, %v3065, %v3067
    %v3072 = vsel %vm1070, %v3063, %v3065
    %v3073 = vsel %vm1070, %v3061, %v3063
    %v3074 = vsel %vm1070, %v3059, %v3061
    %v3075 = vsel %vm1070, %v3057, %v3059
    %v3076 = vsel %vm1070, %v3055, %v3057
    %v3077 = vsel %vm1070, %v3069, %v3055
    %vm3078 = vcmp.ge.s32.totalorder %v1296, 1
    %vm3079 = vcmp.ge.s32.totalorder %v1297, 1
    %vm3080 = vcmp.ge.s32.totalorder %v1298, 1
    %vm3081 = vcmp.ge.s32.totalorder %v1299, 1
    %vm3082 = vcmp.ge.s32.totalorder %v1300, 1
    %vm3083 = vcmp.ge.s32.totalorder %v1301, 1
    %vm3084 = vcmp.ge.s32.totalorder %v1302, 1
    %vm3085 = vcmp.ge.s32.totalorder %v1303, 1
    %v3086 = vsel %vm3078, 1, 0
    %v3087 = vsel %vm3079, 1, 0
    %v3088 = vsel %vm3080, 1, 0
    %v3089 = vsel %vm3081, 1, 0
    %v3090 = vsel %vm3082, 1, 0
    %v3091 = vsel %vm3083, 1, 0
    %v3092 = vsel %vm3084, 1, 0
    %v3093 = vsel %vm3085, 1, 0
    %vm3094 = vcmp.eq.s32.totalorder %v3086, 1
    %vm3095 = vcmp.eq.s32.totalorder %v3087, 1
    %vm3096 = vcmp.eq.s32.totalorder %v3088, 1
    %vm3097 = vcmp.eq.s32.totalorder %v3089, 1
    %vm3098 = vcmp.eq.s32.totalorder %v3090, 1
    %vm3099 = vcmp.eq.s32.totalorder %v3091, 1
    %vm3100 = vcmp.eq.s32.totalorder %v3092, 1
    %vm3101 = vcmp.eq.s32.totalorder %v3093, 1
    %v3102 = vsel %vm3094, %v3077, 0.0
    %v3103 = vsel %vm3095, %v3076, 0.0
    %v3104 = vsel %vm3096, %v3075, 0.0
    %v3105 = vsel %vm3097, %v3074, 0.0
    %v3106 = vsel %vm3098, %v3073, 0.0
    %v3107 = vsel %vm3099, %v3072, 0.0
    %v3108 = vsel %vm3100, %v3071, 0.0
    %v3109 = vsel %vm3101, %v3070, 0.0
    %3111 = vset.pattern.permute.xlu0 0
    %3112 = vperm.xlu0 %3111, %v2959
    %v3113 = vpop.permute.xlu0 %3112
    %v3115 = vmul.f32 %v3113, %v3102
    %v3116 = vmul.f32 %v3113, %v3103
    %v3117 = vmul.f32 %v3113, %v3104
    %v3118 = vmul.f32 %v3113, %v3105
    %v3119 = vmul.f32 %v3113, %v3106
    %v3120 = vmul.f32 %v3113, %v3107
    %v3121 = vmul.f32 %v3113, %v3108
    %v3122 = vmul.f32 %v3113, %v3109
    %v3123 = vadd.f32 %v3046, %v3115
    %v3124 = vadd.f32 %v3047, %v3116
    %v3125 = vadd.f32 %v3048, %v3117
    %v3126 = vadd.f32 %v3049, %v3118
    %v3127 = vadd.f32 %v3050, %v3119
    %v3128 = vadd.f32 %v3051, %v3120
    %v3129 = vadd.f32 %v3052, %v3121
    %v3130 = vadd.f32 %v3053, %v3122
    %3131 = vrot.lane.b32.xlu0 %v2950, 127
    %v3132 = vpop.permute.xlu0 %3131
    %3133 = vrot.lane.b32.xlu0 %v2951, 127
    %v3134 = vpop.permute.xlu0 %3133
    %3135 = vrot.lane.b32.xlu0 %v2952, 127
    %v3136 = vpop.permute.xlu0 %3135
    %3137 = vrot.lane.b32.xlu0 %v2953, 127
    %v3138 = vpop.permute.xlu0 %3137
    %3139 = vrot.lane.b32.xlu0 %v2954, 127
    %v3140 = vpop.permute.xlu0 %3139
    %3141 = vrot.lane.b32.xlu0 %v2955, 127
    %v3142 = vpop.permute.xlu0 %3141
    %3143 = vrot.lane.b32.xlu0 %v2956, 127
    %v3144 = vpop.permute.xlu0 %3143
    %3145 = vrot.lane.b32.xlu0 %v2957, 127
    %v3146 = vpop.permute.xlu0 %3145
    %v3147 = vsel %vm1099, %v3144, %v3146
    %v3148 = vsel %vm1099, %v3142, %v3144
    %v3149 = vsel %vm1099, %v3140, %v3142
    %v3150 = vsel %vm1099, %v3138, %v3140
    %v3151 = vsel %vm1099, %v3136, %v3138
    %v3152 = vsel %vm1099, %v3134, %v3136
    %v3153 = vsel %vm1099, %v3132, %v3134
    %v3154 = vsel %vm1099, %v3146, %v3132
    %vm3155 = vcmp.le.s32.totalorder %v1296, 510
    %vm3156 = vcmp.le.s32.totalorder %v1297, 510
    %vm3157 = vcmp.le.s32.totalorder %v1298, 510
    %vm3158 = vcmp.le.s32.totalorder %v1299, 510
    %vm3159 = vcmp.le.s32.totalorder %v1300, 510
    %vm3160 = vcmp.le.s32.totalorder %v1301, 510
    %vm3161 = vcmp.le.s32.totalorder %v1302, 510
    %vm3162 = vcmp.le.s32.totalorder %v1303, 510
    %v3163 = vsel %vm3155, 1, 0
    %v3164 = vsel %vm3156, 1, 0
    %v3165 = vsel %vm3157, 1, 0
    %v3166 = vsel %vm3158, 1, 0
    %v3167 = vsel %vm3159, 1, 0
    %v3168 = vsel %vm3160, 1, 0
    %v3169 = vsel %vm3161, 1, 0
    %v3170 = vsel %vm3162, 1, 0
    %vm3171 = vcmp.eq.s32.totalorder %v3163, 1
    %vm3172 = vcmp.eq.s32.totalorder %v3164, 1
    %vm3173 = vcmp.eq.s32.totalorder %v3165, 1
    %vm3174 = vcmp.eq.s32.totalorder %v3166, 1
    %vm3175 = vcmp.eq.s32.totalorder %v3167, 1
    %vm3176 = vcmp.eq.s32.totalorder %v3168, 1
    %vm3177 = vcmp.eq.s32.totalorder %v3169, 1
    %vm3178 = vcmp.eq.s32.totalorder %v3170, 1
    %v3179 = vsel %vm3171, %v3153, 0.0
    %v3180 = vsel %vm3172, %v3152, 0.0
    %v3181 = vsel %vm3173, %v3151, 0.0
    %v3182 = vsel %vm3174, %v3150, 0.0
    %v3183 = vsel %vm3175, %v3149, 0.0
    %v3184 = vsel %vm3176, %v3148, 0.0
    %v3185 = vsel %vm3177, %v3147, 0.0
    %v3186 = vsel %vm3178, %v3154, 0.0
    %3188 = vset.pattern.permute.xlu0 0
    %3189 = vperm.xlu0 %3188, %v2961
    %v3190 = vpop.permute.xlu0 %3189
    %v3192 = vmul.f32 %v3190, %v3179
    %v3193 = vmul.f32 %v3190, %v3180
    %v3194 = vmul.f32 %v3190, %v3181
    %v3195 = vmul.f32 %v3190, %v3182
    %v3196 = vmul.f32 %v3190, %v3183
    %v3197 = vmul.f32 %v3190, %v3184
    %v3198 = vmul.f32 %v3190, %v3185
    %v3199 = vmul.f32 %v3190, %v3186
    %v3200 = vadd.f32 %v3123, %v3192
    %v3201 = vadd.f32 %v3124, %v3193
    %v3202 = vadd.f32 %v3125, %v3194
    %v3203 = vadd.f32 %v3126, %v3195
    %v3204 = vadd.f32 %v3127, %v3196
    %v3205 = vadd.f32 %v3128, %v3197
    %v3206 = vadd.f32 %v3129, %v3198
    %v3207 = vadd.f32 %v3130, %v3199
    %3208 = vrot.lane.b32.xlu0 %v2950, 126
    %v3209 = vpop.permute.xlu0 %3208
    %3210 = vrot.lane.b32.xlu0 %v2951, 126
    %v3211 = vpop.permute.xlu0 %3210
    %3212 = vrot.lane.b32.xlu0 %v2952, 126
    %v3213 = vpop.permute.xlu0 %3212
    %3214 = vrot.lane.b32.xlu0 %v2953, 126
    %v3215 = vpop.permute.xlu0 %3214
    %3216 = vrot.lane.b32.xlu0 %v2954, 126
    %v3217 = vpop.permute.xlu0 %3216
    %3218 = vrot.lane.b32.xlu0 %v2955, 126
    %v3219 = vpop.permute.xlu0 %3218
    %3220 = vrot.lane.b32.xlu0 %v2956, 126
    %v3221 = vpop.permute.xlu0 %3220
    %3222 = vrot.lane.b32.xlu0 %v2957, 126
    %v3223 = vpop.permute.xlu0 %3222
    %vm3224 = vcmp.lt.s32.totalorder %v187, 126
    %v3225 = vsel %vm3224, %v3221, %v3223
    %v3226 = vsel %vm3224, %v3219, %v3221
    %v3227 = vsel %vm3224, %v3217, %v3219
    %v3228 = vsel %vm3224, %v3215, %v3217
    %v3229 = vsel %vm3224, %v3213, %v3215
    %v3230 = vsel %vm3224, %v3211, %v3213
    %v3231 = vsel %vm3224, %v3209, %v3211
    %v3232 = vsel %vm3224, %v3223, %v3209
    %vm3233 = vcmp.le.s32.totalorder %v1296, 509
    %vm3234 = vcmp.le.s32.totalorder %v1297, 509
    %vm3235 = vcmp.le.s32.totalorder %v1298, 509
    %vm3236 = vcmp.le.s32.totalorder %v1299, 509
    %vm3237 = vcmp.le.s32.totalorder %v1300, 509
    %vm3238 = vcmp.le.s32.totalorder %v1301, 509
    %vm3239 = vcmp.le.s32.totalorder %v1302, 509
    %vm3240 = vcmp.le.s32.totalorder %v1303, 509
    %v3241 = vsel %vm3233, 1, 0
    %v3242 = vsel %vm3234, 1, 0
    %v3243 = vsel %vm3235, 1, 0
    %v3244 = vsel %vm3236, 1, 0
    %v3245 = vsel %vm3237, 1, 0
    %v3246 = vsel %vm3238, 1, 0
    %v3247 = vsel %vm3239, 1, 0
    %v3248 = vsel %vm3240, 1, 0
    %vm3249 = vcmp.eq.s32.totalorder %v3241, 1
    %vm3250 = vcmp.eq.s32.totalorder %v3242, 1
    %vm3251 = vcmp.eq.s32.totalorder %v3243, 1
    %vm3252 = vcmp.eq.s32.totalorder %v3244, 1
    %vm3253 = vcmp.eq.s32.totalorder %v3245, 1
    %vm3254 = vcmp.eq.s32.totalorder %v3246, 1
    %vm3255 = vcmp.eq.s32.totalorder %v3247, 1
    %vm3256 = vcmp.eq.s32.totalorder %v3248, 1
    %v3257 = vsel %vm3249, %v3231, 0.0
    %v3258 = vsel %vm3250, %v3230, 0.0
    %v3259 = vsel %vm3251, %v3229, 0.0
    %v3260 = vsel %vm3252, %v3228, 0.0
    %v3261 = vsel %vm3253, %v3227, 0.0
    %v3262 = vsel %vm3254, %v3226, 0.0
    %v3263 = vsel %vm3255, %v3225, 0.0
    %v3264 = vsel %vm3256, %v3232, 0.0
    %3266 = vset.pattern.permute.xlu0 0
    %3267 = vperm.xlu0 %3266, %v2962
    %v3268 = vpop.permute.xlu0 %3267
    %v3270 = vmul.f32 %v3268, %v3257
    %v3271 = vmul.f32 %v3268, %v3258
    %v3272 = vmul.f32 %v3268, %v3259
    %v3273 = vmul.f32 %v3268, %v3260
    %v3274 = vmul.f32 %v3268, %v3261
    %v3275 = vmul.f32 %v3268, %v3262
    %v3276 = vmul.f32 %v3268, %v3263
    %v3277 = vmul.f32 %v3268, %v3264
    %v3278 = vadd.f32 %v3200, %v3270
    %v3279 = vadd.f32 %v3201, %v3271
    %v3280 = vadd.f32 %v3202, %v3272
    %v3281 = vadd.f32 %v3203, %v3273
    %v3282 = vadd.f32 %v3204, %v3274
    %v3283 = vadd.f32 %v3205, %v3275
    %v3284 = vadd.f32 %v3206, %v3276
    %v3285 = vadd.f32 %v3207, %v3277
    %v3286 = vld [vmem:[%s17] sm:$0xff]
    %3288 = vset.pattern.permute.xlu0 0
    %3289 = vperm.xlu0 %3288, %v3286
    %v3290 = vpop.permute.xlu0 %3289
    %v3292 = vadd.f32 %v3278, %v3290
    %v3293 = vadd.f32 %v3279, %v3290
    %v3294 = vadd.f32 %v3280, %v3290
    %v3295 = vadd.f32 %v3281, %v3290
    %v3296 = vadd.f32 %v3282, %v3290
    %v3297 = vadd.f32 %v3283, %v3290
    %v3298 = vadd.f32 %v3284, %v3290
    %v3299 = vadd.f32 %v3285, %v3290
    %v3300 = vld [vmem:[%s18] sm:$0xff]
    %v3301 = vtanh.pop %v3292
    %v3302 = vtanh.pop %v3293
    %v3303 = vtanh.pop %v3294
    %v3304 = vtanh.pop %v3295
    %v3305 = vtanh.pop %v3296
    %v3306 = vtanh.pop %v3297
    %v3307 = vtanh.pop %v3298
    %v3308 = vtanh.pop %v3299
    %3310 = vset.pattern.permute.xlu0 0
    %3311 = vperm.xlu0 %3310, %v3300
    %v3312 = vpop.permute.xlu0 %3311
    %v3314 = vmul.f32 %v3312, %v3301
    %v3315 = vmul.f32 %v3312, %v3302
    %v3316 = vmul.f32 %v3312, %v3303
    %v3317 = vmul.f32 %v3312, %v3304
    %v3318 = vmul.f32 %v3312, %v3305
    %v3319 = vmul.f32 %v3312, %v3306
    %v3320 = vmul.f32 %v3312, %v3307
    %v3321 = vmul.f32 %v3312, %v3308
    %v3322 = vld [vmem:[%s19] sm:$0xff]
    %3324 = vset.pattern.permute.xlu0 0
    %3325 = vperm.xlu0 %3324, %v3322
    %v3326 = vpop.permute.xlu0 %3325
    %v3328 = vadd.f32 %v3314, %v3326
    %v3329 = vadd.f32 %v3315, %v3326
    %v3330 = vadd.f32 %v3316, %v3326
    %v3331 = vadd.f32 %v3317, %v3326
    %v3332 = vadd.f32 %v3318, %v3326
    %v3333 = vadd.f32 %v3319, %v3326
    %v3334 = vadd.f32 %v3320, %v3326
    %v3335 = vadd.f32 %v3321, %v3326
    %3336 = vst [vmem:[#allocation20] sm:$0xff] %v3328
    %3337 = vst [vmem:[#allocation20 + $0x8] sm:$0xff] %v3329
    %3338 = vst [vmem:[#allocation20 + $0x10] sm:$0xff] %v3330
    %3339 = vst [vmem:[#allocation20 + $0x18] sm:$0xff] %v3331
    %3340 = vst [vmem:[#allocation20 + $0x20] sm:$0xff] %v3332
    %3341 = vst [vmem:[#allocation20 + $0x28] sm:$0xff] %v3333
    %3342 = vst [vmem:[#allocation20 + $0x30] sm:$0xff] %v3334
    %3343 = vst [vmem:[#allocation20 + $0x38] sm:$0xff] %v3335
    // Predicated region
    $region118: #{tpu_custom_call.1} parent=1 // pred_check
      _
    $region119: #{tpu_custom_call.1} parent=1 // pred_check_branch
      %3345 = sbr.rel (0) target = $region121
    $region120: #{tpu_custom_call.1} parent=1 // pred_region
      %s3347 = ssub.s32 128, 128
      %3348 = vsyncadd [#allocation4], %s3347
      %s3350 = sshll.u32 [#allocation17], 4
      %s3351 = int_to_ptr.vmem [resolvable:$true] %s3350
      %3353 = dma.vmem_to_hbm [thread:$0]  %s3351, 128, %s20, [#allocation4]
    $region121: #{tpu_custom_call.1} parent=1 // pred_fallthru
      _
    // Predicated region
    $region122: #{tpu_custom_call.1} parent=1 // pred_check
      _
    $region123: #{tpu_custom_call.1} parent=1 // pred_check_branch
      %3355 = sbr.rel (0) target = $region125
    $region124: #{tpu_custom_call.1} parent=1 // pred_region
      %s3357 = ssub.s32 512, 512
      %3358 = vsyncadd [#allocation19], %s3357
      %s3360 = sshll.u32 [#allocation18], 4
      %s3361 = int_to_ptr.vmem [resolvable:$true] %s3360
      %3363 = dma.vmem_to_hbm [thread:$0]  %s3361, 512, %s21, [#allocation19]
    $region125: #{tpu_custom_call.1} parent=1 // pred_fallthru
      _
    // Predicated region
    $region126: #{tpu_custom_call.1} parent=1 // pred_check
      _
    $region127: #{tpu_custom_call.1} parent=1 // pred_check_branch
      %3365 = sbr.rel (0) target = $region129
    $region128: #{tpu_custom_call.1} parent=1 // pred_region
      %s3367 = ssub.s32 1024, 1024
      %3368 = vsyncadd [#allocation19], %s3367
      %s3370 = sshll.u32 [#allocation20], 4
      %s3371 = int_to_ptr.vmem [resolvable:$true] %s3370
      %3373 = dma.vmem_to_hbm [thread:$0]  %s3371, 1024, %s22, [#allocation19]
    $region129: #{tpu_custom_call.1} parent=1 // pred_fallthru
      _
    // Predicated region
    $region130: #{tpu_custom_call.1} parent=1 // pred_check
      _
    $region131: #{tpu_custom_call.1} parent=1 // pred_check_branch
      %3375 = sbr.rel (0) target = $region133
    $region132: #{tpu_custom_call.1} parent=1 // pred_region
      %3376 = dma.done [#allocation4], 128
    $region133: #{tpu_custom_call.1} parent=1 // pred_fallthru
      _
    // Predicated region
    $region134: #{tpu_custom_call.1} parent=1 // pred_check
      _
    $region135: #{tpu_custom_call.1} parent=1 // pred_check_branch
      %3378 = sbr.rel (0) target = $region137
    $region136: #{tpu_custom_call.1} parent=1 // pred_region
      %3379 = dma.done [#allocation19], 512
    $region137: #{tpu_custom_call.1} parent=1 // pred_fallthru
      _
    // Predicated region
    $region138: #{tpu_custom_call.1} parent=1 // pred_check
      _
    $region139: #{tpu_custom_call.1} parent=1 // pred_check_branch
      %3381 = sbr.rel (0) target = $region141
    $region140: #{tpu_custom_call.1} parent=1 // pred_region
      %3382 = dma.done [#allocation19], 1024
    $region141: #{tpu_custom_call.1} parent=1 // pred_fallthru
      _
    %3383 = vsyncpa [#allocation3], 1
    %3384 = vsyncpa [#allocation6], 1
    %3385 = vsyncpa [#allocation9], 1
    %3386 = vsyncpa [#allocation12], 1
    %3387 = vsyncpa [#allocation15], 1
    %3388 = vsyncpa [#allocation4], 1
    %3389 = vsyncpa [#allocation19], 1

</llo_original>
